<compile_context>
chip_gen: v7x
topology: tpu7x:2x2x1
jax: 0.10.0
libtpu: 0.0.40
codegen_flags: <defaults>
</compile_context>

<pallas_src>
import jax
import jax.numpy as jnp
from jax import lax
from jax.experimental import pallas as pl
from jax.experimental.pallas import tpu as pltpu


def _round_up(x, m):
    return (x + m - 1) // m * m


# PyTorch LSTM gate order is (i, f, g, o); the kernel uses (i, f, o, g) so the
# three sigmoid gates are contiguous and tanh takes the last Hp block.
_GATE_PERM = (0, 1, 3, 2)


def _pad_gate_matrix(w, H, Hp, in_dim, in_pad):
    """PyTorch-layout LSTM weight (4H, in_dim) -> transposed (in_pad, 4*Hp)
    with gates reordered to (i,f,o,g) and each gate block placed at a
    128-aligned column offset k*Hp, zero-padded, so in-kernel gate slices are
    lane-aligned."""
    w4 = w.reshape(4, H, in_dim)[jnp.array(_GATE_PERM)]
    w4 = jnp.pad(w4, ((0, 0), (0, Hp - H), (0, in_pad - in_dim)))
    return jnp.transpose(w4, (2, 0, 1)).reshape(in_pad, 4 * Hp)


def _pad_gate_bias(b, H, Hp):
    b4 = b.reshape(4, H)[jnp.array(_GATE_PERM)]
    return jnp.pad(b4, ((0, 0), (0, Hp - H))).reshape(4 * Hp)


def _fused_lstm_kernel(g0_hbm, wih_ref, whh_ref, b_ref, h0_ref, c0_ref,
                       y_ref, hN_ref, cN_ref, g_sc, dma_sem):
    """Fused multi-layer LSTM.

    Grid: (batch_blocks [parallel], n_layers [arbitrary/sequential]).

    g0_hbm : (nb, T, Bb, 4Hp) HBM (memory_space=ANY): precomputed layer-0
             gate pre-activations (x @ W_ih0 + b0), DMA'd only at layer 0.
    wih_ref: (1, Hp, 4Hp)  W_ih of this layer (layers > 0; clamped index)
    whh_ref: (1, Hp, 4Hp)  W_hh of this layer
    b_ref  : (1, 1, 4Hp)   combined bias (b_ih + b_hh), used for layers > 0
    h0/c0  : (1, Bb, Hp)   this layer's initial state
    y_ref  : (T, Bb, Hp)   output sequence; constant block index across the
                           layer axis -> VMEM-resident inter-layer carry.
    hN/cN  : (1, Bb, Hp)   final state for this layer
    g_sc   : (T, Bb, 4Hp)  gate pre-activations for the whole sequence (f32)
    dma_sem: DMA semaphore for the layer-0 gate fetch
    """
    bblk = pl.program_id(0)
    layer = pl.program_id(1)
    T, Bb, Hp = y_ref.shape
    G = 4 * Hp

    # --- layer 0: gates were precomputed in the wrapper; DMA HBM -> g_sc ---
    @pl.when(layer == 0)
    def _():
        cp = pltpu.make_async_copy(g0_hbm.at[bblk], g_sc, dma_sem)
        cp.start()
        cp.wait()

    # --- layers > 0: ONE big MXU matmul over the whole sequence, using the
    #     previous layer's output which is still VMEM-resident in y_ref. ---
    @pl.when(layer > 0)
    def _():
        y2d = y_ref[...].reshape(T * Bb, Hp).astype(wih_ref.dtype)
        g = jnp.dot(y2d, wih_ref[0], preferred_element_type=jnp.float32)
        g_sc[...] = (g + b_ref[0]).reshape(T, Bb, G)

    # --- sequential recurrence: only h @ W_hh + gate math per step.
    #     h/c are fori_loop carries (vregs), not VMEM scratch. ---
    def step(t, carry):
        h, c = carry
        gates = g_sc[t] + jnp.dot(h.astype(whh_ref.dtype), whh_ref[0],
                                  preferred_element_type=jnp.float32)
        # gate layout (i, f, o, g): one sigmoid over 3*Hp lanes, one tanh.
        s = jax.nn.sigmoid(gates[:, :3 * Hp])
        g_t = jnp.tanh(gates[:, 3 * Hp:])
        i = s[:, 0 * Hp:1 * Hp]
        f = s[:, 1 * Hp:2 * Hp]
        o = s[:, 2 * Hp:3 * Hp]
        c_new = f * c + i * g_t
        h_new = o * jnp.tanh(c_new)
        y_ref[t] = h_new.astype(y_ref.dtype)
        return (h_new, c_new)

    # fixed partial unroll so the LLO scheduler can overlap store/load/VPU
    # work with the next step's MXU drain.
    if T % 8 == 0:
        unroll = 8
    elif T % 4 == 0:
        unroll = 4
    elif T % 2 == 0:
        unroll = 2
    else:
        unroll = 1

    h0 = h0_ref[0].astype(jnp.float32)
    c0 = c0_ref[0].astype(jnp.float32)
    hT, cT = lax.fori_loop(0, T, step, (h0, c0), unroll=unroll)

    hN_ref[0] = hT.astype(hN_ref.dtype)
    cN_ref[0] = cT.astype(cN_ref.dtype)


def fused_lstm_pallas(g0, wih_stack, whh_stack, b_stack, h0_p, c0_p,
                      batch_block=None):
    """Run the fused multi-layer LSTM.

    g0        : (T, Bp, 4Hp) f32  precomputed layer-0 gate pre-activations
    wih_stack : (max(L-1,1), Hp, 4Hp)  W_ih for layers 1..L-1 (gate-padded)
    whh_stack : (L, Hp, 4Hp)
    b_stack   : (L, 1, 4Hp)  f32 combined biases (used for layers > 0)
    h0_p/c0_p : (L, Bp, Hp)  f32
    Returns (y (T,Bp,Hp), h_N (L,Bp,Hp), c_N (L,Bp,Hp)), all f32.
    """
    T, Bp, G = g0.shape
    L, Hp, G2 = whh_stack.shape
    assert G2 == G and G == 4 * Hp

    Bb = Bp if batch_block is None else batch_block
    assert Bp % Bb == 0 and Bb % 8 == 0
    nb = Bp // Bb

    # (T, Bp, G) -> (nb, T, Bb, G): each batch block is one contiguous DMA.
    g0_blk = g0.reshape(T, nb, Bb, G).transpose(1, 0, 2, 3)

    out_shape = (
        jax.ShapeDtypeStruct((T, Bp, Hp), jnp.float32),
        jax.ShapeDtypeStruct((L, Bp, Hp), jnp.float32),
        jax.ShapeDtypeStruct((L, Bp, Hp), jnp.float32),
    )

    grid_spec = pltpu.PrefetchScalarGridSpec(
        num_scalar_prefetch=0,
        grid=(nb, L),
        in_specs=[
            pl.BlockSpec(memory_space=pl.ANY),                    # g0 (HBM)
            # clamped index: no dummy slot, no useless DMA at l=0, and
            # layer-1's W_ih is already resident when l=1 starts.
            pl.BlockSpec((1, Hp, G), lambda b, l: (jnp.maximum(l, 1) - 1, 0, 0)),
            pl.BlockSpec((1, Hp, G), lambda b, l: (l, 0, 0)),     # W_hh
            pl.BlockSpec((1, 1, G), lambda b, l: (l, 0, 0)),      # bias
            pl.BlockSpec((1, Bb, Hp), lambda b, l: (l, b, 0)),    # h0
            pl.BlockSpec((1, Bb, Hp), lambda b, l: (l, b, 0)),    # c0
        ],
        out_specs=[
            # constant block index along the layer axis -> VMEM-resident carry
            pl.BlockSpec((T, Bb, Hp), lambda b, l: (0, b, 0)),    # y sequence
            pl.BlockSpec((1, Bb, Hp), lambda b, l: (l, b, 0)),    # h_N
            pl.BlockSpec((1, Bb, Hp), lambda b, l: (l, b, 0)),    # c_N
        ],
        scratch_shapes=[
            pltpu.VMEM((T, Bb, G), jnp.float32),   # gate pre-activations
            pltpu.SemaphoreType.DMA(()),           # layer-0 gate DMA
        ],
    )

    # --- explicit VMEM footprint -> vmem_limit_bytes (with headroom) ---
    w_bytes = whh_stack.dtype.itemsize
    vmem_bytes = (
        T * Bb * G * 4                        # g_sc scratch
        + 2 * T * Bb * Hp * 4                 # y block (double-buffered)
        + 2 * 2 * Hp * G * w_bytes            # wih + whh blocks (x2 buffers)
        + 2 * G * 4                           # bias block
        + 2 * 4 * Bb * Hp * 4                 # h0, c0, hN, cN blocks
    )
    vmem_limit = min(128 * 1024 * 1024,
                     max(int(vmem_bytes * 1.5) + (4 << 20), 16 << 20))

    # --- advisory cost estimate (recurrence makes the kernel long) ---
    flops = int(2 * T * Bp * Hp * G * (2 * L - 1))
    transcendentals = int(5 * L * T * Bp * Hp)
    bytes_accessed = int(
        g0.size * 4
        + (wih_stack.size + whh_stack.size) * w_bytes
        + b_stack.size * 4
        + (h0_p.size + c0_p.size) * 4
        + (T * Bp * Hp + 2 * L * Bp * Hp) * 4)

    return pl.pallas_call(
        _fused_lstm_kernel,
        out_shape=out_shape,
        grid_spec=grid_spec,
        compiler_params=pltpu.CompilerParams(
            # batch axis can be split across v7x's two TensorCores (pick
            # batch_block = Bp // 2 when batch permits); the layer axis
            # carries the recurrence and must stay sequential.
            dimension_semantics=("parallel", "arbitrary"),
            vmem_limit_bytes=vmem_limit),
        cost_estimate=pl.CostEstimate(flops=flops,
                                      transcendentals=transcendentals,
                                      bytes_accessed=bytes_accessed),
    )(g0_blk, wih_stack, whh_stack, b_stack, h0_p, c0_p)


class CorePallas:
    """JAX/Pallas equivalent of alphastarmini Core (nn.LSTM, batch_first).

    `compute_dtype=jnp.bfloat16` feeds bf16 weights/operands to the MXU
    (recommended on v6e/v7x); carries and gate math stay f32.  Default f32
    for exact-ish parity with the f32 reference (1e-4 check below).
    """

    def __init__(self, embedding_dim, hidden_dim, batch_size, sequence_length,
                 n_layers, seed=0, compute_dtype=jnp.float32, batch_block=None):
        self.embedding_dim = embedding_dim
        self.hidden_dim = hidden_dim
        self.batch_size = batch_size
        self.sequence_length = sequence_length
        self.n_layers = n_layers
        self.compute_dtype = compute_dtype
        self.batch_block = batch_block

        # Deterministic parameter init (PyTorch-style U(-k, k), k = 1/sqrt(H)).
        kinit = 1.0 / jnp.sqrt(jnp.float32(hidden_dim))
        key = jax.random.PRNGKey(seed)
        self.params = []
        for layer in range(n_layers):
            in_dim = embedding_dim if layer == 0 else hidden_dim
            key, k1, k2, k3, k4 = jax.random.split(key, 5)
            w_ih = jax.random.uniform(k1, (4 * hidden_dim, in_dim), jnp.float32, -kinit, kinit)
            w_hh = jax.random.uniform(k2, (4 * hidden_dim, hidden_dim), jnp.float32, -kinit, kinit)
            b_ih = jax.random.uniform(k3, (4 * hidden_dim,), jnp.float32, -kinit, kinit)
            b_hh = jax.random.uniform(k4, (4 * hidden_dim,), jnp.float32, -kinit, kinit)
            self.params.append((w_ih, w_hh, b_ih, b_hh))

        # --- pre-pack lane-aligned, gate-block-padded weights (done once) ---
        H, E = hidden_dim, embedding_dim
        Hp = _round_up(H, 128)
        self.Hp = Hp

        # Layer-0 projection runs in the wrapper -> no E padding needed.
        w_ih0, _, b_ih0, b_hh0 = self.params[0]
        self.wih0_p = _pad_gate_matrix(w_ih0, H, Hp, E, E).astype(compute_dtype)  # (E, 4Hp)
        self.b0_p = _pad_gate_bias(b_ih0 + b_hh0, H, Hp)                           # (4Hp,) f32

        wih_rest, whh_all, b_all = [], [], []
        for layer, (w_ih, w_hh, b_ih, b_hh) in enumerate(self.params):
            whh_all.append(_pad_gate_matrix(w_hh, H, Hp, H, Hp))
            b_all.append(_pad_gate_bias(b_ih + b_hh, H, Hp))
            if layer > 0:
                wih_rest.append(_pad_gate_matrix(w_ih, H, Hp, H, Hp))
        if not wih_rest:                                   # n_layers == 1
            wih_rest.append(jnp.zeros((Hp, 4 * Hp), jnp.float32))
        self.wih_stack = jnp.stack(wih_rest).astype(compute_dtype)  # (max(L-1,1), Hp, 4Hp)
        self.whh_stack = jnp.stack(whh_all).astype(compute_dtype)   # (L, Hp, 4Hp)
        self.b_stack = jnp.stack(b_all)[:, None, :]                 # (L, 1, 4Hp) f32

    def init_hidden_state(self, batch_size=1):
        z = jnp.zeros((self.n_layers, batch_size, self.hidden_dim), jnp.float32)
        return (z, z)

    def __call__(self, embedded_scalar, embedded_entity, embedded_spatial,
                 batch_size=None, sequence_length=None, hidden_state=None):
        B = batch_size if batch_size is not None else self.batch_size
        T = sequence_length if sequence_length is not None else self.sequence_length
        batch_seq_size = embedded_scalar.shape[0]
        assert batch_seq_size == B * T
        assert batch_seq_size == embedded_entity.shape[0]
        assert batch_seq_size == embedded_spatial.shape[0]

        x = jnp.concatenate([embedded_scalar, embedded_entity, embedded_spatial], axis=-1)
        E = x.shape[-1]
        assert E == self.embedding_dim
        H, Hp, L = self.hidden_dim, self.Hp, self.n_layers
        Bp = _round_up(B, 8)
        if self.batch_block is not None:
            Bp = _round_up(Bp, self.batch_block)

        if hidden_state is None:
            hidden_state = self.init_hidden_state(batch_size=B)
        h0, c0 = hidden_state

        # batch-first (B,T,E) -> time-major (T,B,E), zero-pad B->Bp.
        x = x.reshape(B, T, E).transpose(1, 0, 2)
        x = jnp.pad(x, ((0, 0), (0, Bp - B), (0, 0)))

        # Hoisted layer-0 input projection: one plain XLA matmul over the
        # whole (T*Bp) sequence, off the kernel's serial path.
        g0 = jnp.dot(x.reshape(T * Bp, E).astype(self.compute_dtype), self.wih0_p,
                     preferred_element_type=jnp.float32,
                     precision=lax.Precision.HIGHEST)
        g0 = (g0 + self.b0_p).reshape(T, Bp, 4 * Hp).astype(jnp.float32)

        h0p = jnp.pad(h0.astype(jnp.float32), ((0, 0), (0, Bp - B), (0, Hp - H)))
        c0p = jnp.pad(c0.astype(jnp.float32), ((0, 0), (0, Bp - B), (0, Hp - H)))

        y, hN, cN = fused_lstm_pallas(
            g0, self.wih_stack, self.whh_stack, self.b_stack, h0p, c0p,
            batch_block=self.batch_block)

        lstm_output = y[:, :B, :H].transpose(1, 0, 2).reshape(B * T, H)
        hidden = (hN[:, :B, :H], cN[:, :B, :H])
        return lstm_output, hidden


def _reference_lstm(core, embedded_scalar, embedded_entity, embedded_spatial,
                    batch_size, sequence_length, hidden_state=None):
    """Pure-JAX reference (lax.scan) with PyTorch LSTM semantics, f32-highest."""
    x = jnp.concatenate([embedded_scalar, embedded_entity, embedded_spatial], -1)
    x = x.reshape(batch_size, sequence_length, -1).transpose(1, 0, 2)  # (T,B,E)
    H = core.hidden_dim
    if hidden_state is None:
        h_all = jnp.zeros((core.n_layers, batch_size, H), jnp.float32)
        c_all = jnp.zeros_like(h_all)
    else:
        h_all, c_all = hidden_state
    h_fin, c_fin = [], []
    for li, (w_ih, w_hh, b_ih, b_hh) in enumerate(core.params):
        def step(carry, x_t, w_ih=w_ih, w_hh=w_hh, b_ih=b_ih, b_hh=b_hh):
            h, c = carry
            gates = (jnp.dot(x_t, w_ih.T, precision=lax.Precision.HIGHEST)
                     + jnp.dot(h, w_hh.T, precision=lax.Precision.HIGHEST)
                     + b_ih + b_hh)
            i = jax.nn.sigmoid(gates[:, 0 * H:1 * H])
            f = jax.nn.sigmoid(gates[:, 1 * H:2 * H])
            g = jnp.tanh(gates[:, 2 * H:3 * H])
            o = jax.nn.sigmoid(gates[:, 3 * H:4 * H])
            c = f * c + i * g
            h = o * jnp.tanh(c)
            return (h, c), h
        (hT, cT), y = lax.scan(step, (h_all[li], c_all[li]), x)
        h_fin.append(hT)
        c_fin.append(cT)
        x = y
    out = x.transpose(1, 0, 2).reshape(batch_size * sequence_length, H)
    return out, (jnp.stack(h_fin), jnp.stack(c_fin))


if __name__ == "__main__":
    # Small shapes consistent with the module's forward.
    B, T = 2, 8
    H = 32
    D_SCALAR, D_ENTITY, D_SPATIAL = 16, 8, 8
    E = D_SCALAR + D_ENTITY + D_SPATIAL      # embedding_dim = 32
    N_LAYERS = 2

    key = jax.random.PRNGKey(0)
    k1, k2, k3, k4, k5 = jax.random.split(key, 5)
    embedded_scalar = jax.random.normal(k1, (B * T, D_SCALAR), jnp.float32)
    embedded_entity = jax.random.normal(k2, (B * T, D_ENTITY), jnp.float32)
    embedded_spatial = jax.random.normal(k3, (B * T, D_SPATIAL), jnp.float32)

    core = CorePallas(embedding_dim=E, hidden_dim=H, batch_size=B,
                      sequence_length=T, n_layers=N_LAYERS, seed=0)

    # --- default (zero) initial hidden state ---
    lstm_output, (h_n, c_n) = core(embedded_scalar, embedded_entity, embedded_spatial)
    jax.block_until_ready((lstm_output, h_n, c_n))

    assert lstm_output.shape == (B * T, H)
    assert h_n.shape == (N_LAYERS, B, H)
    assert c_n.shape == (N_LAYERS, B, H)

    ref_out, (ref_h, ref_c) = _reference_lstm(
        core, embedded_scalar, embedded_entity, embedded_spatial, B, T)
    assert jnp.allclose(lstm_output, ref_out, atol=1e-4, rtol=1e-4)
    assert jnp.allclose(h_n, ref_h, atol=1e-4, rtol=1e-4)
    assert jnp.allclose(c_n, ref_c, atol=1e-4, rtol=1e-4)

    # --- explicit non-zero initial hidden state ---
    h0 = 0.1 * jax.random.normal(k4, (N_LAYERS, B, H), jnp.float32)
    c0 = 0.1 * jax.random.normal(k5, (N_LAYERS, B, H), jnp.float32)
    out2, (h2, c2) = core(embedded_scalar, embedded_entity, embedded_spatial,
                          hidden_state=(h0, c0))
    jax.block_until_ready((out2, h2, c2))
    ref_out2, (ref_h2, ref_c2) = _reference_lstm(
        core, embedded_scalar, embedded_entity, embedded_spatial, B, T,
        hidden_state=(h0, c0))
    assert jnp.allclose(out2, ref_out2, atol=1e-4, rtol=1e-4)
    assert jnp.allclose(h2, ref_h2, atol=1e-4, rtol=1e-4)
    assert jnp.allclose(c2, ref_c2, atol=1e-4, rtol=1e-4)

    print("KERNEL_OK")
</pallas_src>

<mosaic_0001>
module attributes {stable_mosaic.version = 11 : i64} {
  func.func @_fused_lstm_kernel(%arg0: i32, %arg1: i32, %arg2: memref<1x8x8x512xf32, #tpu.memory_space<any>>, %arg3: memref<1x128x512xf32, #tpu.memory_space<vmem>>, %arg4: memref<1x128x512xf32, #tpu.memory_space<vmem>>, %arg5: memref<1x1x512xf32, #tpu.memory_space<vmem>>, %arg6: memref<1x8x128xf32, #tpu.memory_space<vmem>>, %arg7: memref<1x8x128xf32, #tpu.memory_space<vmem>>, %arg8: memref<8x8x128xf32, #tpu.memory_space<vmem>>, %arg9: memref<1x8x128xf32, #tpu.memory_space<vmem>>, %arg10: memref<1x8x128xf32, #tpu.memory_space<vmem>>, %arg11: memref<8x8x512xf32, #tpu.memory_space<vmem>>, %arg12: memref<!tpu.dma_semaphore, #tpu.memory_space<semaphore_mem>>) attributes {dimension_semantics = [#tpu.dimension_semantics<parallel>, #tpu.dimension_semantics<arbitrary>], iteration_bounds = array<i64: 1, 2>, scalar_prefetch = 0 : i64, scratch_operands = 2 : i64, tpu.core_type = #tpu.core_type<tc>, window_params = [{}, {transform_indices = @transform_1, window_bounds = array<i64: 1, 128, 512>}, {transform_indices = @transform_2, window_bounds = array<i64: 1, 128, 512>}, {transform_indices = @transform_3, window_bounds = array<i64: 1, 1, 512>}, {transform_indices = @transform_4, window_bounds = array<i64: 1, 8, 128>}, {transform_indices = @transform_5, window_bounds = array<i64: 1, 8, 128>}, {transform_indices = @transform_6, window_bounds = array<i64: 8, 8, 128>}, {transform_indices = @transform_7, window_bounds = array<i64: 1, 8, 128>}, {transform_indices = @transform_8, window_bounds = array<i64: 1, 8, 128>}]} {
    %c0_i32 = arith.constant 0 : i32
    %0 = arith.cmpi eq, %arg1, %c0_i32 : i32
    %1 = arith.extui %0 : i1 to i32
    %c0_i32_0 = arith.constant 0 : i32
    %2 = arith.cmpi ne, %1, %c0_i32_0 : i32
    scf.if %2 {
      %c0_i32_86 = arith.constant 0 : i32
      %c0_i32_87 = arith.constant 0 : i32
      %c0_i32_88 = arith.constant 0 : i32
      %232 = tpu.memref_slice %arg2[%arg0, %c0_i32_86, %c0_i32_87, %c0_i32_88] : memref<1x8x8x512xf32, #tpu.memory_space<any>> -> memref<1x8x8x512xf32, #tpu.memory_space<any>>
      %233 = tpu.memref_squeeze %232 : memref<1x8x8x512xf32, #tpu.memory_space<any>> -> memref<8x8x512xf32, #tpu.memory_space<any>>
      tpu.enqueue_dma source(%233 : memref<8x8x512xf32, #tpu.memory_space<any>>) target(%arg11 : memref<8x8x512xf32, #tpu.memory_space<vmem>>) target_semaphore(%arg12 : memref<!tpu.dma_semaphore, #tpu.memory_space<semaphore_mem>>)
      %c0_i32_89 = arith.constant 0 : i32
      %c0_i32_90 = arith.constant 0 : i32
      %c0_i32_91 = arith.constant 0 : i32
      %234 = tpu.memref_slice %arg2[%arg0, %c0_i32_89, %c0_i32_90, %c0_i32_91] : memref<1x8x8x512xf32, #tpu.memory_space<any>> -> memref<1x8x8x512xf32, #tpu.memory_space<any>>
      %235 = tpu.memref_squeeze %234 : memref<1x8x8x512xf32, #tpu.memory_space<any>> -> memref<8x8x512xf32, #tpu.memory_space<any>>
      tpu.wait_dma2 semaphore(%arg12 : memref<!tpu.dma_semaphore, #tpu.memory_space<semaphore_mem>>) src(%235 : memref<8x8x512xf32, #tpu.memory_space<any>>) dst(%arg11 : memref<8x8x512xf32, #tpu.memory_space<vmem>>)
    } else {
    }
    %c0_i32_1 = arith.constant 0 : i32
    %3 = arith.cmpi sgt, %arg1, %c0_i32_1 : i32
    %4 = arith.extui %3 : i1 to i32
    %c0_i32_2 = arith.constant 0 : i32
    %5 = arith.cmpi ne, %4, %c0_i32_2 : i32
    scf.if %5 {
      %c0_86 = arith.constant 0 : index
      %c0_87 = arith.constant 0 : index
      %c0_88 = arith.constant 0 : index
      %232 = vector.load %arg8[%c0_86, %c0_87, %c0_88] : memref<8x8x128xf32, #tpu.memory_space<vmem>>, vector<8x8x128xf32>
      %233 = vector.shape_cast %232 : vector<8x8x128xf32> to vector<64x128xf32>
      %c0_89 = arith.constant 0 : index
      %c0_90 = arith.constant 0 : index
      %c0_91 = arith.constant 0 : index
      %234 = vector.load %arg3[%c0_89, %c0_90, %c0_91] : memref<1x128x512xf32, #tpu.memory_space<vmem>>, vector<1x128x512xf32>
      %235 = vector.shape_cast %234 : vector<1x128x512xf32> to vector<128x512xf32>
      %cst_92 = arith.constant dense<0.000000e+00> : vector<64x512xf32>
      %236 = tpu.matmul %233, %235, %cst_92 {dimension_numbers = #tpu.dot_dimension_numbers<[1], [0], [0], [1], [0, 0, 1, 1], [], []>} : vector<64x128xf32>, vector<128x512xf32>, vector<64x512xf32> -> vector<64x512xf32>
      %c0_93 = arith.constant 0 : index
      %c0_94 = arith.constant 0 : index
      %c0_95 = arith.constant 0 : index
      %237 = vector.load %arg5[%c0_93, %c0_94, %c0_95] : memref<1x1x512xf32, #tpu.memory_space<vmem>>, vector<1x1x512xf32>
      %238 = vector.shape_cast %237 : vector<1x1x512xf32> to vector<1x512xf32>
      %239 = vector.broadcast %238 : vector<1x512xf32> to vector<64x512xf32>
      %240 = arith.addf %236, %239 : vector<64x512xf32>
      %241 = vector.shape_cast %240 : vector<64x512xf32> to vector<8x8x512xf32>
      %c0_96 = arith.constant 0 : index
      %c0_97 = arith.constant 0 : index
      %c0_98 = arith.constant 0 : index
      %242 = vector.load %arg11[%c0_96, %c0_97, %c0_98] : memref<8x8x512xf32, #tpu.memory_space<vmem>>, vector<8x8x512xf32>
      tpu.vector_store %arg11[%c0_96, %c0_97, %c0_98], %241 {strides = array<i32>} : memref<8x8x512xf32, #tpu.memory_space<vmem>>, vector<8x8x512xf32>,
    } else {
    }
    %c0 = arith.constant 0 : index
    %c0_3 = arith.constant 0 : index
    %c0_4 = arith.constant 0 : index
    %6 = vector.load %arg6[%c0, %c0_3, %c0_4] : memref<1x8x128xf32, #tpu.memory_space<vmem>>, vector<1x8x128xf32>
    %7 = vector.shape_cast %6 : vector<1x8x128xf32> to vector<8x128xf32>
    %c0_5 = arith.constant 0 : index
    %c0_6 = arith.constant 0 : index
    %c0_7 = arith.constant 0 : index
    %8 = vector.load %arg7[%c0_5, %c0_6, %c0_7] : memref<1x8x128xf32, #tpu.memory_space<vmem>>, vector<1x8x128xf32>
    %9 = vector.shape_cast %8 : vector<1x8x128xf32> to vector<8x128xf32>
    %c0_i32_8 = arith.constant 0 : i32
    %10 = arith.index_cast %c0_i32_8 : i32 to index
    %c0_9 = arith.constant 0 : index
    %c0_10 = arith.constant 0 : index
    %11 = vector.load %arg11[%10, %c0_9, %c0_10] : memref<8x8x512xf32, #tpu.memory_space<vmem>>, vector<1x8x512xf32>
    %12 = vector.shape_cast %11 : vector<1x8x512xf32> to vector<8x512xf32>
    %c0_11 = arith.constant 0 : index
    %c0_12 = arith.constant 0 : index
    %c0_13 = arith.constant 0 : index
    %13 = vector.load %arg4[%c0_11, %c0_12, %c0_13] : memref<1x128x512xf32, #tpu.memory_space<vmem>>, vector<1x128x512xf32>
    %14 = vector.shape_cast %13 : vector<1x128x512xf32> to vector<128x512xf32>
    %cst = arith.constant dense<0.000000e+00> : vector<8x512xf32>
    %15 = tpu.matmul %7, %14, %cst {dimension_numbers = #tpu.dot_dimension_numbers<[1], [0], [0], [1], [0, 0, 1, 1], [], []>} : vector<8x128xf32>, vector<128x512xf32>, vector<8x512xf32> -> vector<8x512xf32>
    %16 = arith.addf %12, %15 : vector<8x512xf32>
    %17 = vector.extract_strided_slice %16 {offsets = [0, 0], sizes = [8, 384], strides = [1, 1]} : vector<8x512xf32> to vector<8x384xf32>
    %18 = arith.negf %17 : vector<8x384xf32>
    %19 = math.exp %18 : vector<8x384xf32>
    %cst_14 = arith.constant 1.000000e+00 : f32
    %20 = vector.broadcast %cst_14 : f32 to vector<8x384xf32>
    %21 = arith.addf %20, %19 : vector<8x384xf32>
    %22 = arith.divf %20, %21 : vector<8x384xf32>
    %23 = vector.extract_strided_slice %16 {offsets = [0, 384], sizes = [8, 128], strides = [1, 1]} : vector<8x512xf32> to vector<8x128xf32>
    %24 = math.tanh %23 : vector<8x128xf32>
    %25 = vector.extract_strided_slice %22 {offsets = [0, 0], sizes = [8, 128], strides = [1, 1]} : vector<8x384xf32> to vector<8x128xf32>
    %26 = vector.extract_strided_slice %22 {offsets = [0, 128], sizes = [8, 128], strides = [1, 1]} : vector<8x384xf32> to vector<8x128xf32>
    %27 = vector.extract_strided_slice %22 {offsets = [0, 256], sizes = [8, 128], strides = [1, 1]} : vector<8x384xf32> to vector<8x128xf32>
    %28 = arith.mulf %26, %9 : vector<8x128xf32>
    %29 = arith.mulf %25, %24 : vector<8x128xf32>
    %30 = arith.addf %28, %29 : vector<8x128xf32>
    %31 = math.tanh %30 : vector<8x128xf32>
    %32 = arith.mulf %27, %31 : vector<8x128xf32>
    %33 = arith.index_cast %c0_i32_8 : i32 to index
    %c0_15 = arith.constant 0 : index
    %c0_16 = arith.constant 0 : index
    %34 = vector.load %arg8[%33, %c0_15, %c0_16] : memref<8x8x128xf32, #tpu.memory_space<vmem>>, vector<1x8x128xf32>
    %35 = vector.shape_cast %34 : vector<1x8x128xf32> to vector<8x128xf32>
    %36 = vector.shape_cast %32 : vector<8x128xf32> to vector<1x8x128xf32>
    tpu.vector_store %arg8[%33, %c0_15, %c0_16], %36 {strides = array<i32>} : memref<8x8x128xf32, #tpu.memory_space<vmem>>, vector<1x8x128xf32>,
    %c1_i32 = arith.constant 1 : i32
    %37 = arith.index_cast %c1_i32 : i32 to index
    %c0_17 = arith.constant 0 : index
    %c0_18 = arith.constant 0 : index
    %38 = vector.load %arg11[%37, %c0_17, %c0_18] : memref<8x8x512xf32, #tpu.memory_space<vmem>>, vector<1x8x512xf32>
    %39 = vector.shape_cast %38 : vector<1x8x512xf32> to vector<8x512xf32>
    %c0_19 = arith.constant 0 : index
    %c0_20 = arith.constant 0 : index
    %c0_21 = arith.constant 0 : index
    %40 = vector.load %arg4[%c0_19, %c0_20, %c0_21] : memref<1x128x512xf32, #tpu.memory_space<vmem>>, vector<1x128x512xf32>
    %41 = vector.shape_cast %40 : vector<1x128x512xf32> to vector<128x512xf32>
    %cst_22 = arith.constant dense<0.000000e+00> : vector<8x512xf32>
    %42 = tpu.matmul %32, %41, %cst_22 {dimension_numbers = #tpu.dot_dimension_numbers<[1], [0], [0], [1], [0, 0, 1, 1], [], []>} : vector<8x128xf32>, vector<128x512xf32>, vector<8x512xf32> -> vector<8x512xf32>
    %43 = arith.addf %39, %42 : vector<8x512xf32>
    %44 = vector.extract_strided_slice %43 {offsets = [0, 0], sizes = [8, 384], strides = [1, 1]} : vector<8x512xf32> to vector<8x384xf32>
    %45 = arith.negf %44 : vector<8x384xf32>
    %46 = math.exp %45 : vector<8x384xf32>
    %cst_23 = arith.constant 1.000000e+00 : f32
    %47 = vector.broadcast %cst_23 : f32 to vector<8x384xf32>
    %48 = arith.addf %47, %46 : vector<8x384xf32>
    %49 = arith.divf %47, %48 : vector<8x384xf32>
    %50 = vector.extract_strided_slice %43 {offsets = [0, 384], sizes = [8, 128], strides = [1, 1]} : vector<8x512xf32> to vector<8x128xf32>
    %51 = math.tanh %50 : vector<8x128xf32>
    %52 = vector.extract_strided_slice %49 {offsets = [0, 0], sizes = [8, 128], strides = [1, 1]} : vector<8x384xf32> to vector<8x128xf32>
    %53 = vector.extract_strided_slice %49 {offsets = [0, 128], sizes = [8, 128], strides = [1, 1]} : vector<8x384xf32> to vector<8x128xf32>
    %54 = vector.extract_strided_slice %49 {offsets = [0, 256], sizes = [8, 128], strides = [1, 1]} : vector<8x384xf32> to vector<8x128xf32>
    %55 = arith.mulf %53, %30 : vector<8x128xf32>
    %56 = arith.mulf %52, %51 : vector<8x128xf32>
    %57 = arith.addf %55, %56 : vector<8x128xf32>
    %58 = math.tanh %57 : vector<8x128xf32>
    %59 = arith.mulf %54, %58 : vector<8x128xf32>
    %60 = arith.index_cast %c1_i32 : i32 to index
    %c0_24 = arith.constant 0 : index
    %c0_25 = arith.constant 0 : index
    %61 = vector.load %arg8[%60, %c0_24, %c0_25] : memref<8x8x128xf32, #tpu.memory_space<vmem>>, vector<1x8x128xf32>
    %62 = vector.shape_cast %61 : vector<1x8x128xf32> to vector<8x128xf32>
    %63 = vector.shape_cast %59 : vector<8x128xf32> to vector<1x8x128xf32>
    tpu.vector_store %arg8[%60, %c0_24, %c0_25], %63 {strides = array<i32>} : memref<8x8x128xf32, #tpu.memory_space<vmem>>, vector<1x8x128xf32>,
    %c2_i32 = arith.constant 2 : i32
    %64 = arith.index_cast %c2_i32 : i32 to index
    %c0_26 = arith.constant 0 : index
    %c0_27 = arith.constant 0 : index
    %65 = vector.load %arg11[%64, %c0_26, %c0_27] : memref<8x8x512xf32, #tpu.memory_space<vmem>>, vector<1x8x512xf32>
    %66 = vector.shape_cast %65 : vector<1x8x512xf32> to vector<8x512xf32>
    %c0_28 = arith.constant 0 : index
    %c0_29 = arith.constant 0 : index
    %c0_30 = arith.constant 0 : index
    %67 = vector.load %arg4[%c0_28, %c0_29, %c0_30] : memref<1x128x512xf32, #tpu.memory_space<vmem>>, vector<1x128x512xf32>
    %68 = vector.shape_cast %67 : vector<1x128x512xf32> to vector<128x512xf32>
    %cst_31 = arith.constant dense<0.000000e+00> : vector<8x512xf32>
    %69 = tpu.matmul %59, %68, %cst_31 {dimension_numbers = #tpu.dot_dimension_numbers<[1], [0], [0], [1], [0, 0, 1, 1], [], []>} : vector<8x128xf32>, vector<128x512xf32>, vector<8x512xf32> -> vector<8x512xf32>
    %70 = arith.addf %66, %69 : vector<8x512xf32>
    %71 = vector.extract_strided_slice %70 {offsets = [0, 0], sizes = [8, 384], strides = [1, 1]} : vector<8x512xf32> to vector<8x384xf32>
    %72 = arith.negf %71 : vector<8x384xf32>
    %73 = math.exp %72 : vector<8x384xf32>
    %cst_32 = arith.constant 1.000000e+00 : f32
    %74 = vector.broadcast %cst_32 : f32 to vector<8x384xf32>
    %75 = arith.addf %74, %73 : vector<8x384xf32>
    %76 = arith.divf %74, %75 : vector<8x384xf32>
    %77 = vector.extract_strided_slice %70 {offsets = [0, 384], sizes = [8, 128], strides = [1, 1]} : vector<8x512xf32> to vector<8x128xf32>
    %78 = math.tanh %77 : vector<8x128xf32>
    %79 = vector.extract_strided_slice %76 {offsets = [0, 0], sizes = [8, 128], strides = [1, 1]} : vector<8x384xf32> to vector<8x128xf32>
    %80 = vector.extract_strided_slice %76 {offsets = [0, 128], sizes = [8, 128], strides = [1, 1]} : vector<8x384xf32> to vector<8x128xf32>
    %81 = vector.extract_strided_slice %76 {offsets = [0, 256], sizes = [8, 128], strides = [1, 1]} : vector<8x384xf32> to vector<8x128xf32>
    %82 = arith.mulf %80, %57 : vector<8x128xf32>
    %83 = arith.mulf %79, %78 : vector<8x128xf32>
    %84 = arith.addf %82, %83 : vector<8x128xf32>
    %85 = math.tanh %84 : vector<8x128xf32>
    %86 = arith.mulf %81, %85 : vector<8x128xf32>
    %87 = arith.index_cast %c2_i32 : i32 to index
    %c0_33 = arith.constant 0 : index
    %c0_34 = arith.constant 0 : index
    %88 = vector.load %arg8[%87, %c0_33, %c0_34] : memref<8x8x128xf32, #tpu.memory_space<vmem>>, vector<1x8x128xf32>
    %89 = vector.shape_cast %88 : vector<1x8x128xf32> to vector<8x128xf32>
    %90 = vector.shape_cast %86 : vector<8x128xf32> to vector<1x8x128xf32>
    tpu.vector_store %arg8[%87, %c0_33, %c0_34], %90 {strides = array<i32>} : memref<8x8x128xf32, #tpu.memory_space<vmem>>, vector<1x8x128xf32>,
    %c3_i32 = arith.constant 3 : i32
    %91 = arith.index_cast %c3_i32 : i32 to index
    %c0_35 = arith.constant 0 : index
    %c0_36 = arith.constant 0 : index
    %92 = vector.load %arg11[%91, %c0_35, %c0_36] : memref<8x8x512xf32, #tpu.memory_space<vmem>>, vector<1x8x512xf32>
    %93 = vector.shape_cast %92 : vector<1x8x512xf32> to vector<8x512xf32>
    %c0_37 = arith.constant 0 : index
    %c0_38 = arith.constant 0 : index
    %c0_39 = arith.constant 0 : index
    %94 = vector.load %arg4[%c0_37, %c0_38, %c0_39] : memref<1x128x512xf32, #tpu.memory_space<vmem>>, vector<1x128x512xf32>
    %95 = vector.shape_cast %94 : vector<1x128x512xf32> to vector<128x512xf32>
    %cst_40 = arith.constant dense<0.000000e+00> : vector<8x512xf32>
    %96 = tpu.matmul %86, %95, %cst_40 {dimension_numbers = #tpu.dot_dimension_numbers<[1], [0], [0], [1], [0, 0, 1, 1], [], []>} : vector<8x128xf32>, vector<128x512xf32>, vector<8x512xf32> -> vector<8x512xf32>
    %97 = arith.addf %93, %96 : vector<8x512xf32>
    %98 = vector.extract_strided_slice %97 {offsets = [0, 0], sizes = [8, 384], strides = [1, 1]} : vector<8x512xf32> to vector<8x384xf32>
    %99 = arith.negf %98 : vector<8x384xf32>
    %100 = math.exp %99 : vector<8x384xf32>
    %cst_41 = arith.constant 1.000000e+00 : f32
    %101 = vector.broadcast %cst_41 : f32 to vector<8x384xf32>
    %102 = arith.addf %101, %100 : vector<8x384xf32>
    %103 = arith.divf %101, %102 : vector<8x384xf32>
    %104 = vector.extract_strided_slice %97 {offsets = [0, 384], sizes = [8, 128], strides = [1, 1]} : vector<8x512xf32> to vector<8x128xf32>
    %105 = math.tanh %104 : vector<8x128xf32>
    %106 = vector.extract_strided_slice %103 {offsets = [0, 0], sizes = [8, 128], strides = [1, 1]} : vector<8x384xf32> to vector<8x128xf32>
    %107 = vector.extract_strided_slice %103 {offsets = [0, 128], sizes = [8, 128], strides = [1, 1]} : vector<8x384xf32> to vector<8x128xf32>
    %108 = vector.extract_strided_slice %103 {offsets = [0, 256], sizes = [8, 128], strides = [1, 1]} : vector<8x384xf32> to vector<8x128xf32>
    %109 = arith.mulf %107, %84 : vector<8x128xf32>
    %110 = arith.mulf %106, %105 : vector<8x128xf32>
    %111 = arith.addf %109, %110 : vector<8x128xf32>
    %112 = math.tanh %111 : vector<8x128xf32>
    %113 = arith.mulf %108, %112 : vector<8x128xf32>
    %114 = arith.index_cast %c3_i32 : i32 to index
    %c0_42 = arith.constant 0 : index
    %c0_43 = arith.constant 0 : index
    %115 = vector.load %arg8[%114, %c0_42, %c0_43] : memref<8x8x128xf32, #tpu.memory_space<vmem>>, vector<1x8x128xf32>
    %116 = vector.shape_cast %115 : vector<1x8x128xf32> to vector<8x128xf32>
    %117 = vector.shape_cast %113 : vector<8x128xf32> to vector<1x8x128xf32>
    tpu.vector_store %arg8[%114, %c0_42, %c0_43], %117 {strides = array<i32>} : memref<8x8x128xf32, #tpu.memory_space<vmem>>, vector<1x8x128xf32>,
    %c4_i32 = arith.constant 4 : i32
    %118 = arith.index_cast %c4_i32 : i32 to index
    %c0_44 = arith.constant 0 : index
    %c0_45 = arith.constant 0 : index
    %119 = vector.load %arg11[%118, %c0_44, %c0_45] : memref<8x8x512xf32, #tpu.memory_space<vmem>>, vector<1x8x512xf32>
    %120 = vector.shape_cast %119 : vector<1x8x512xf32> to vector<8x512xf32>
    %c0_46 = arith.constant 0 : index
    %c0_47 = arith.constant 0 : index
    %c0_48 = arith.constant 0 : index
    %121 = vector.load %arg4[%c0_46, %c0_47, %c0_48] : memref<1x128x512xf32, #tpu.memory_space<vmem>>, vector<1x128x512xf32>
    %122 = vector.shape_cast %121 : vector<1x128x512xf32> to vector<128x512xf32>
    %cst_49 = arith.constant dense<0.000000e+00> : vector<8x512xf32>
    %123 = tpu.matmul %113, %122, %cst_49 {dimension_numbers = #tpu.dot_dimension_numbers<[1], [0], [0], [1], [0, 0, 1, 1], [], []>} : vector<8x128xf32>, vector<128x512xf32>, vector<8x512xf32> -> vector<8x512xf32>
    %124 = arith.addf %120, %123 : vector<8x512xf32>
    %125 = vector.extract_strided_slice %124 {offsets = [0, 0], sizes = [8, 384], strides = [1, 1]} : vector<8x512xf32> to vector<8x384xf32>
    %126 = arith.negf %125 : vector<8x384xf32>
    %127 = math.exp %126 : vector<8x384xf32>
    %cst_50 = arith.constant 1.000000e+00 : f32
    %128 = vector.broadcast %cst_50 : f32 to vector<8x384xf32>
    %129 = arith.addf %128, %127 : vector<8x384xf32>
    %130 = arith.divf %128, %129 : vector<8x384xf32>
    %131 = vector.extract_strided_slice %124 {offsets = [0, 384], sizes = [8, 128], strides = [1, 1]} : vector<8x512xf32> to vector<8x128xf32>
    %132 = math.tanh %131 : vector<8x128xf32>
    %133 = vector.extract_strided_slice %130 {offsets = [0, 0], sizes = [8, 128], strides = [1, 1]} : vector<8x384xf32> to vector<8x128xf32>
    %134 = vector.extract_strided_slice %130 {offsets = [0, 128], sizes = [8, 128], strides = [1, 1]} : vector<8x384xf32> to vector<8x128xf32>
    %135 = vector.extract_strided_slice %130 {offsets = [0, 256], sizes = [8, 128], strides = [1, 1]} : vector<8x384xf32> to vector<8x128xf32>
    %136 = arith.mulf %134, %111 : vector<8x128xf32>
    %137 = arith.mulf %133, %132 : vector<8x128xf32>
    %138 = arith.addf %136, %137 : vector<8x128xf32>
    %139 = math.tanh %138 : vector<8x128xf32>
    %140 = arith.mulf %135, %139 : vector<8x128xf32>
    %141 = arith.index_cast %c4_i32 : i32 to index
    %c0_51 = arith.constant 0 : index
    %c0_52 = arith.constant 0 : index
    %142 = vector.load %arg8[%141, %c0_51, %c0_52] : memref<8x8x128xf32, #tpu.memory_space<vmem>>, vector<1x8x128xf32>
    %143 = vector.shape_cast %142 : vector<1x8x128xf32> to vector<8x128xf32>
    %144 = vector.shape_cast %140 : vector<8x128xf32> to vector<1x8x128xf32>
    tpu.vector_store %arg8[%141, %c0_51, %c0_52], %144 {strides = array<i32>} : memref<8x8x128xf32, #tpu.memory_space<vmem>>, vector<1x8x128xf32>,
    %c5_i32 = arith.constant 5 : i32
    %145 = arith.index_cast %c5_i32 : i32 to index
    %c0_53 = arith.constant 0 : index
    %c0_54 = arith.constant 0 : index
    %146 = vector.load %arg11[%145, %c0_53, %c0_54] : memref<8x8x512xf32, #tpu.memory_space<vmem>>, vector<1x8x512xf32>
    %147 = vector.shape_cast %146 : vector<1x8x512xf32> to vector<8x512xf32>
    %c0_55 = arith.constant 0 : index
    %c0_56 = arith.constant 0 : index
    %c0_57 = arith.constant 0 : index
    %148 = vector.load %arg4[%c0_55, %c0_56, %c0_57] : memref<1x128x512xf32, #tpu.memory_space<vmem>>, vector<1x128x512xf32>
    %149 = vector.shape_cast %148 : vector<1x128x512xf32> to vector<128x512xf32>
    %cst_58 = arith.constant dense<0.000000e+00> : vector<8x512xf32>
    %150 = tpu.matmul %140, %149, %cst_58 {dimension_numbers = #tpu.dot_dimension_numbers<[1], [0], [0], [1], [0, 0, 1, 1], [], []>} : vector<8x128xf32>, vector<128x512xf32>, vector<8x512xf32> -> vector<8x512xf32>
    %151 = arith.addf %147, %150 : vector<8x512xf32>
    %152 = vector.extract_strided_slice %151 {offsets = [0, 0], sizes = [8, 384], strides = [1, 1]} : vector<8x512xf32> to vector<8x384xf32>
    %153 = arith.negf %152 : vector<8x384xf32>
    %154 = math.exp %153 : vector<8x384xf32>
    %cst_59 = arith.constant 1.000000e+00 : f32
    %155 = vector.broadcast %cst_59 : f32 to vector<8x384xf32>
    %156 = arith.addf %155, %154 : vector<8x384xf32>
    %157 = arith.divf %155, %156 : vector<8x384xf32>
    %158 = vector.extract_strided_slice %151 {offsets = [0, 384], sizes = [8, 128], strides = [1, 1]} : vector<8x512xf32> to vector<8x128xf32>
    %159 = math.tanh %158 : vector<8x128xf32>
    %160 = vector.extract_strided_slice %157 {offsets = [0, 0], sizes = [8, 128], strides = [1, 1]} : vector<8x384xf32> to vector<8x128xf32>
    %161 = vector.extract_strided_slice %157 {offsets = [0, 128], sizes = [8, 128], strides = [1, 1]} : vector<8x384xf32> to vector<8x128xf32>
    %162 = vector.extract_strided_slice %157 {offsets = [0, 256], sizes = [8, 128], strides = [1, 1]} : vector<8x384xf32> to vector<8x128xf32>
    %163 = arith.mulf %161, %138 : vector<8x128xf32>
    %164 = arith.mulf %160, %159 : vector<8x128xf32>
    %165 = arith.addf %163, %164 : vector<8x128xf32>
    %166 = math.tanh %165 : vector<8x128xf32>
    %167 = arith.mulf %162, %166 : vector<8x128xf32>
    %168 = arith.index_cast %c5_i32 : i32 to index
    %c0_60 = arith.constant 0 : index
    %c0_61 = arith.constant 0 : index
    %169 = vector.load %arg8[%168, %c0_60, %c0_61] : memref<8x8x128xf32, #tpu.memory_space<vmem>>, vector<1x8x128xf32>
    %170 = vector.shape_cast %169 : vector<1x8x128xf32> to vector<8x128xf32>
    %171 = vector.shape_cast %167 : vector<8x128xf32> to vector<1x8x128xf32>
    tpu.vector_store %arg8[%168, %c0_60, %c0_61], %171 {strides = array<i32>} : memref<8x8x128xf32, #tpu.memory_space<vmem>>, vector<1x8x128xf32>,
    %c6_i32 = arith.constant 6 : i32
    %172 = arith.index_cast %c6_i32 : i32 to index
    %c0_62 = arith.constant 0 : index
    %c0_63 = arith.constant 0 : index
    %173 = vector.load %arg11[%172, %c0_62, %c0_63] : memref<8x8x512xf32, #tpu.memory_space<vmem>>, vector<1x8x512xf32>
    %174 = vector.shape_cast %173 : vector<1x8x512xf32> to vector<8x512xf32>
    %c0_64 = arith.constant 0 : index
    %c0_65 = arith.constant 0 : index
    %c0_66 = arith.constant 0 : index
    %175 = vector.load %arg4[%c0_64, %c0_65, %c0_66] : memref<1x128x512xf32, #tpu.memory_space<vmem>>, vector<1x128x512xf32>
    %176 = vector.shape_cast %175 : vector<1x128x512xf32> to vector<128x512xf32>
    %cst_67 = arith.constant dense<0.000000e+00> : vector<8x512xf32>
    %177 = tpu.matmul %167, %176, %cst_67 {dimension_numbers = #tpu.dot_dimension_numbers<[1], [0], [0], [1], [0, 0, 1, 1], [], []>} : vector<8x128xf32>, vector<128x512xf32>, vector<8x512xf32> -> vector<8x512xf32>
    %178 = arith.addf %174, %177 : vector<8x512xf32>
    %179 = vector.extract_strided_slice %178 {offsets = [0, 0], sizes = [8, 384], strides = [1, 1]} : vector<8x512xf32> to vector<8x384xf32>
    %180 = arith.negf %179 : vector<8x384xf32>
    %181 = math.exp %180 : vector<8x384xf32>
    %cst_68 = arith.constant 1.000000e+00 : f32
    %182 = vector.broadcast %cst_68 : f32 to vector<8x384xf32>
    %183 = arith.addf %182, %181 : vector<8x384xf32>
    %184 = arith.divf %182, %183 : vector<8x384xf32>
    %185 = vector.extract_strided_slice %178 {offsets = [0, 384], sizes = [8, 128], strides = [1, 1]} : vector<8x512xf32> to vector<8x128xf32>
    %186 = math.tanh %185 : vector<8x128xf32>
    %187 = vector.extract_strided_slice %184 {offsets = [0, 0], sizes = [8, 128], strides = [1, 1]} : vector<8x384xf32> to vector<8x128xf32>
    %188 = vector.extract_strided_slice %184 {offsets = [0, 128], sizes = [8, 128], strides = [1, 1]} : vector<8x384xf32> to vector<8x128xf32>
    %189 = vector.extract_strided_slice %184 {offsets = [0, 256], sizes = [8, 128], strides = [1, 1]} : vector<8x384xf32> to vector<8x128xf32>
    %190 = arith.mulf %188, %165 : vector<8x128xf32>
    %191 = arith.mulf %187, %186 : vector<8x128xf32>
    %192 = arith.addf %190, %191 : vector<8x128xf32>
    %193 = math.tanh %192 : vector<8x128xf32>
    %194 = arith.mulf %189, %193 : vector<8x128xf32>
    %195 = arith.index_cast %c6_i32 : i32 to index
    %c0_69 = arith.constant 0 : index
    %c0_70 = arith.constant 0 : index
    %196 = vector.load %arg8[%195, %c0_69, %c0_70] : memref<8x8x128xf32, #tpu.memory_space<vmem>>, vector<1x8x128xf32>
    %197 = vector.shape_cast %196 : vector<1x8x128xf32> to vector<8x128xf32>
    %198 = vector.shape_cast %194 : vector<8x128xf32> to vector<1x8x128xf32>
    tpu.vector_store %arg8[%195, %c0_69, %c0_70], %198 {strides = array<i32>} : memref<8x8x128xf32, #tpu.memory_space<vmem>>, vector<1x8x128xf32>,
    %c7_i32 = arith.constant 7 : i32
    %199 = arith.index_cast %c7_i32 : i32 to index
    %c0_71 = arith.constant 0 : index
    %c0_72 = arith.constant 0 : index
    %200 = vector.load %arg11[%199, %c0_71, %c0_72] : memref<8x8x512xf32, #tpu.memory_space<vmem>>, vector<1x8x512xf32>
    %201 = vector.shape_cast %200 : vector<1x8x512xf32> to vector<8x512xf32>
    %c0_73 = arith.constant 0 : index
    %c0_74 = arith.constant 0 : index
    %c0_75 = arith.constant 0 : index
    %202 = vector.load %arg4[%c0_73, %c0_74, %c0_75] : memref<1x128x512xf32, #tpu.memory_space<vmem>>, vector<1x128x512xf32>
    %203 = vector.shape_cast %202 : vector<1x128x512xf32> to vector<128x512xf32>
    %cst_76 = arith.constant dense<0.000000e+00> : vector<8x512xf32>
    %204 = tpu.matmul %194, %203, %cst_76 {dimension_numbers = #tpu.dot_dimension_numbers<[1], [0], [0], [1], [0, 0, 1, 1], [], []>} : vector<8x128xf32>, vector<128x512xf32>, vector<8x512xf32> -> vector<8x512xf32>
    %205 = arith.addf %201, %204 : vector<8x512xf32>
    %206 = vector.extract_strided_slice %205 {offsets = [0, 0], sizes = [8, 384], strides = [1, 1]} : vector<8x512xf32> to vector<8x384xf32>
    %207 = arith.negf %206 : vector<8x384xf32>
    %208 = math.exp %207 : vector<8x384xf32>
    %cst_77 = arith.constant 1.000000e+00 : f32
    %209 = vector.broadcast %cst_77 : f32 to vector<8x384xf32>
    %210 = arith.addf %209, %208 : vector<8x384xf32>
    %211 = arith.divf %209, %210 : vector<8x384xf32>
    %212 = vector.extract_strided_slice %205 {offsets = [0, 384], sizes = [8, 128], strides = [1, 1]} : vector<8x512xf32> to vector<8x128xf32>
    %213 = math.tanh %212 : vector<8x128xf32>
    %214 = vector.extract_strided_slice %211 {offsets = [0, 0], sizes = [8, 128], strides = [1, 1]} : vector<8x384xf32> to vector<8x128xf32>
    %215 = vector.extract_strided_slice %211 {offsets = [0, 128], sizes = [8, 128], strides = [1, 1]} : vector<8x384xf32> to vector<8x128xf32>
    %216 = vector.extract_strided_slice %211 {offsets = [0, 256], sizes = [8, 128], strides = [1, 1]} : vector<8x384xf32> to vector<8x128xf32>
    %217 = arith.mulf %215, %192 : vector<8x128xf32>
    %218 = arith.mulf %214, %213 : vector<8x128xf32>
    %219 = arith.addf %217, %218 : vector<8x128xf32>
    %220 = math.tanh %219 : vector<8x128xf32>
    %221 = arith.mulf %216, %220 : vector<8x128xf32>
    %222 = arith.index_cast %c7_i32 : i32 to index
    %c0_78 = arith.constant 0 : index
    %c0_79 = arith.constant 0 : index
    %223 = vector.load %arg8[%222, %c0_78, %c0_79] : memref<8x8x128xf32, #tpu.memory_space<vmem>>, vector<1x8x128xf32>
    %224 = vector.shape_cast %223 : vector<1x8x128xf32> to vector<8x128xf32>
    %225 = vector.shape_cast %221 : vector<8x128xf32> to vector<1x8x128xf32>
    tpu.vector_store %arg8[%222, %c0_78, %c0_79], %225 {strides = array<i32>} : memref<8x8x128xf32, #tpu.memory_space<vmem>>, vector<1x8x128xf32>,
    %c8_i32 = arith.constant 8 : i32
    %c0_80 = arith.constant 0 : index
    %c0_81 = arith.constant 0 : index
    %c0_82 = arith.constant 0 : index
    %226 = vector.load %arg9[%c0_80, %c0_81, %c0_82] : memref<1x8x128xf32, #tpu.memory_space<vmem>>, vector<1x8x128xf32>
    %227 = vector.shape_cast %226 : vector<1x8x128xf32> to vector<8x128xf32>
    %228 = vector.shape_cast %221 : vector<8x128xf32> to vector<1x8x128xf32>
    tpu.vector_store %arg9[%c0_80, %c0_81, %c0_82], %228 {strides = array<i32>} : memref<1x8x128xf32, #tpu.memory_space<vmem>>, vector<1x8x128xf32>,
    %c0_83 = arith.constant 0 : index
    %c0_84 = arith.constant 0 : index
    %c0_85 = arith.constant 0 : index
    %229 = vector.load %arg10[%c0_83, %c0_84, %c0_85] : memref<1x8x128xf32, #tpu.memory_space<vmem>>, vector<1x8x128xf32>
    %230 = vector.shape_cast %229 : vector<1x8x128xf32> to vector<8x128xf32>
    %231 = vector.shape_cast %219 : vector<8x128xf32> to vector<1x8x128xf32>
    tpu.vector_store %arg10[%c0_83, %c0_84, %c0_85], %231 {strides = array<i32>} : memref<1x8x128xf32, #tpu.memory_space<vmem>>, vector<1x8x128xf32>,
    return
  }
  func.func @transform_1(%arg0: i32, %arg1: i32) -> (i32, i32, i32) {
    %c1_i32 = arith.constant 1 : i32
    %0 = arith.maxsi %arg1, %c1_i32 : i32
    %c1_i32_0 = arith.constant 1 : i32
    %1 = arith.subi %0, %c1_i32_0 : i32
    %c0_i32 = arith.constant 0 : i32
    %c0_i32_1 = arith.constant 0 : i32
    %c0_i32_2 = arith.constant 0 : i32
    return %1, %c0_i32, %c0_i32_1 : i32, i32, i32
  }
  func.func @transform_2(%arg0: i32, %arg1: i32) -> (i32, i32, i32) {
    %c0_i32 = arith.constant 0 : i32
    %c0_i32_0 = arith.constant 0 : i32
    %c0_i32_1 = arith.constant 0 : i32
    return %arg1, %c0_i32, %c0_i32_0 : i32, i32, i32
  }
  func.func @transform_3(%arg0: i32, %arg1: i32) -> (i32, i32, i32) {
    %c0_i32 = arith.constant 0 : i32
    %c0_i32_0 = arith.constant 0 : i32
    %c0_i32_1 = arith.constant 0 : i32
    return %arg1, %c0_i32, %c0_i32_0 : i32, i32, i32
  }
  func.func @transform_4(%arg0: i32, %arg1: i32) -> (i32, i32, i32) {
    %c0_i32 = arith.constant 0 : i32
    %c0_i32_0 = arith.constant 0 : i32
    return %arg1, %arg0, %c0_i32 : i32, i32, i32
  }
  func.func @transform_5(%arg0: i32, %arg1: i32) -> (i32, i32, i32) {
    %c0_i32 = arith.constant 0 : i32
    %c0_i32_0 = arith.constant 0 : i32
    return %arg1, %arg0, %c0_i32 : i32, i32, i32
  }
  func.func @transform_6(%arg0: i32, %arg1: i32) -> (i32, i32, i32) {
    %c0_i32 = arith.constant 0 : i32
    %c0_i32_0 = arith.constant 0 : i32
    %c0_i32_1 = arith.constant 0 : i32
    return %c0_i32, %arg0, %c0_i32_0 : i32, i32, i32
  }
  func.func @transform_7(%arg0: i32, %arg1: i32) -> (i32, i32, i32) {
    %c0_i32 = arith.constant 0 : i32
    %c0_i32_0 = arith.constant 0 : i32
    return %arg1, %arg0, %c0_i32 : i32, i32, i32
  }
  func.func @transform_8(%arg0: i32, %arg1: i32) -> (i32, i32, i32) {
    %c0_i32 = arith.constant 0 : i32
    %c0_i32_0 = arith.constant 0 : i32
    return %arg1, %arg0, %c0_i32 : i32, i32, i32
  }
}

</mosaic_0001>

<llo_original>
// kernel: tpu_custom_call.1
$region0: #{tpu_custom_call.1}
  #allocation0 [shape = 'u32[]', space=smem, size = 0x4, offset = 0x4, fixed_abs, tag = 'smem constant byte address 0x4 - core index']
  #allocation1 [shape = 'u32[144,128]{1,0:T(1,128)}', space=vmem, size = 0x12000, scoped, tag = 'internal scratch']
  #allocation2 [shape = 'f32[8,8,512]{2,1,0:T(8,128)}', space=vmem, size = 0x20000, scoped, tag = 'scratch operand']
  #allocation3 [shape = 's32[1]{0}', space=sflag, size = 0x4, scoped, tag = 'scratch operand']
  #allocation16 [shape = 's32[]', space=sflag, size = 0x4, offset = 0, fixed_abs, tag = 'sflag constant byte address 0x0 - dummy sync flag']
  #allocation17 [shape = 's32[]', space=sflag, size = 0x4, offset = 0, fixed_abs, tag = 'sflag constant byte address 0x0 - dummy sync flag']
  #allocation18 [shape = 'u32[]', space=smem, size = 0x4, offset = 0x44, fixed_abs, tag = 'smem constant byte address 0x44 - assertion arg 0']
  #allocation19 [shape = 'u32[]', space=smem, size = 0x4, offset = 0x48, fixed_abs, tag = 'smem constant byte address 0x48 - assertion arg 1']
  %s0 = inlined_call_operand.hbm [shape: f32[1,8,8,512], index: 0, kind: input, shape index: {}]
  %s1 = inlined_call_operand.hbm [shape: f32[1,128,512], index: 1, kind: input, shape index: {}]
  %s2 = inlined_call_operand.hbm [shape: f32[2,128,512], index: 2, kind: input, shape index: {}]
  %s3 = inlined_call_operand.hbm [shape: f32[2,1,512], index: 3, kind: input, shape index: {}]
  %s4 = inlined_call_operand.hbm [shape: f32[2,8,128], index: 4, kind: input, shape index: {}]
  %s5 = inlined_call_operand.vmem [shape: f32[2,8,128], index: 5, kind: input, shape index: {}]
  %s6 = inlined_call_operand.hbm [shape: f32[8,8,128], index: 6, kind: output, shape index: {0}]
  %s7 = inlined_call_operand.hbm [shape: f32[2,8,128], index: 7, kind: output, shape index: {1}]
  %s8 = inlined_call_operand.hbm [shape: f32[2,8,128], index: 8, kind: output, shape index: {2}]
  %9 = xla_tuple %s6, %s7, %s8
  %s10 = sld [smem:[#allocation0]]
  $region97: #{tpu_custom_call.1} parent=0
    _
  %s12 = ssub.s32 1, %s10
  %s13 = scalar_select 0, %s12, %s10
  $region1: #{tpu_custom_call.1} parent=0
    #allocation4 [shape = 'u8[524288]{0}', space=vmem, size = 0x80000, scoped, tag = 'input window, operand 1']
    #allocation5 [shape = 's32[2]{0}', space=sflag, size = 0x8, scoped, tag = 'scoped memory for tpu_custom_call.1']
    #allocation6 [shape = 's32[2]{0}', space=sflag, size = 0x8, scoped, tag = 'scoped memory for tpu_custom_call.1']
    #allocation7 [shape = 'u8[524288]{0}', space=vmem, size = 0x80000, scoped, tag = 'input window, operand 2']
    #allocation8 [shape = 's32[2]{0}', space=sflag, size = 0x8, scoped, tag = 'scoped memory for tpu_custom_call.1']
    #allocation9 [shape = 'u8[4096]{0}', space=vmem, size = 0x1000, scoped, tag = 'input window, operand 3']
    #allocation10 [shape = 'u8[8192]{0}', space=vmem, size = 0x2000, scoped, tag = 'input window, operand 4']
    #allocation11 [shape = 's32[2]{0}', space=sflag, size = 0x8, scoped, tag = 'scoped memory for tpu_custom_call.1']
    #allocation12 [shape = 'u8[32768]{0}', space=vmem, size = 0x8000, scoped, tag = 'output window, operand 0, single buffered']
    #allocation13 [shape = 'u8[8192]{0}', space=vmem, size = 0x2000, scoped, tag = 'output window, operand 1']
    #allocation14 [shape = 's32[2]{0}', space=sflag, size = 0x8, scoped, tag = 'scoped memory for tpu_custom_call.1']
    #allocation15 [shape = 'u8[8192]{0}', space=vmem, size = 0x2000, scoped, tag = 'output window, operand 2']
    %14 = vsyncpa [#allocation5], 0
    %s15 = scalar_lea.sflag [#allocation5], 1
    %16 = vsyncpa %s15, 0
    %17 = vsyncpa [#allocation8], 0
    %s18 = scalar_lea.sflag [#allocation8], 1
    %19 = vsyncpa %s18, 0
    %20 = vsyncpa [#allocation11], 0
    %s21 = scalar_lea.sflag [#allocation11], 1
    %22 = vsyncpa %s21, 0
    %23 = vsyncpa [#allocation6], 0
    %24 = vsyncpa [#allocation14], 0
    %s25 = scalar_lea.sflag [#allocation14], 1
    %26 = vsyncpa %s25, 0
    loop: start=0, step=1, limit=4
    $region2: #{tpu_custom_call.1} parent=1 // loop_pre_header
      _
    $region3: #{tpu_custom_call.1} parent=1 // loop_header
      %s28 = sphi 0, %s32
      %p29 = scmp.ge.s32.totalorder %s28, 4
      %s35 = sphi 0, %s47
      %s36 = sphi 0, %s43
      %s37 = sphi 0, %s35
      %s38 = sphi 0, %s36
      %s39 = sphi 0, %s37
      %s40 = sphi 0, %s38
      %s56 = sphi 0, %s58
      %s59 = sphi 0, %s56
      %s60 = sphi 0, %s59
      %s76 = sphi 0, %s60
      %s82 = sphi 0, %s84
      %s85 = sphi 0, %s82
      %s86 = sphi 0, %s85
      %s102 = sphi 0, %s86
      %s108 = sphi 0, %s110
      %s111 = sphi 0, %s108
      %s112 = sphi 0, %s111
      %s128 = sphi 0, %s112
      %s136 = sphi 0, %s138
      %s139 = sphi 0, %s136
      %s140 = sphi 0, %s139
      %s156 = sphi 0, %s140
      %s164 = sphi 0, %s166
      %s167 = sphi 0, %s164
      %s168 = sphi 0, %s167
      %s184 = sphi 0, %s168
      %s190 = sphi 0, %s192
      %s193 = sphi 0, %s190
      %s194 = sphi 0, %s193
      %s210 = sphi 0, %s194
      %s218 = sphi 0, %s220
      %s221 = sphi 0, %s218
      %s222 = sphi 0, %s221
      %s238 = sphi 0, %s222
      %s246 = sphi 0, %s248
      %s249 = sphi 0, %s246
      %s250 = sphi 0, %s249
      %s266 = sphi 0, %s250
    $region4: #{tpu_custom_call.1} parent=1 // loop_header_branch
      %31 = sbr.rel (%p29) target = $region8
    $region5: #{tpu_custom_call.1} parent=1 // loop_body
      %s33 = ssub.s32 %s28, 1
      %s34 = ssub.s32 %s28, 2
      %s41 = sadd.s32 1, %s36
      %p42 = scmp.ge.s32.totalorder %s41, 2
      %s43 = scalar_select %p42, 0, %s41
      %s44 = sadd.s32 1, %s35
      %s45 = scalar_select %p42, %s44, %s35
      %p46 = scmp.ge.s32.totalorder %s45, 1
      %s47 = scalar_select %p46, 0, %s45
      %p48 = scmp.gt.s32.totalorder %s36, 1
      %s49 = scalar_select %p48, %s36, 1
      %s50 = ssub.s32 %s49, 1
      %p51 = scmp.gt.s32.totalorder %s43, 1
      %s52 = scalar_select %p51, %s43, 1
      %s53 = ssub.s32 %s52, 1
      %s54 = ssub.s32 %s50, %s53
      %p55 = scmp.eq.s32.totalorder %s54, 0
      %s57 = sadd.s32 %s56, 1
      %s58 = scalar_select %p55, %s56, %s57
      %p61 = pneg %p55
      %p62 = scmp.eq.s32.totalorder %s28, 1
      %p63 = por %p61, %p62
      %p64 = scmp.ne.s32.totalorder %s56, %s59
      %p65 = scmp.eq.s32.totalorder %s28, 0
      %p66 = por %p64, %p65
      %p67 = scmp.ne.s32.totalorder %s56, %s59
      %p68 = scmp.eq.s32.totalorder %s33, 1
      %p69 = por %p67, %p68
      %p70 = scmp.ne.s32.totalorder %s59, %s60
      %p71 = scmp.eq.s32.totalorder %s33, 0
      %p72 = por %p70, %p71
      %p73 = scmp.ne.s32.totalorder %s59, %s60
      %p74 = scmp.eq.s32.totalorder %s34, 1
      %p75 = por %p73, %p74
      %p77 = scmp.ne.s32.totalorder %s60, %s76
      %p78 = scmp.eq.s32.totalorder %s34, 0
      %p79 = por %p77, %p78
      %s80 = ssub.s32 %s36, %s43
      %p81 = scmp.eq.s32.totalorder %s80, 0
      %s83 = sadd.s32 %s82, 1
      %s84 = scalar_select %p81, %s82, %s83
      %p87 = pneg %p81
      %p88 = scmp.eq.s32.totalorder %s28, 1
      %p89 = por %p87, %p88
      %p90 = scmp.ne.s32.totalorder %s82, %s85
      %p91 = scmp.eq.s32.totalorder %s28, 0
      %p92 = por %p90, %p91
      %p93 = scmp.ne.s32.totalorder %s82, %s85
      %p94 = scmp.eq.s32.totalorder %s33, 1
      %p95 = por %p93, %p94
      %p96 = scmp.ne.s32.totalorder %s85, %s86
      %p97 = scmp.eq.s32.totalorder %s33, 0
      %p98 = por %p96, %p97
      %p99 = scmp.ne.s32.totalorder %s85, %s86
      %p100 = scmp.eq.s32.totalorder %s34, 1
      %p101 = por %p99, %p100
      %p103 = scmp.ne.s32.totalorder %s86, %s102
      %p104 = scmp.eq.s32.totalorder %s34, 0
      %p105 = por %p103, %p104
      %s106 = ssub.s32 %s36, %s43
      %p107 = scmp.eq.s32.totalorder %s106, 0
      %s109 = sadd.s32 %s108, 1
      %s110 = scalar_select %p107, %s108, %s109
      %p113 = pneg %p107
      %p114 = scmp.eq.s32.totalorder %s28, 1
      %p115 = por %p113, %p114
      %p116 = scmp.ne.s32.totalorder %s108, %s111
      %p117 = scmp.eq.s32.totalorder %s28, 0
      %p118 = por %p116, %p117
      %p119 = scmp.ne.s32.totalorder %s108, %s111
      %p120 = scmp.eq.s32.totalorder %s33, 1
      %p121 = por %p119, %p120
      %p122 = scmp.ne.s32.totalorder %s111, %s112
      %p123 = scmp.eq.s32.totalorder %s33, 0
      %p124 = por %p122, %p123
      %p125 = scmp.ne.s32.totalorder %s111, %s112
      %p126 = scmp.eq.s32.totalorder %s34, 1
      %p127 = por %p125, %p126
      %p129 = scmp.ne.s32.totalorder %s112, %s128
      %p130 = scmp.eq.s32.totalorder %s34, 0
      %p131 = por %p129, %p130
      %s132 = ssub.s32 %s36, %s43
      %s133 = ssub.s32 %s35, %s47
      %s134 = sor.u32 %s132, %s133
      %p135 = scmp.eq.s32.totalorder %s134, 0
      %s137 = sadd.s32 %s136, 1
      %s138 = scalar_select %p135, %s136, %s137
      %p141 = pneg %p135
      %p142 = scmp.eq.s32.totalorder %s28, 1
      %p143 = por %p141, %p142
      %p144 = scmp.ne.s32.totalorder %s136, %s139
      %p145 = scmp.eq.s32.totalorder %s28, 0
      %p146 = por %p144, %p145
      %p147 = scmp.ne.s32.totalorder %s136, %s139
      %p148 = scmp.eq.s32.totalorder %s33, 1
      %p149 = por %p147, %p148
      %p150 = scmp.ne.s32.totalorder %s139, %s140
      %p151 = scmp.eq.s32.totalorder %s33, 0
      %p152 = por %p150, %p151
      %p153 = scmp.ne.s32.totalorder %s139, %s140
      %p154 = scmp.eq.s32.totalorder %s34, 1
      %p155 = por %p153, %p154
      %p157 = scmp.ne.s32.totalorder %s140, %s156
      %p158 = scmp.eq.s32.totalorder %s34, 0
      %p159 = por %p157, %p158
      %s160 = ssub.s32 %s36, %s43
      %s161 = ssub.s32 %s35, %s47
      %s162 = sor.u32 %s160, %s161
      %p163 = scmp.eq.s32.totalorder %s162, 0
      %s165 = sadd.s32 %s164, 1
      %s166 = scalar_select %p163, %s164, %s165
      %p169 = pneg %p163
      %p170 = scmp.eq.s32.totalorder %s28, 1
      %p171 = por %p169, %p170
      %p172 = scmp.ne.s32.totalorder %s164, %s167
      %p173 = scmp.eq.s32.totalorder %s28, 0
      %p174 = por %p172, %p173
      %p175 = scmp.ne.s32.totalorder %s164, %s167
      %p176 = scmp.eq.s32.totalorder %s33, 1
      %p177 = por %p175, %p176
      %p178 = scmp.ne.s32.totalorder %s167, %s168
      %p179 = scmp.eq.s32.totalorder %s33, 0
      %p180 = por %p178, %p179
      %p181 = scmp.ne.s32.totalorder %s167, %s168
      %p182 = scmp.eq.s32.totalorder %s34, 1
      %p183 = por %p181, %p182
      %p185 = scmp.ne.s32.totalorder %s168, %s184
      %p186 = scmp.eq.s32.totalorder %s34, 0
      %p187 = por %p185, %p186
      %s188 = ssub.s32 %s35, %s47
      %p189 = scmp.eq.s32.totalorder %s188, 0
      %s191 = sadd.s32 %s190, 1
      %s192 = scalar_select %p189, %s190, %s191
      %p195 = pneg %p189
      %p196 = scmp.eq.s32.totalorder %s28, 1
      %p197 = por %p195, %p196
      %p198 = scmp.ne.s32.totalorder %s190, %s193
      %p199 = scmp.eq.s32.totalorder %s28, 0
      %p200 = por %p198, %p199
      %p201 = scmp.ne.s32.totalorder %s190, %s193
      %p202 = scmp.eq.s32.totalorder %s33, 1
      %p203 = por %p201, %p202
      %p204 = scmp.ne.s32.totalorder %s193, %s194
      %p205 = scmp.eq.s32.totalorder %s33, 0
      %p206 = por %p204, %p205
      %p207 = scmp.ne.s32.totalorder %s193, %s194
      %p208 = scmp.eq.s32.totalorder %s34, 1
      %p209 = por %p207, %p208
      %p211 = scmp.ne.s32.totalorder %s194, %s210
      %p212 = scmp.eq.s32.totalorder %s34, 0
      %p213 = por %p211, %p212
      %s214 = ssub.s32 %s36, %s43
      %s215 = ssub.s32 %s35, %s47
      %s216 = sor.u32 %s214, %s215
      %p217 = scmp.eq.s32.totalorder %s216, 0
      %s219 = sadd.s32 %s218, 1
      %s220 = scalar_select %p217, %s218, %s219
      %p223 = pneg %p217
      %p224 = scmp.eq.s32.totalorder %s28, 1
      %p225 = por %p223, %p224
      %p226 = scmp.ne.s32.totalorder %s218, %s221
      %p227 = scmp.eq.s32.totalorder %s28, 0
      %p228 = por %p226, %p227
      %p229 = scmp.ne.s32.totalorder %s218, %s221
      %p230 = scmp.eq.s32.totalorder %s33, 1
      %p231 = por %p229, %p230
      %p232 = scmp.ne.s32.totalorder %s221, %s222
      %p233 = scmp.eq.s32.totalorder %s33, 0
      %p234 = por %p232, %p233
      %p235 = scmp.ne.s32.totalorder %s221, %s222
      %p236 = scmp.eq.s32.totalorder %s34, 1
      %p237 = por %p235, %p236
      %p239 = scmp.ne.s32.totalorder %s222, %s238
      %p240 = scmp.eq.s32.totalorder %s34, 0
      %p241 = por %p239, %p240
      %s242 = ssub.s32 %s36, %s43
      %s243 = ssub.s32 %s35, %s47
      %s244 = sor.u32 %s242, %s243
      %p245 = scmp.eq.s32.totalorder %s244, 0
      %s247 = sadd.s32 %s246, 1
      %s248 = scalar_select %p245, %s246, %s247
      %p251 = pneg %p245
      %p252 = scmp.eq.s32.totalorder %s28, 1
      %p253 = por %p251, %p252
      %p254 = scmp.ne.s32.totalorder %s246, %s249
      %p255 = scmp.eq.s32.totalorder %s28, 0
      %p256 = por %p254, %p255
      %p257 = scmp.ne.s32.totalorder %s246, %s249
      %p258 = scmp.eq.s32.totalorder %s33, 1
      %p259 = por %p257, %p258
      %p260 = scmp.ne.s32.totalorder %s249, %s250
      %p261 = scmp.eq.s32.totalorder %s33, 0
      %p262 = por %p260, %p261
      %p263 = scmp.ne.s32.totalorder %s249, %s250
      %p264 = scmp.eq.s32.totalorder %s34, 1
      %p265 = por %p263, %p264
      %p267 = scmp.ne.s32.totalorder %s250, %s266
      %p268 = scmp.eq.s32.totalorder %s34, 0
      %p269 = por %p267, %p268
      %p270 = scmp.le.s32.totalorder 1, %s28
      %p271 = scmp.lt.s32.totalorder %s28, 3
      %p272 = pnand %p270, %p271
      %p273 = pneg %p272
      // Predicated region
      $region9: #{tpu_custom_call.1} parent=5 // pred_check
        _
      $region10: #{tpu_custom_call.1} parent=5 // pred_check_branch
        %275 = sbr.rel (%p272) target = $region12
      $region11: #{tpu_custom_call.1} parent=5 // pred_region
        %s276 = ssub.s32 %s28, 1
      $region12: #{tpu_custom_call.1} parent=5 // pred_fallthru
        _
      %p277 = scmp.lt.s32.totalorder %s28, 2
      // Predicated region
      $region13: #{tpu_custom_call.1} parent=5 // pred_check
        %p278 = pneg %p277
      $region14: #{tpu_custom_call.1} parent=5 // pred_check_branch
        %280 = sbr.rel (%p278) target = $region16
      $region15: #{tpu_custom_call.1} parent=5 // pred_region
        // Predicated region
        $region17: #{tpu_custom_call.1} parent=15 // pred_check
          %p281 = pneg %p66
        $region18: #{tpu_custom_call.1} parent=15 // pred_check_branch
          %283 = sbr.rel (%p281) target = $region20
        $region19: #{tpu_custom_call.1} parent=15 // pred_region
          %s284 = sand.u32 %s56, 1
          %s285 = scalar_lea.sflag [#allocation5], %s284
          %s286 = sand.u32 %s56, 1
          %s287 = smul.addr %s286, 512
          %s288 = scalar_lea.vmem [#allocation4], %s287
          %p289 = scmp.gt.s32.totalorder %s36, 1
          %s290 = scalar_select %p289, %s36, 1
          %s291 = ssub.s32 %s290, 1
          %s293 = ssub.s32 8192, 8192
          %294 = vsyncadd %s285, %s293
          %s295 = smul.addr %s291, 64
          %s296 = smul.addr %s295, 128
          %s297 = scalar_lea.hbm %s1, %s296
          %s298 = sshll.u32 %s288, 4
          %s299 = int_to_ptr.vmem [resolvable:$true] %s298
          %304 = dma.hbm_to_vmem [thread:$0]  %s297, 8192, %s299, %s285, 512, 512, 32
        $region20: #{tpu_custom_call.1} parent=15 // pred_fallthru
          _
        // Predicated region
        $region21: #{tpu_custom_call.1} parent=15 // pred_check
          %p305 = pneg %p92
        $region22: #{tpu_custom_call.1} parent=15 // pred_check_branch
          %307 = sbr.rel (%p305) target = $region24
        $region23: #{tpu_custom_call.1} parent=15 // pred_region
          %s308 = sand.u32 %s28, 1
          %s309 = scalar_lea.sflag [#allocation8], %s308
          %s310 = sand.u32 %s82, 1
          %s311 = smul.addr %s310, 512
          %s312 = scalar_lea.vmem [#allocation7], %s311
          %s314 = ssub.s32 8192, 8192
          %315 = vsyncadd %s309, %s314
          %s316 = smul.addr %s36, 64
          %s317 = smul.addr %s316, 128
          %s318 = scalar_lea.hbm %s2, %s317
          %s319 = sshll.u32 %s312, 4
          %s320 = int_to_ptr.vmem [resolvable:$true] %s319
          %325 = dma.hbm_to_vmem [thread:$0]  %s318, 8192, %s320, %s309, 512, 512, 32
        $region24: #{tpu_custom_call.1} parent=15 // pred_fallthru
          _
        // Predicated region
        $region25: #{tpu_custom_call.1} parent=15 // pred_check
          %p326 = pneg %p118
        $region26: #{tpu_custom_call.1} parent=15 // pred_check_branch
          %328 = sbr.rel (%p326) target = $region28
        $region27: #{tpu_custom_call.1} parent=15 // pred_region
          %s329 = sand.u32 %s28, 1
          %s330 = scalar_lea.sflag [#allocation8], %s329
          %s331 = sand.u32 %s108, 1
          %s332 = smul.addr %s331, 4
          %s333 = scalar_lea.vmem [#allocation9], %s332
          %s335 = ssub.s32 64, 64
          %336 = vsyncadd %s330, %s335
          %s337 = smul.addr %s36, 4
          %s338 = smul.addr %s337, 16
          %s339 = scalar_lea.hbm %s3, %s338
          %s341 = sshll.u32 %s333, 4
          %s342 = int_to_ptr.vmem [resolvable:$true] %s341
          %344 = dma.hbm_to_vmem [thread:$0]  %s339, 64, %s342, %s330
        $region28: #{tpu_custom_call.1} parent=15 // pred_fallthru
          _
        // Predicated region
        $region29: #{tpu_custom_call.1} parent=15 // pred_check
          %p345 = pneg %p146
        $region30: #{tpu_custom_call.1} parent=15 // pred_check_branch
          %347 = sbr.rel (%p345) target = $region32
        $region31: #{tpu_custom_call.1} parent=15 // pred_region
          %s348 = sand.u32 %s136, 1
          %s349 = scalar_lea.sflag [#allocation11], %s348
          %s350 = sand.u32 %s136, 1
          %s351 = smul.addr %s350, 8
          %s352 = scalar_lea.vmem [#allocation10], %s351
          %s354 = ssub.s32 128, 128
          %355 = vsyncadd %s349, %s354
          %s356 = sadd.s32 %s35, %s36
          %s357 = smul.addr %s356, 128
          %s358 = scalar_lea.hbm %s4, %s357
          %s360 = sshll.u32 %s352, 4
          %s361 = int_to_ptr.vmem [resolvable:$true] %s360
          %363 = dma.hbm_to_vmem [thread:$0]  %s358, 128, %s361, %s349
        $region32: #{tpu_custom_call.1} parent=15 // pred_fallthru
          _
        // Predicated region
        $region33: #{tpu_custom_call.1} parent=15 // pred_check
          %p364 = pneg %p174
        $region34: #{tpu_custom_call.1} parent=15 // pred_check_branch
          %366 = sbr.rel (%p364) target = $region36
        $region35: #{tpu_custom_call.1} parent=15 // pred_region
          %p367 = scmp.lt.s32.totalorder %s36, 1
          %s368 = scalar_select %p367, %s36, 1
          %p369 = scmp.lt.s32.totalorder %s35, 0
          %s370 = scalar_select %p369, %s35, 0
          %s371 = sadd.s32 %s370, %s368
          %s372 = smul.addr %s371, 8
          %s373 = scalar_lea.vmem %s5, %s372
        $region36: #{tpu_custom_call.1} parent=15 // pred_fallthru
          _
      $region16: #{tpu_custom_call.1} parent=5 // pred_fallthru
        _
      %p374 = scmp.le.s32.totalorder 1, %s28
      %p375 = scmp.lt.s32.totalorder %s28, 3
      %p376 = pnand %p374, %p375
      %p377 = pneg %p376
      // Predicated region
      $region37: #{tpu_custom_call.1} parent=5 // pred_check
        _
      $region38: #{tpu_custom_call.1} parent=5 // pred_check_branch
        %379 = sbr.rel (%p376) target = $region40
      $region39: #{tpu_custom_call.1} parent=5 // pred_region
        %s380 = ssub.s32 %s28, 1
        %s381 = sand.u32 %s59, 1
        %s382 = scalar_lea.sflag [#allocation5], %s381
        %s383 = sand.u32 %s59, 1
        %s384 = smul.addr %s383, 512
        %s385 = scalar_lea.vmem [#allocation4], %s384
        // Predicated region
        $region41: #{tpu_custom_call.1} parent=39 // pred_check
          %p386 = pneg %p72
        $region42: #{tpu_custom_call.1} parent=39 // pred_check_branch
          %388 = sbr.rel (%p386) target = $region44
        $region43: #{tpu_custom_call.1} parent=39 // pred_region
          %389 = dma.done %s382, 8192
        $region44: #{tpu_custom_call.1} parent=39 // pred_fallthru
          _
        %s390 = sand.u32 %s33, 1
        %s391 = scalar_lea.sflag [#allocation8], %s390
        %s392 = sand.u32 %s85, 1
        %s393 = smul.addr %s392, 512
        %s394 = scalar_lea.vmem [#allocation7], %s393
        // Predicated region
        $region45: #{tpu_custom_call.1} parent=39 // pred_check
          %p395 = pneg %p98
        $region46: #{tpu_custom_call.1} parent=39 // pred_check_branch
          %397 = sbr.rel (%p395) target = $region48
        $region47: #{tpu_custom_call.1} parent=39 // pred_region
          %398 = dma.done %s391, 8192
        $region48: #{tpu_custom_call.1} parent=39 // pred_fallthru
          _
        %s399 = sand.u32 %s33, 1
        %s400 = scalar_lea.sflag [#allocation8], %s399
        %s401 = sand.u32 %s111, 1
        %s402 = smul.addr %s401, 4
        %s403 = scalar_lea.vmem [#allocation9], %s402
        // Predicated region
        $region49: #{tpu_custom_call.1} parent=39 // pred_check
          %p404 = pneg %p124
        $region50: #{tpu_custom_call.1} parent=39 // pred_check_branch
          %406 = sbr.rel (%p404) target = $region52
        $region51: #{tpu_custom_call.1} parent=39 // pred_region
          %407 = dma.done %s400, 64
        $region52: #{tpu_custom_call.1} parent=39 // pred_fallthru
          _
        %s408 = sand.u32 %s139, 1
        %s409 = scalar_lea.sflag [#allocation11], %s408
        %s410 = sand.u32 %s139, 1
        %s411 = smul.addr %s410, 8
        %s412 = scalar_lea.vmem [#allocation10], %s411
        // Predicated region
        $region53: #{tpu_custom_call.1} parent=39 // pred_check
          %p413 = pneg %p152
        $region54: #{tpu_custom_call.1} parent=39 // pred_check_branch
          %415 = sbr.rel (%p413) target = $region56
        $region55: #{tpu_custom_call.1} parent=39 // pred_region
          %416 = dma.done %s409, 128
        $region56: #{tpu_custom_call.1} parent=39 // pred_fallthru
          _
        %s417 = sand.u32 %s59, 1
        %s418 = scalar_lea.sflag [#allocation5], %s417
        %s419 = sand.u32 %s59, 1
        %s420 = smul.addr %s419, 512
        %s421 = scalar_lea.vmem [#allocation4], %s420
        %p422 = pneg %p72
        %p423 = pneg %p69
        %s424 = sand.u32 %s33, 1
        %s425 = scalar_lea.sflag [#allocation8], %s424
        %s426 = sand.u32 %s85, 1
        %s427 = smul.addr %s426, 512
        %s428 = scalar_lea.vmem [#allocation7], %s427
        %p429 = pneg %p98
        %p430 = pneg %p95
        %s431 = sand.u32 %s33, 1
        %s432 = scalar_lea.sflag [#allocation8], %s431
        %s433 = sand.u32 %s111, 1
        %s434 = smul.addr %s433, 4
        %s435 = scalar_lea.vmem [#allocation9], %s434
        %p436 = pneg %p124
        %p437 = pneg %p121
        %s438 = sand.u32 %s139, 1
        %s439 = scalar_lea.sflag [#allocation11], %s438
        %s440 = sand.u32 %s139, 1
        %s441 = smul.addr %s440, 8
        %s442 = scalar_lea.vmem [#allocation10], %s441
        %p443 = pneg %p152
        %p444 = pneg %p149
        %p445 = scmp.lt.s32.totalorder %s38, 1
        %s446 = scalar_select %p445, %s38, 1
        %p447 = scmp.lt.s32.totalorder %s37, 0
        %s448 = scalar_select %p447, %s37, 0
        %s449 = sadd.s32 %s448, %s446
        %s450 = smul.addr %s449, 8
        %s451 = scalar_lea.vmem %s5, %s450
        %p452 = pneg %p180
        %p453 = pneg %p177
        %p454 = pneg %p206
        %p455 = pneg %p203
        %p456 = pneg %p234
        %p457 = pneg %p231
        %s458 = sand.u32 %s33, 1
        %s459 = scalar_lea.sflag [#allocation14], %s458
        %s460 = sand.u32 %s221, 1
        %s461 = smul.addr %s460, 8
        %s462 = scalar_lea.vmem [#allocation13], %s461
        %p463 = pneg %p262
        %p464 = pneg %p259
        %s465 = sand.u32 %s33, 1
        %s466 = scalar_lea.sflag [#allocation14], %s465
        %s467 = sand.u32 %s249, 1
        %s468 = smul.addr %s467, 8
        %s469 = scalar_lea.vmem [#allocation15], %s468
        %p470 = scmp.gt.s32.totalorder %s38, 1
        %s471 = scalar_select %p470, %s38, 1
        %s472 = ssub.s32 %s471, 1
        %p473 = scmp.lt.s32.totalorder %s38, 1
        %s474 = scalar_select %p473, %s38, 1
        %p475 = scmp.lt.s32.totalorder %s37, 0
        %s476 = scalar_select %p475, %s37, 0
        %s477 = sadd.s32 %s476, %s474
        %s478 = smul.addr %s477, 8
        %s479 = scalar_lea.vmem %s5, %s478
        %p480 = scmp.eq.s32.totalorder %s38, 0
        // Predicated region
        $region57: #{tpu_custom_call.1} parent=39 // pred_check
          %p481 = pneg %p480
        $region58: #{tpu_custom_call.1} parent=39 // pred_check_branch
          %483 = sbr.rel (%p481) target = $region60
        $region59: #{tpu_custom_call.1} parent=39 // pred_region
          %s484 = smul.u32 %s37, 32
          %s485 = smul.addr %s484, 128
          %s486 = scalar_lea.hbm %s0, %s485
          // Predicated region
          $region61: #{tpu_custom_call.1} parent=59 // pred_check
            _
          $region62: #{tpu_custom_call.1} parent=59 // pred_check_branch
            %488 = sbr.rel target = $region64
          $region63: #{tpu_custom_call.1} parent=59 // pred_region
            %489 = sst [smem:[#allocation18]] [#allocation17]
            %490 = sst [smem:[#allocation19]] [#allocation16]
          $region64: #{tpu_custom_call.1} parent=59 // pred_fallthru
            _
          %492 = shalt.err (0)
          %s494 = sshll.u32 [#allocation2], 4
          %s495 = int_to_ptr.vmem [resolvable:$true] %s494
          %497 = dma.hbm_to_vmem [thread:$0]  %s486, 4096, %s495, [#allocation3]
          %s498 = smul.u32 8, 8
          %s499 = smul.u32 %s498, 1
          %s500 = smul.u32 %s499, 4
          %s501 = sshll.u32 %s500, 4
          %502 = dma.done [#allocation3], %s501
        $region60: #{tpu_custom_call.1} parent=39 // pred_fallthru
          _
        %p503 = scmp.gt.s32.totalorder %s38, 0
        // Predicated region
        $region65: #{tpu_custom_call.1} parent=39 // pred_check
          %p504 = pneg %p503
        $region66: #{tpu_custom_call.1} parent=39 // pred_check_branch
          %506 = sbr.rel (%p504) target = $region68
        $region67: #{tpu_custom_call.1} parent=39 // pred_region
          %v507 = vld [vmem:[#allocation12] sm:$0xff]
          %v508 = vld [vmem:[#allocation12 + $0x8] sm:$0xff]
          %v509 = vld [vmem:[#allocation12 + $0x10] sm:$0xff]
          %v510 = vld [vmem:[#allocation12 + $0x18] sm:$0xff]
          %v511 = vld [vmem:[#allocation12 + $0x20] sm:$0xff]
          %v512 = vld [vmem:[#allocation12 + $0x28] sm:$0xff]
          %v513 = vld [vmem:[#allocation12 + $0x30] sm:$0xff]
          %v514 = vld [vmem:[#allocation12 + $0x38] sm:$0xff]
          %v515 = vld [vmem:[%s385] sm:$0xff]
          %v516 = vld [vmem:[%s385 + $0x8] sm:$0xff]
          %v517 = vld [vmem:[%s385 + $0x10] sm:$0xff]
          %v518 = vld [vmem:[%s385 + $0x18] sm:$0xff]
          %v519 = vld [vmem:[%s385 + $0x20] sm:$0xff]
          %v520 = vld [vmem:[%s385 + $0x28] sm:$0xff]
          %v521 = vld [vmem:[%s385 + $0x30] sm:$0xff]
          %v522 = vld [vmem:[%s385 + $0x38] sm:$0xff]
          %v523 = vld [vmem:[%s385 + $0x40] sm:$0xff]
          %v524 = vld [vmem:[%s385 + $0x48] sm:$0xff]
          %v525 = vld [vmem:[%s385 + $0x50] sm:$0xff]
          %v526 = vld [vmem:[%s385 + $0x58] sm:$0xff]
          %v527 = vld [vmem:[%s385 + $0x60] sm:$0xff]
          %v528 = vld [vmem:[%s385 + $0x68] sm:$0xff]
          %v529 = vld [vmem:[%s385 + $0x70] sm:$0xff]
          %v530 = vld [vmem:[%s385 + $0x78] sm:$0xff]
          %v531 = vld [vmem:[%s385 + $0x80] sm:$0xff]
          %v532 = vld [vmem:[%s385 + $0x88] sm:$0xff]
          %v533 = vld [vmem:[%s385 + $0x90] sm:$0xff]
          %v534 = vld [vmem:[%s385 + $0x98] sm:$0xff]
          %v535 = vld [vmem:[%s385 + $0xa0] sm:$0xff]
          %v536 = vld [vmem:[%s385 + $0xa8] sm:$0xff]
          %v537 = vld [vmem:[%s385 + $0xb0] sm:$0xff]
          %v538 = vld [vmem:[%s385 + $0xb8] sm:$0xff]
          %v539 = vld [vmem:[%s385 + $0xc0] sm:$0xff]
          %v540 = vld [vmem:[%s385 + $0xc8] sm:$0xff]
          %v541 = vld [vmem:[%s385 + $0xd0] sm:$0xff]
          %v542 = vld [vmem:[%s385 + $0xd8] sm:$0xff]
          %v543 = vld [vmem:[%s385 + $0xe0] sm:$0xff]
          %v544 = vld [vmem:[%s385 + $0xe8] sm:$0xff]
          %v545 = vld [vmem:[%s385 + $0xf0] sm:$0xff]
          %v546 = vld [vmem:[%s385 + $0xf8] sm:$0xff]
          %v547 = vld [vmem:[%s385 + $0x100] sm:$0xff]
          %v548 = vld [vmem:[%s385 + $0x108] sm:$0xff]
          %v549 = vld [vmem:[%s385 + $0x110] sm:$0xff]
          %v550 = vld [vmem:[%s385 + $0x118] sm:$0xff]
          %v551 = vld [vmem:[%s385 + $0x120] sm:$0xff]
          %v552 = vld [vmem:[%s385 + $0x128] sm:$0xff]
          %v553 = vld [vmem:[%s385 + $0x130] sm:$0xff]
          %v554 = vld [vmem:[%s385 + $0x138] sm:$0xff]
          %v555 = vld [vmem:[%s385 + $0x140] sm:$0xff]
          %v556 = vld [vmem:[%s385 + $0x148] sm:$0xff]
          %v557 = vld [vmem:[%s385 + $0x150] sm:$0xff]
          %v558 = vld [vmem:[%s385 + $0x158] sm:$0xff]
          %v559 = vld [vmem:[%s385 + $0x160] sm:$0xff]
          %v560 = vld [vmem:[%s385 + $0x168] sm:$0xff]
          %v561 = vld [vmem:[%s385 + $0x170] sm:$0xff]
          %v562 = vld [vmem:[%s385 + $0x178] sm:$0xff]
          %v563 = vld [vmem:[%s385 + $0x180] sm:$0xff]
          %v564 = vld [vmem:[%s385 + $0x188] sm:$0xff]
          %v565 = vld [vmem:[%s385 + $0x190] sm:$0xff]
          %v566 = vld [vmem:[%s385 + $0x198] sm:$0xff]
          %v567 = vld [vmem:[%s385 + $0x1a0] sm:$0xff]
          %v568 = vld [vmem:[%s385 + $0x1a8] sm:$0xff]
          %v569 = vld [vmem:[%s385 + $0x1b0] sm:$0xff]
          %v570 = vld [vmem:[%s385 + $0x1b8] sm:$0xff]
          %v571 = vld [vmem:[%s385 + $0x1c0] sm:$0xff]
          %v572 = vld [vmem:[%s385 + $0x1c8] sm:$0xff]
          %v573 = vld [vmem:[%s385 + $0x1d0] sm:$0xff]
          %v574 = vld [vmem:[%s385 + $0x1d8] sm:$0xff]
          %v575 = vld [vmem:[%s385 + $0x1e0] sm:$0xff]
          %v576 = vld [vmem:[%s385 + $0x1e8] sm:$0xff]
          %v577 = vld [vmem:[%s385 + $0x1f0] sm:$0xff]
          %v578 = vld [vmem:[%s385 + $0x1f8] sm:$0xff]
          %v579 = vld [vmem:[%s403] sm:$0xf]
          %v581 = vlaneseq
          %v582 = vshrl.u32 %v581, 7
          %v583 = vsub.s32 0, %v582
          %v584 = vrot.slane %v579, %v583
          %v585 = vlaneseq
          %v586 = vshrl.u32 %v585, 7
          %v587 = vsub.s32 1, %v586
          %v588 = vrot.slane %v579, %v587
          %v589 = vlaneseq
          %v590 = vshrl.u32 %v589, 7
          %v591 = vsub.s32 2, %v590
          %v592 = vrot.slane %v579, %v591
          %v593 = vlaneseq
          %v594 = vshrl.u32 %v593, 7
          %v595 = vsub.s32 3, %v594
          %v596 = vrot.slane %v579, %v595
          %601 = vmatprep.subr.mxu0 %v516
          %602 = vmatpush1.msra.mxu0 %v515
          %603 = vmatprep.subr.mxu0 %v520
          %604 = vmatpush1.msra.mxu0 %v519
          %605 = vmatprep.subr.mxu0 %v524
          %606 = vmatpush1.msra.mxu0 %v523
          %607 = vmatprep.subr.mxu0 %v528
          %608 = vmatpush1.msra.mxu0 %v527
          %609 = vmatprep.subr.mxu0 %v532
          %610 = vmatpush1.msra.mxu0 %v531
          %611 = vmatprep.subr.mxu0 %v536
          %612 = vmatpush1.msra.mxu0 %v535
          %613 = vmatprep.subr.mxu0 %v540
          %614 = vmatpush1.msra.mxu0 %v539
          %615 = vmatprep.subr.mxu0 %v544
          %616 = vmatpush1.msra.mxu0 %v543
          %617 = vmatprep.subr.mxu0 %v548
          %618 = vmatpush1.msra.mxu0 %v547
          %619 = vmatprep.subr.mxu0 %v552
          %620 = vmatpush1.msra.mxu0 %v551
          %621 = vmatprep.subr.mxu0 %v556
          %622 = vmatpush1.msra.mxu0 %v555
          %623 = vmatprep.subr.mxu0 %v560
          %624 = vmatpush1.msra.mxu0 %v559
          %625 = vmatprep.subr.mxu0 %v564
          %626 = vmatpush1.msra.mxu0 %v563
          %627 = vmatprep.subr.mxu0 %v568
          %628 = vmatpush1.msra.mxu0 %v567
          %629 = vmatprep.subr.mxu0 %v572
          %630 = vmatpush1.msra.mxu0 %v571
          %631 = vmatprep.subr.mxu0 %v576
          %632 = vmatpush1.msra.mxu0 %v575
          %633 = vmatprep.subr.mxu0 0.0
          %634 = vmatpush1.msra.mxu0 0.0
          %635 = vmatprep.subr.mxu0 0.0
          %636 = vmatpush1.msra.mxu0 0.0
          %637 = vmatprep.subr.mxu0 0.0
          %638 = vmatpush1.msra.mxu0 0.0
          %639 = vmatprep.subr.mxu0 0.0
          %640 = vmatpush1.msra.mxu0 0.0
          %641 = vmatprep.subr.mxu0 0.0
          %642 = vmatpush1.msra.mxu0 0.0
          %643 = vmatprep.subr.mxu0 0.0
          %644 = vmatpush1.msra.mxu0 0.0
          %645 = vmatprep.subr.mxu0 0.0
          %646 = vmatpush1.msra.mxu0 0.0
          %647 = vmatprep.subr.mxu0 0.0
          %648 = vmatpush1.msra.mxu0 0.0
          %649 = vmatprep.subr.mxu0 0.0
          %650 = vmatpush1.msra.mxu0 0.0
          %651 = vmatprep.subr.mxu0 0.0
          %652 = vmatpush1.msra.mxu0 0.0
          %653 = vmatprep.subr.mxu0 0.0
          %654 = vmatpush1.msra.mxu0 0.0
          %655 = vmatprep.subr.mxu0 0.0
          %656 = vmatpush1.msra.mxu0 0.0
          %657 = vmatprep.subr.mxu0 0.0
          %658 = vmatpush1.msra.mxu0 0.0
          %659 = vmatprep.subr.mxu0 0.0
          %660 = vmatpush1.msra.mxu0 0.0
          %661 = vmatprep.subr.mxu0 0.0
          %662 = vmatpush1.msra.mxu0 0.0
          %663 = vmatprep.subr.mxu0 0.0
          %664 = vmatpush1.msra.mxu0 0.0
          %665 = vmatprep.mubr.f32.mxu0 0.0
          %666 = vmatmul.mubr.f32.gmra.mrb[0].mxu0 %v507
          %v667 = vpop.f32.mrb[0].mxu0
          %v668 = vadd.f32 %v584, %v667
          %v669 = vpop.f32.mrb[0].mxu0
          %v670 = vadd.f32 %v588, %v669
          %671 = vmatprep.mubr.f32.mxu0 0.0
          %672 = vmatmul.mubr.f32.gmra.mrb[0].mxu0 %v508
          %v673 = vpop.f32.mrb[0].mxu0
          %v674 = vadd.f32 %v584, %v673
          %v675 = vpop.f32.mrb[0].mxu0
          %v676 = vadd.f32 %v588, %v675
          %677 = vmatprep.mubr.f32.mxu0 0.0
          %678 = vmatmul.mubr.f32.gmra.mrb[0].mxu0 %v509
          %v679 = vpop.f32.mrb[0].mxu0
          %v680 = vadd.f32 %v584, %v679
          %v681 = vpop.f32.mrb[0].mxu0
          %v682 = vadd.f32 %v588, %v681
          %683 = vmatprep.mubr.f32.mxu0 0.0
          %684 = vmatmul.mubr.f32.gmra.mrb[0].mxu0 %v510
          %v685 = vpop.f32.mrb[0].mxu0
          %v686 = vadd.f32 %v584, %v685
          %v687 = vpop.f32.mrb[0].mxu0
          %v688 = vadd.f32 %v588, %v687
          %689 = vmatprep.mubr.f32.mxu0 0.0
          %690 = vmatmul.mubr.f32.gmra.mrb[0].mxu0 %v511
          %v691 = vpop.f32.mrb[0].mxu0
          %v692 = vadd.f32 %v584, %v691
          %v693 = vpop.f32.mrb[0].mxu0
          %v694 = vadd.f32 %v588, %v693
          %695 = vmatprep.mubr.f32.mxu0 0.0
          %696 = vmatmul.mubr.f32.gmra.mrb[0].mxu0 %v512
          %v697 = vpop.f32.mrb[0].mxu0
          %v698 = vadd.f32 %v584, %v697
          %v699 = vpop.f32.mrb[0].mxu0
          %v700 = vadd.f32 %v588, %v699
          %701 = vmatprep.mubr.f32.mxu0 0.0
          %702 = vmatmul.mubr.f32.gmra.mrb[0].mxu0 %v513
          %v703 = vpop.f32.mrb[0].mxu0
          %v704 = vadd.f32 %v584, %v703
          %v705 = vpop.f32.mrb[0].mxu0
          %v706 = vadd.f32 %v588, %v705
          %707 = vmatprep.mubr.f32.mxu0 0.0
          %708 = vmatmul.mubr.f32.gmra.mrb[0].mxu0 %v514
          %v709 = vpop.f32.mrb[0].mxu0
          %v710 = vadd.f32 %v584, %v709
          %v711 = vpop.f32.mrb[0].mxu0
          %v712 = vadd.f32 %v588, %v711
          %713 = vdwg.mxu0
          %714 = vmatprep.subr.mxu0 %v518
          %715 = vmatpush1.msra.mxu0 %v517
          %716 = vmatprep.subr.mxu0 %v522
          %717 = vmatpush1.msra.mxu0 %v521
          %718 = vmatprep.subr.mxu0 %v526
          %719 = vmatpush1.msra.mxu0 %v525
          %720 = vmatprep.subr.mxu0 %v530
          %721 = vmatpush1.msra.mxu0 %v529
          %722 = vmatprep.subr.mxu0 %v534
          %723 = vmatpush1.msra.mxu0 %v533
          %724 = vmatprep.subr.mxu0 %v538
          %725 = vmatpush1.msra.mxu0 %v537
          %726 = vmatprep.subr.mxu0 %v542
          %727 = vmatpush1.msra.mxu0 %v541
          %728 = vmatprep.subr.mxu0 %v546
          %729 = vmatpush1.msra.mxu0 %v545
          %730 = vmatprep.subr.mxu0 %v550
          %731 = vmatpush1.msra.mxu0 %v549
          %732 = vmatprep.subr.mxu0 %v554
          %733 = vmatpush1.msra.mxu0 %v553
          %734 = vmatprep.subr.mxu0 %v558
          %735 = vmatpush1.msra.mxu0 %v557
          %736 = vmatprep.subr.mxu0 %v562
          %737 = vmatpush1.msra.mxu0 %v561
          %738 = vmatprep.subr.mxu0 %v566
          %739 = vmatpush1.msra.mxu0 %v565
          %740 = vmatprep.subr.mxu0 %v570
          %741 = vmatpush1.msra.mxu0 %v569
          %742 = vmatprep.subr.mxu0 %v574
          %743 = vmatpush1.msra.mxu0 %v573
          %744 = vmatprep.subr.mxu0 %v578
          %745 = vmatpush1.msra.mxu0 %v577
          %746 = vmatprep.subr.mxu0 0.0
          %747 = vmatpush1.msra.mxu0 0.0
          %748 = vmatprep.subr.mxu0 0.0
          %749 = vmatpush1.msra.mxu0 0.0
          %750 = vmatprep.subr.mxu0 0.0
          %751 = vmatpush1.msra.mxu0 0.0
          %752 = vmatprep.subr.mxu0 0.0
          %753 = vmatpush1.msra.mxu0 0.0
          %754 = vmatprep.subr.mxu0 0.0
          %755 = vmatpush1.msra.mxu0 0.0
          %756 = vmatprep.subr.mxu0 0.0
          %757 = vmatpush1.msra.mxu0 0.0
          %758 = vmatprep.subr.mxu0 0.0
          %759 = vmatpush1.msra.mxu0 0.0
          %760 = vmatprep.subr.mxu0 0.0
          %761 = vmatpush1.msra.mxu0 0.0
          %762 = vmatprep.subr.mxu0 0.0
          %763 = vmatpush1.msra.mxu0 0.0
          %764 = vmatprep.subr.mxu0 0.0
          %765 = vmatpush1.msra.mxu0 0.0
          %766 = vmatprep.subr.mxu0 0.0
          %767 = vmatpush1.msra.mxu0 0.0
          %768 = vmatprep.subr.mxu0 0.0
          %769 = vmatpush1.msra.mxu0 0.0
          %770 = vmatprep.subr.mxu0 0.0
          %771 = vmatpush1.msra.mxu0 0.0
          %772 = vmatprep.subr.mxu0 0.0
          %773 = vmatpush1.msra.mxu0 0.0
          %774 = vmatprep.subr.mxu0 0.0
          %775 = vmatpush1.msra.mxu0 0.0
          %776 = vmatprep.subr.mxu0 0.0
          %777 = vmatpush1.msra.mxu0 0.0
          %778 = vmatprep.mubr.f32.mxu0 0.0
          %779 = vmatmul.mubr.f32.gmra.mrb[0].mxu0 %v507
          %v780 = vpop.f32.mrb[0].mxu0
          %v781 = vadd.f32 %v592, %v780
          %v782 = vpop.f32.mrb[0].mxu0
          %v783 = vadd.f32 %v596, %v782
          %784 = vmatprep.mubr.f32.mxu0 0.0
          %785 = vmatmul.mubr.f32.gmra.mrb[0].mxu0 %v508
          %v786 = vpop.f32.mrb[0].mxu0
          %v787 = vadd.f32 %v592, %v786
          %v788 = vpop.f32.mrb[0].mxu0
          %v789 = vadd.f32 %v596, %v788
          %790 = vmatprep.mubr.f32.mxu0 0.0
          %791 = vmatmul.mubr.f32.gmra.mrb[0].mxu0 %v509
          %v792 = vpop.f32.mrb[0].mxu0
          %v793 = vadd.f32 %v592, %v792
          %v794 = vpop.f32.mrb[0].mxu0
          %v795 = vadd.f32 %v596, %v794
          %796 = vmatprep.mubr.f32.mxu0 0.0
          %797 = vmatmul.mubr.f32.gmra.mrb[0].mxu0 %v510
          %v798 = vpop.f32.mrb[0].mxu0
          %v799 = vadd.f32 %v592, %v798
          %v800 = vpop.f32.mrb[0].mxu0
          %v801 = vadd.f32 %v596, %v800
          %802 = vmatprep.mubr.f32.mxu0 0.0
          %803 = vmatmul.mubr.f32.gmra.mrb[0].mxu0 %v511
          %v804 = vpop.f32.mrb[0].mxu0
          %v805 = vadd.f32 %v592, %v804
          %v806 = vpop.f32.mrb[0].mxu0
          %v807 = vadd.f32 %v596, %v806
          %808 = vmatprep.mubr.f32.mxu0 0.0
          %809 = vmatmul.mubr.f32.gmra.mrb[0].mxu0 %v512
          %v810 = vpop.f32.mrb[0].mxu0
          %v811 = vadd.f32 %v592, %v810
          %v812 = vpop.f32.mrb[0].mxu0
          %v813 = vadd.f32 %v596, %v812
          %814 = vmatprep.mubr.f32.mxu0 0.0
          %815 = vmatmul.mubr.f32.gmra.mrb[0].mxu0 %v513
          %v816 = vpop.f32.mrb[0].mxu0
          %v817 = vadd.f32 %v592, %v816
          %v818 = vpop.f32.mrb[0].mxu0
          %v819 = vadd.f32 %v596, %v818
          %820 = vmatprep.mubr.f32.mxu0 0.0
          %821 = vmatmul.mubr.f32.gmra.mrb[0].mxu0 %v514
          %v822 = vpop.f32.mrb[0].mxu0
          %v823 = vadd.f32 %v592, %v822
          %v824 = vpop.f32.mrb[0].mxu0
          %v825 = vadd.f32 %v596, %v824
          %826 = vdwg.mxu0
          %827 = vst [vmem:[#allocation2] sm:$0xff] %v668
          %828 = vst [vmem:[#allocation2 + $0x8] sm:$0xff] %v670
          %829 = vst [vmem:[#allocation2 + $0x10] sm:$0xff] %v781
          %830 = vst [vmem:[#allocation2 + $0x18] sm:$0xff] %v783
          %831 = vst [vmem:[#allocation2 + $0x20] sm:$0xff] %v674
          %832 = vst [vmem:[#allocation2 + $0x28] sm:$0xff] %v676
          %833 = vst [vmem:[#allocation2 + $0x30] sm:$0xff] %v787
          %834 = vst [vmem:[#allocation2 + $0x38] sm:$0xff] %v789
          %835 = vst [vmem:[#allocation2 + $0x40] sm:$0xff] %v680
          %836 = vst [vmem:[#allocation2 + $0x48] sm:$0xff] %v682
          %837 = vst [vmem:[#allocation2 + $0x50] sm:$0xff] %v793
          %838 = vst [vmem:[#allocation2 + $0x58] sm:$0xff] %v795
          %839 = vst [vmem:[#allocation2 + $0x60] sm:$0xff] %v686
          %840 = vst [vmem:[#allocation2 + $0x68] sm:$0xff] %v688
          %841 = vst [vmem:[#allocation2 + $0x70] sm:$0xff] %v799
          %842 = vst [vmem:[#allocation2 + $0x78] sm:$0xff] %v801
          %843 = vst [vmem:[#allocation2 + $0x80] sm:$0xff] %v692
          %844 = vst [vmem:[#allocation2 + $0x88] sm:$0xff] %v694
          %845 = vst [vmem:[#allocation2 + $0x90] sm:$0xff] %v805
          %846 = vst [vmem:[#allocation2 + $0x98] sm:$0xff] %v807
          %847 = vst [vmem:[#allocation2 + $0xa0] sm:$0xff] %v698
          %848 = vst [vmem:[#allocation2 + $0xa8] sm:$0xff] %v700
          %849 = vst [vmem:[#allocation2 + $0xb0] sm:$0xff] %v811
          %850 = vst [vmem:[#allocation2 + $0xb8] sm:$0xff] %v813
          %851 = vst [vmem:[#allocation2 + $0xc0] sm:$0xff] %v704
          %852 = vst [vmem:[#allocation2 + $0xc8] sm:$0xff] %v706
          %853 = vst [vmem:[#allocation2 + $0xd0] sm:$0xff] %v817
          %854 = vst [vmem:[#allocation2 + $0xd8] sm:$0xff] %v819
          %855 = vst [vmem:[#allocation2 + $0xe0] sm:$0xff] %v710
          %856 = vst [vmem:[#allocation2 + $0xe8] sm:$0xff] %v712
          %857 = vst [vmem:[#allocation2 + $0xf0] sm:$0xff] %v823
          %858 = vst [vmem:[#allocation2 + $0xf8] sm:$0xff] %v825
        $region68: #{tpu_custom_call.1} parent=39 // pred_fallthru
          _
        %v859 = vld [vmem:[%s412] sm:$0xff]
        %v860 = vld [vmem:[%s479] sm:$0xff]
        %v861 = vld [vmem:[#allocation2] sm:$0xff]
        %v862 = vld [vmem:[#allocation2 + $0x8] sm:$0xff]
        %v863 = vld [vmem:[#allocation2 + $0x10] sm:$0xff]
        %v864 = vld [vmem:[#allocation2 + $0x18] sm:$0xff]
        %v865 = vld [vmem:[%s394] sm:$0xff]
        %v866 = vld [vmem:[%s394 + $0x8] sm:$0xff]
        %v867 = vld [vmem:[%s394 + $0x10] sm:$0xff]
        %v868 = vld [vmem:[%s394 + $0x18] sm:$0xff]
        %v869 = vld [vmem:[%s394 + $0x20] sm:$0xff]
        %v870 = vld [vmem:[%s394 + $0x28] sm:$0xff]
        %v871 = vld [vmem:[%s394 + $0x30] sm:$0xff]
        %v872 = vld [vmem:[%s394 + $0x38] sm:$0xff]
        %v873 = vld [vmem:[%s394 + $0x40] sm:$0xff]
        %v874 = vld [vmem:[%s394 + $0x48] sm:$0xff]
        %v875 = vld [vmem:[%s394 + $0x50] sm:$0xff]
        %v876 = vld [vmem:[%s394 + $0x58] sm:$0xff]
        %v877 = vld [vmem:[%s394 + $0x60] sm:$0xff]
        %v878 = vld [vmem:[%s394 + $0x68] sm:$0xff]
        %v879 = vld [vmem:[%s394 + $0x70] sm:$0xff]
        %v880 = vld [vmem:[%s394 + $0x78] sm:$0xff]
        %v881 = vld [vmem:[%s394 + $0x80] sm:$0xff]
        %v882 = vld [vmem:[%s394 + $0x88] sm:$0xff]
        %v883 = vld [vmem:[%s394 + $0x90] sm:$0xff]
        %v884 = vld [vmem:[%s394 + $0x98] sm:$0xff]
        %v885 = vld [vmem:[%s394 + $0xa0] sm:$0xff]
        %v886 = vld [vmem:[%s394 + $0xa8] sm:$0xff]
        %v887 = vld [vmem:[%s394 + $0xb0] sm:$0xff]
        %v888 = vld [vmem:[%s394 + $0xb8] sm:$0xff]
        %v889 = vld [vmem:[%s394 + $0xc0] sm:$0xff]
        %v890 = vld [vmem:[%s394 + $0xc8] sm:$0xff]
        %v891 = vld [vmem:[%s394 + $0xd0] sm:$0xff]
        %v892 = vld [vmem:[%s394 + $0xd8] sm:$0xff]
        %v893 = vld [vmem:[%s394 + $0xe0] sm:$0xff]
        %v894 = vld [vmem:[%s394 + $0xe8] sm:$0xff]
        %v895 = vld [vmem:[%s394 + $0xf0] sm:$0xff]
        %v896 = vld [vmem:[%s394 + $0xf8] sm:$0xff]
        %v897 = vld [vmem:[%s394 + $0x100] sm:$0xff]
        %v898 = vld [vmem:[%s394 + $0x108] sm:$0xff]
        %v899 = vld [vmem:[%s394 + $0x110] sm:$0xff]
        %v900 = vld [vmem:[%s394 + $0x118] sm:$0xff]
        %v901 = vld [vmem:[%s394 + $0x120] sm:$0xff]
        %v902 = vld [vmem:[%s394 + $0x128] sm:$0xff]
        %v903 = vld [vmem:[%s394 + $0x130] sm:$0xff]
        %v904 = vld [vmem:[%s394 + $0x138] sm:$0xff]
        %v905 = vld [vmem:[%s394 + $0x140] sm:$0xff]
        %v906 = vld [vmem:[%s394 + $0x148] sm:$0xff]
        %v907 = vld [vmem:[%s394 + $0x150] sm:$0xff]
        %v908 = vld [vmem:[%s394 + $0x158] sm:$0xff]
        %v909 = vld [vmem:[%s394 + $0x160] sm:$0xff]
        %v910 = vld [vmem:[%s394 + $0x168] sm:$0xff]
        %v911 = vld [vmem:[%s394 + $0x170] sm:$0xff]
        %v912 = vld [vmem:[%s394 + $0x178] sm:$0xff]
        %v913 = vld [vmem:[%s394 + $0x180] sm:$0xff]
        %v914 = vld [vmem:[%s394 + $0x188] sm:$0xff]
        %v915 = vld [vmem:[%s394 + $0x190] sm:$0xff]
        %v916 = vld [vmem:[%s394 + $0x198] sm:$0xff]
        %v917 = vld [vmem:[%s394 + $0x1a0] sm:$0xff]
        %v918 = vld [vmem:[%s394 + $0x1a8] sm:$0xff]
        %v919 = vld [vmem:[%s394 + $0x1b0] sm:$0xff]
        %v920 = vld [vmem:[%s394 + $0x1b8] sm:$0xff]
        %v921 = vld [vmem:[%s394 + $0x1c0] sm:$0xff]
        %v922 = vld [vmem:[%s394 + $0x1c8] sm:$0xff]
        %v923 = vld [vmem:[%s394 + $0x1d0] sm:$0xff]
        %v924 = vld [vmem:[%s394 + $0x1d8] sm:$0xff]
        %v925 = vld [vmem:[%s394 + $0x1e0] sm:$0xff]
        %v926 = vld [vmem:[%s394 + $0x1e8] sm:$0xff]
        %v927 = vld [vmem:[%s394 + $0x1f0] sm:$0xff]
        %v928 = vld [vmem:[%s394 + $0x1f8] sm:$0xff]
        %929 = vmatprep.subr.mxu0 %v866
        %930 = vmatpush1.msra.mxu0 %v865
        %931 = vmatprep.subr.mxu0 %v870
        %932 = vmatpush1.msra.mxu0 %v869
        %933 = vmatprep.subr.mxu0 %v874
        %934 = vmatpush1.msra.mxu0 %v873
        %935 = vmatprep.subr.mxu0 %v878
        %936 = vmatpush1.msra.mxu0 %v877
        %937 = vmatprep.subr.mxu0 %v882
        %938 = vmatpush1.msra.mxu0 %v881
        %939 = vmatprep.subr.mxu0 %v886
        %940 = vmatpush1.msra.mxu0 %v885
        %941 = vmatprep.subr.mxu0 %v890
        %942 = vmatpush1.msra.mxu0 %v889
        %943 = vmatprep.subr.mxu0 %v894
        %944 = vmatpush1.msra.mxu0 %v893
        %945 = vmatprep.subr.mxu0 %v898
        %946 = vmatpush1.msra.mxu0 %v897
        %947 = vmatprep.subr.mxu0 %v902
        %948 = vmatpush1.msra.mxu0 %v901
        %949 = vmatprep.subr.mxu0 %v906
        %950 = vmatpush1.msra.mxu0 %v905
        %951 = vmatprep.subr.mxu0 %v910
        %952 = vmatpush1.msra.mxu0 %v909
        %953 = vmatprep.subr.mxu0 %v914
        %954 = vmatpush1.msra.mxu0 %v913
        %955 = vmatprep.subr.mxu0 %v918
        %956 = vmatpush1.msra.mxu0 %v917
        %957 = vmatprep.subr.mxu0 %v922
        %958 = vmatpush1.msra.mxu0 %v921
        %959 = vmatprep.subr.mxu0 %v926
        %960 = vmatpush1.msra.mxu0 %v925
        %961 = vmatprep.subr.mxu0 0.0
        %962 = vmatpush1.msra.mxu0 0.0
        %963 = vmatprep.subr.mxu0 0.0
        %964 = vmatpush1.msra.mxu0 0.0
        %965 = vmatprep.subr.mxu0 0.0
        %966 = vmatpush1.msra.mxu0 0.0
        %967 = vmatprep.subr.mxu0 0.0
        %968 = vmatpush1.msra.mxu0 0.0
        %969 = vmatprep.subr.mxu0 0.0
        %970 = vmatpush1.msra.mxu0 0.0
        %971 = vmatprep.subr.mxu0 0.0
        %972 = vmatpush1.msra.mxu0 0.0
        %973 = vmatprep.subr.mxu0 0.0
        %974 = vmatpush1.msra.mxu0 0.0
        %975 = vmatprep.subr.mxu0 0.0
        %976 = vmatpush1.msra.mxu0 0.0
        %977 = vmatprep.subr.mxu0 0.0
        %978 = vmatpush1.msra.mxu0 0.0
        %979 = vmatprep.subr.mxu0 0.0
        %980 = vmatpush1.msra.mxu0 0.0
        %981 = vmatprep.subr.mxu0 0.0
        %982 = vmatpush1.msra.mxu0 0.0
        %983 = vmatprep.subr.mxu0 0.0
        %984 = vmatpush1.msra.mxu0 0.0
        %985 = vmatprep.subr.mxu0 0.0
        %986 = vmatpush1.msra.mxu0 0.0
        %987 = vmatprep.subr.mxu0 0.0
        %988 = vmatpush1.msra.mxu0 0.0
        %989 = vmatprep.subr.mxu0 0.0
        %990 = vmatpush1.msra.mxu0 0.0
        %991 = vmatprep.subr.mxu0 0.0
        %992 = vmatpush1.msra.mxu0 0.0
        %993 = vmatprep.mubr.f32.mxu0 0.0
        %994 = vmatmul.mubr.f32.gmra.mrb[0].mxu0 %v859
        %v995 = vpop.f32.mrb[0].mxu0
        %v996 = vadd.f32 0.0, %v995
        %v997 = vpop.f32.mrb[0].mxu0
        %v998 = vadd.f32 0.0, %v997
        %999 = vdwg.mxu0
        %1000 = vmatprep.subr.mxu0 %v868
        %1001 = vmatpush1.msra.mxu0 %v867
        %1002 = vmatprep.subr.mxu0 %v872
        %1003 = vmatpush1.msra.mxu0 %v871
        %1004 = vmatprep.subr.mxu0 %v876
        %1005 = vmatpush1.msra.mxu0 %v875
        %1006 = vmatprep.subr.mxu0 %v880
        %1007 = vmatpush1.msra.mxu0 %v879
        %1008 = vmatprep.subr.mxu0 %v884
        %1009 = vmatpush1.msra.mxu0 %v883
        %1010 = vmatprep.subr.mxu0 %v888
        %1011 = vmatpush1.msra.mxu0 %v887
        %1012 = vmatprep.subr.mxu0 %v892
        %1013 = vmatpush1.msra.mxu0 %v891
        %1014 = vmatprep.subr.mxu0 %v896
        %1015 = vmatpush1.msra.mxu0 %v895
        %1016 = vmatprep.subr.mxu0 %v900
        %1017 = vmatpush1.msra.mxu0 %v899
        %1018 = vmatprep.subr.mxu0 %v904
        %1019 = vmatpush1.msra.mxu0 %v903
        %1020 = vmatprep.subr.mxu0 %v908
        %1021 = vmatpush1.msra.mxu0 %v907
        %1022 = vmatprep.subr.mxu0 %v912
        %1023 = vmatpush1.msra.mxu0 %v911
        %1024 = vmatprep.subr.mxu0 %v916
        %1025 = vmatpush1.msra.mxu0 %v915
        %1026 = vmatprep.subr.mxu0 %v920
        %1027 = vmatpush1.msra.mxu0 %v919
        %1028 = vmatprep.subr.mxu0 %v924
        %1029 = vmatpush1.msra.mxu0 %v923
        %1030 = vmatprep.subr.mxu0 %v928
        %1031 = vmatpush1.msra.mxu0 %v927
        %1032 = vmatprep.subr.mxu0 0.0
        %1033 = vmatpush1.msra.mxu0 0.0
        %1034 = vmatprep.subr.mxu0 0.0
        %1035 = vmatpush1.msra.mxu0 0.0
        %1036 = vmatprep.subr.mxu0 0.0
        %1037 = vmatpush1.msra.mxu0 0.0
        %1038 = vmatprep.subr.mxu0 0.0
        %1039 = vmatpush1.msra.mxu0 0.0
        %1040 = vmatprep.subr.mxu0 0.0
        %1041 = vmatpush1.msra.mxu0 0.0
        %1042 = vmatprep.subr.mxu0 0.0
        %1043 = vmatpush1.msra.mxu0 0.0
        %1044 = vmatprep.subr.mxu0 0.0
        %1045 = vmatpush1.msra.mxu0 0.0
        %1046 = vmatprep.subr.mxu0 0.0
        %1047 = vmatpush1.msra.mxu0 0.0
        %1048 = vmatprep.subr.mxu0 0.0
        %1049 = vmatpush1.msra.mxu0 0.0
        %1050 = vmatprep.subr.mxu0 0.0
        %1051 = vmatpush1.msra.mxu0 0.0
        %1052 = vmatprep.subr.mxu0 0.0
        %1053 = vmatpush1.msra.mxu0 0.0
        %1054 = vmatprep.subr.mxu0 0.0
        %1055 = vmatpush1.msra.mxu0 0.0
        %1056 = vmatprep.subr.mxu0 0.0
        %1057 = vmatpush1.msra.mxu0 0.0
        %1058 = vmatprep.subr.mxu0 0.0
        %1059 = vmatpush1.msra.mxu0 0.0
        %1060 = vmatprep.subr.mxu0 0.0
        %1061 = vmatpush1.msra.mxu0 0.0
        %1062 = vmatprep.subr.mxu0 0.0
        %1063 = vmatpush1.msra.mxu0 0.0
        %1064 = vmatprep.mubr.f32.mxu0 0.0
        %1065 = vmatmul.mubr.f32.gmra.mrb[0].mxu0 %v859
        %v1066 = vpop.f32.mrb[0].mxu0
        %v1067 = vadd.f32 0.0, %v1066
        %v1068 = vpop.f32.mrb[0].mxu0
        %v1069 = vadd.f32 0.0, %v1068
        %1070 = vdwg.mxu0
        %v1071 = vadd.f32 %v861, %v996
        %v1072 = vadd.f32 %v862, %v998
        %v1073 = vadd.f32 %v863, %v1067
        %v1074 = vadd.f32 %v864, %v1069
        %v1075 = vxor.u32 %v1071, 2147483648
        %v1076 = vxor.u32 %v1072, 2147483648
        %v1077 = vxor.u32 %v1073, 2147483648
        %v1078 = vmul.f32 %v1075, 1.442695
        %v1079 = vpow.pop %v1078
        %v1080 = vmul.f32 %v1076, 1.442695
        %v1081 = vpow.pop %v1080
        %v1082 = vmul.f32 %v1077, 1.442695
        %v1083 = vpow.pop %v1082
        %v1084 = vadd.f32 %v1079, 1.0
        %v1085 = vadd.f32 %v1081, 1.0
        %v1086 = vadd.f32 %v1083, 1.0
        %v1087 = vrcp.pop %v1084
        %v1088 = vmul.f32 1.0, %v1087
        %v1089 = vrcp.pop %v1085
        %v1090 = vmul.f32 1.0, %v1089
        %v1091 = vrcp.pop %v1086
        %v1092 = vmul.f32 1.0, %v1091
        %v1093 = vtanh.pop %v1074
        %v1094 = vmul.f32 %v1090, %v860
        %v1095 = vmul.f32 %v1088, %v1093
        %v1096 = vadd.f32 %v1094, %v1095
        %v1097 = vtanh.pop %v1096
        %v1098 = vmul.f32 %v1092, %v1097
        %1099 = vst [vmem:[#allocation12] sm:$0xff] %v1098
        %s1100 = scalar_lea.vmem [#allocation2], 32
        %v1101 = vld [vmem:[%s1100] sm:$0xff]
        %v1102 = vld [vmem:[%s1100 + $0x8] sm:$0xff]
        %v1103 = vld [vmem:[%s1100 + $0x10] sm:$0xff]
        %v1104 = vld [vmem:[%s1100 + $0x18] sm:$0xff]
        %v1105 = vld [vmem:[%s394] sm:$0xff]
        %v1106 = vld [vmem:[%s394 + $0x8] sm:$0xff]
        %v1107 = vld [vmem:[%s394 + $0x10] sm:$0xff]
        %v1108 = vld [vmem:[%s394 + $0x18] sm:$0xff]
        %v1109 = vld [vmem:[%s394 + $0x20] sm:$0xff]
        %v1110 = vld [vmem:[%s394 + $0x28] sm:$0xff]
        %v1111 = vld [vmem:[%s394 + $0x30] sm:$0xff]
        %v1112 = vld [vmem:[%s394 + $0x38] sm:$0xff]
        %v1113 = vld [vmem:[%s394 + $0x40] sm:$0xff]
        %v1114 = vld [vmem:[%s394 + $0x48] sm:$0xff]
        %v1115 = vld [vmem:[%s394 + $0x50] sm:$0xff]
        %v1116 = vld [vmem:[%s394 + $0x58] sm:$0xff]
        %v1117 = vld [vmem:[%s394 + $0x60] sm:$0xff]
        %v1118 = vld [vmem:[%s394 + $0x68] sm:$0xff]
        %v1119 = vld [vmem:[%s394 + $0x70] sm:$0xff]
        %v1120 = vld [vmem:[%s394 + $0x78] sm:$0xff]
        %v1121 = vld [vmem:[%s394 + $0x80] sm:$0xff]
        %v1122 = vld [vmem:[%s394 + $0x88] sm:$0xff]
        %v1123 = vld [vmem:[%s394 + $0x90] sm:$0xff]
        %v1124 = vld [vmem:[%s394 + $0x98] sm:$0xff]
        %v1125 = vld [vmem:[%s394 + $0xa0] sm:$0xff]
        %v1126 = vld [vmem:[%s394 + $0xa8] sm:$0xff]
        %v1127 = vld [vmem:[%s394 + $0xb0] sm:$0xff]
        %v1128 = vld [vmem:[%s394 + $0xb8] sm:$0xff]
        %v1129 = vld [vmem:[%s394 + $0xc0] sm:$0xff]
        %v1130 = vld [vmem:[%s394 + $0xc8] sm:$0xff]
        %v1131 = vld [vmem:[%s394 + $0xd0] sm:$0xff]
        %v1132 = vld [vmem:[%s394 + $0xd8] sm:$0xff]
        %v1133 = vld [vmem:[%s394 + $0xe0] sm:$0xff]
        %v1134 = vld [vmem:[%s394 + $0xe8] sm:$0xff]
        %v1135 = vld [vmem:[%s394 + $0xf0] sm:$0xff]
        %v1136 = vld [vmem:[%s394 + $0xf8] sm:$0xff]
        %v1137 = vld [vmem:[%s394 + $0x100] sm:$0xff]
        %v1138 = vld [vmem:[%s394 + $0x108] sm:$0xff]
        %v1139 = vld [vmem:[%s394 + $0x110] sm:$0xff]
        %v1140 = vld [vmem:[%s394 + $0x118] sm:$0xff]
        %v1141 = vld [vmem:[%s394 + $0x120] sm:$0xff]
        %v1142 = vld [vmem:[%s394 + $0x128] sm:$0xff]
        %v1143 = vld [vmem:[%s394 + $0x130] sm:$0xff]
        %v1144 = vld [vmem:[%s394 + $0x138] sm:$0xff]
        %v1145 = vld [vmem:[%s394 + $0x140] sm:$0xff]
        %v1146 = vld [vmem:[%s394 + $0x148] sm:$0xff]
        %v1147 = vld [vmem:[%s394 + $0x150] sm:$0xff]
        %v1148 = vld [vmem:[%s394 + $0x158] sm:$0xff]
        %v1149 = vld [vmem:[%s394 + $0x160] sm:$0xff]
        %v1150 = vld [vmem:[%s394 + $0x168] sm:$0xff]
        %v1151 = vld [vmem:[%s394 + $0x170] sm:$0xff]
        %v1152 = vld [vmem:[%s394 + $0x178] sm:$0xff]
        %v1153 = vld [vmem:[%s394 + $0x180] sm:$0xff]
        %v1154 = vld [vmem:[%s394 + $0x188] sm:$0xff]
        %v1155 = vld [vmem:[%s394 + $0x190] sm:$0xff]
        %v1156 = vld [vmem:[%s394 + $0x198] sm:$0xff]
        %v1157 = vld [vmem:[%s394 + $0x1a0] sm:$0xff]
        %v1158 = vld [vmem:[%s394 + $0x1a8] sm:$0xff]
        %v1159 = vld [vmem:[%s394 + $0x1b0] sm:$0xff]
        %v1160 = vld [vmem:[%s394 + $0x1b8] sm:$0xff]
        %v1161 = vld [vmem:[%s394 + $0x1c0] sm:$0xff]
        %v1162 = vld [vmem:[%s394 + $0x1c8] sm:$0xff]
        %v1163 = vld [vmem:[%s394 + $0x1d0] sm:$0xff]
        %v1164 = vld [vmem:[%s394 + $0x1d8] sm:$0xff]
        %v1165 = vld [vmem:[%s394 + $0x1e0] sm:$0xff]
        %v1166 = vld [vmem:[%s394 + $0x1e8] sm:$0xff]
        %v1167 = vld [vmem:[%s394 + $0x1f0] sm:$0xff]
        %v1168 = vld [vmem:[%s394 + $0x1f8] sm:$0xff]
        %1169 = vmatprep.subr.mxu0 %v1106
        %1170 = vmatpush1.msra.mxu0 %v1105
        %1171 = vmatprep.subr.mxu0 %v1110
        %1172 = vmatpush1.msra.mxu0 %v1109
        %1173 = vmatprep.subr.mxu0 %v1114
        %1174 = vmatpush1.msra.mxu0 %v1113
        %1175 = vmatprep.subr.mxu0 %v1118
        %1176 = vmatpush1.msra.mxu0 %v1117
        %1177 = vmatprep.subr.mxu0 %v1122
        %1178 = vmatpush1.msra.mxu0 %v1121
        %1179 = vmatprep.subr.mxu0 %v1126
        %1180 = vmatpush1.msra.mxu0 %v1125
        %1181 = vmatprep.subr.mxu0 %v1130
        %1182 = vmatpush1.msra.mxu0 %v1129
        %1183 = vmatprep.subr.mxu0 %v1134
        %1184 = vmatpush1.msra.mxu0 %v1133
        %1185 = vmatprep.subr.mxu0 %v1138
        %1186 = vmatpush1.msra.mxu0 %v1137
        %1187 = vmatprep.subr.mxu0 %v1142
        %1188 = vmatpush1.msra.mxu0 %v1141
        %1189 = vmatprep.subr.mxu0 %v1146
        %1190 = vmatpush1.msra.mxu0 %v1145
        %1191 = vmatprep.subr.mxu0 %v1150
        %1192 = vmatpush1.msra.mxu0 %v1149
        %1193 = vmatprep.subr.mxu0 %v1154
        %1194 = vmatpush1.msra.mxu0 %v1153
        %1195 = vmatprep.subr.mxu0 %v1158
        %1196 = vmatpush1.msra.mxu0 %v1157
        %1197 = vmatprep.subr.mxu0 %v1162
        %1198 = vmatpush1.msra.mxu0 %v1161
        %1199 = vmatprep.subr.mxu0 %v1166
        %1200 = vmatpush1.msra.mxu0 %v1165
        %1201 = vmatprep.subr.mxu0 0.0
        %1202 = vmatpush1.msra.mxu0 0.0
        %1203 = vmatprep.subr.mxu0 0.0
        %1204 = vmatpush1.msra.mxu0 0.0
        %1205 = vmatprep.subr.mxu0 0.0
        %1206 = vmatpush1.msra.mxu0 0.0
        %1207 = vmatprep.subr.mxu0 0.0
        %1208 = vmatpush1.msra.mxu0 0.0
        %1209 = vmatprep.subr.mxu0 0.0
        %1210 = vmatpush1.msra.mxu0 0.0
        %1211 = vmatprep.subr.mxu0 0.0
        %1212 = vmatpush1.msra.mxu0 0.0
        %1213 = vmatprep.subr.mxu0 0.0
        %1214 = vmatpush1.msra.mxu0 0.0
        %1215 = vmatprep.subr.mxu0 0.0
        %1216 = vmatpush1.msra.mxu0 0.0
        %1217 = vmatprep.subr.mxu0 0.0
        %1218 = vmatpush1.msra.mxu0 0.0
        %1219 = vmatprep.subr.mxu0 0.0
        %1220 = vmatpush1.msra.mxu0 0.0
        %1221 = vmatprep.subr.mxu0 0.0
        %1222 = vmatpush1.msra.mxu0 0.0
        %1223 = vmatprep.subr.mxu0 0.0
        %1224 = vmatpush1.msra.mxu0 0.0
        %1225 = vmatprep.subr.mxu0 0.0
        %1226 = vmatpush1.msra.mxu0 0.0
        %1227 = vmatprep.subr.mxu0 0.0
        %1228 = vmatpush1.msra.mxu0 0.0
        %1229 = vmatprep.subr.mxu0 0.0
        %1230 = vmatpush1.msra.mxu0 0.0
        %1231 = vmatprep.subr.mxu0 0.0
        %1232 = vmatpush1.msra.mxu0 0.0
        %1233 = vmatprep.mubr.f32.mxu0 0.0
        %1234 = vmatmul.mubr.f32.gmra.mrb[0].mxu0 %v1098
        %v1235 = vpop.f32.mrb[0].mxu0
        %v1236 = vadd.f32 0.0, %v1235
        %v1237 = vpop.f32.mrb[0].mxu0
        %v1238 = vadd.f32 0.0, %v1237
        %1239 = vdwg.mxu0
        %1240 = vmatprep.subr.mxu0 %v1108
        %1241 = vmatpush1.msra.mxu0 %v1107
        %1242 = vmatprep.subr.mxu0 %v1112
        %1243 = vmatpush1.msra.mxu0 %v1111
        %1244 = vmatprep.subr.mxu0 %v1116
        %1245 = vmatpush1.msra.mxu0 %v1115
        %1246 = vmatprep.subr.mxu0 %v1120
        %1247 = vmatpush1.msra.mxu0 %v1119
        %1248 = vmatprep.subr.mxu0 %v1124
        %1249 = vmatpush1.msra.mxu0 %v1123
        %1250 = vmatprep.subr.mxu0 %v1128
        %1251 = vmatpush1.msra.mxu0 %v1127
        %1252 = vmatprep.subr.mxu0 %v1132
        %1253 = vmatpush1.msra.mxu0 %v1131
        %1254 = vmatprep.subr.mxu0 %v1136
        %1255 = vmatpush1.msra.mxu0 %v1135
        %1256 = vmatprep.subr.mxu0 %v1140
        %1257 = vmatpush1.msra.mxu0 %v1139
        %1258 = vmatprep.subr.mxu0 %v1144
        %1259 = vmatpush1.msra.mxu0 %v1143
        %1260 = vmatprep.subr.mxu0 %v1148
        %1261 = vmatpush1.msra.mxu0 %v1147
        %1262 = vmatprep.subr.mxu0 %v1152
        %1263 = vmatpush1.msra.mxu0 %v1151
        %1264 = vmatprep.subr.mxu0 %v1156
        %1265 = vmatpush1.msra.mxu0 %v1155
        %1266 = vmatprep.subr.mxu0 %v1160
        %1267 = vmatpush1.msra.mxu0 %v1159
        %1268 = vmatprep.subr.mxu0 %v1164
        %1269 = vmatpush1.msra.mxu0 %v1163
        %1270 = vmatprep.subr.mxu0 %v1168
        %1271 = vmatpush1.msra.mxu0 %v1167
        %1272 = vmatprep.subr.mxu0 0.0
        %1273 = vmatpush1.msra.mxu0 0.0
        %1274 = vmatprep.subr.mxu0 0.0
        %1275 = vmatpush1.msra.mxu0 0.0
        %1276 = vmatprep.subr.mxu0 0.0
        %1277 = vmatpush1.msra.mxu0 0.0
        %1278 = vmatprep.subr.mxu0 0.0
        %1279 = vmatpush1.msra.mxu0 0.0
        %1280 = vmatprep.subr.mxu0 0.0
        %1281 = vmatpush1.msra.mxu0 0.0
        %1282 = vmatprep.subr.mxu0 0.0
        %1283 = vmatpush1.msra.mxu0 0.0
        %1284 = vmatprep.subr.mxu0 0.0
        %1285 = vmatpush1.msra.mxu0 0.0
        %1286 = vmatprep.subr.mxu0 0.0
        %1287 = vmatpush1.msra.mxu0 0.0
        %1288 = vmatprep.subr.mxu0 0.0
        %1289 = vmatpush1.msra.mxu0 0.0
        %1290 = vmatprep.subr.mxu0 0.0
        %1291 = vmatpush1.msra.mxu0 0.0
        %1292 = vmatprep.subr.mxu0 0.0
        %1293 = vmatpush1.msra.mxu0 0.0
        %1294 = vmatprep.subr.mxu0 0.0
        %1295 = vmatpush1.msra.mxu0 0.0
        %1296 = vmatprep.subr.mxu0 0.0
        %1297 = vmatpush1.msra.mxu0 0.0
        %1298 = vmatprep.subr.mxu0 0.0
        %1299 = vmatpush1.msra.mxu0 0.0
        %1300 = vmatprep.subr.mxu0 0.0
        %1301 = vmatpush1.msra.mxu0 0.0
        %1302 = vmatprep.subr.mxu0 0.0
        %1303 = vmatpush1.msra.mxu0 0.0
        %1304 = vmatprep.mubr.f32.mxu0 0.0
        %1305 = vmatmul.mubr.f32.gmra.mrb[0].mxu0 %v1098
        %v1306 = vpop.f32.mrb[0].mxu0
        %v1307 = vadd.f32 0.0, %v1306
        %v1308 = vpop.f32.mrb[0].mxu0
        %v1309 = vadd.f32 0.0, %v1308
        %1310 = vdwg.mxu0
        %v1311 = vadd.f32 %v1101, %v1236
        %v1312 = vadd.f32 %v1102, %v1238
        %v1313 = vadd.f32 %v1103, %v1307
        %v1314 = vadd.f32 %v1104, %v1309
        %v1315 = vxor.u32 %v1311, 2147483648
        %v1316 = vxor.u32 %v1312, 2147483648
        %v1317 = vxor.u32 %v1313, 2147483648
        %v1318 = vmul.f32 %v1315, 1.442695
        %v1319 = vpow.pop %v1318
        %v1320 = vmul.f32 %v1316, 1.442695
        %v1321 = vpow.pop %v1320
        %v1322 = vmul.f32 %v1317, 1.442695
        %v1323 = vpow.pop %v1322
        %v1324 = vadd.f32 %v1319, 1.0
        %v1325 = vadd.f32 %v1321, 1.0
        %v1326 = vadd.f32 %v1323, 1.0
        %v1327 = vrcp.pop %v1324
        %v1328 = vmul.f32 1.0, %v1327
        %v1329 = vrcp.pop %v1325
        %v1330 = vmul.f32 1.0, %v1329
        %v1331 = vrcp.pop %v1326
        %v1332 = vmul.f32 1.0, %v1331
        %v1333 = vtanh.pop %v1314
        %v1334 = vmul.f32 %v1330, %v1096
        %v1335 = vmul.f32 %v1328, %v1333
        %v1336 = vadd.f32 %v1334, %v1335
        %v1337 = vtanh.pop %v1336
        %v1338 = vmul.f32 %v1332, %v1337
        %s1339 = scalar_lea.vmem [#allocation12], 8
        %1340 = vst [vmem:[%s1339] sm:$0xff] %v1338
        %s1341 = scalar_lea.vmem [#allocation2], 64
        %v1342 = vld [vmem:[%s1341] sm:$0xff]
        %v1343 = vld [vmem:[%s1341 + $0x8] sm:$0xff]
        %v1344 = vld [vmem:[%s1341 + $0x10] sm:$0xff]
        %v1345 = vld [vmem:[%s1341 + $0x18] sm:$0xff]
        %v1346 = vld [vmem:[%s394] sm:$0xff]
        %v1347 = vld [vmem:[%s394 + $0x8] sm:$0xff]
        %v1348 = vld [vmem:[%s394 + $0x10] sm:$0xff]
        %v1349 = vld [vmem:[%s394 + $0x18] sm:$0xff]
        %v1350 = vld [vmem:[%s394 + $0x20] sm:$0xff]
        %v1351 = vld [vmem:[%s394 + $0x28] sm:$0xff]
        %v1352 = vld [vmem:[%s394 + $0x30] sm:$0xff]
        %v1353 = vld [vmem:[%s394 + $0x38] sm:$0xff]
        %v1354 = vld [vmem:[%s394 + $0x40] sm:$0xff]
        %v1355 = vld [vmem:[%s394 + $0x48] sm:$0xff]
        %v1356 = vld [vmem:[%s394 + $0x50] sm:$0xff]
        %v1357 = vld [vmem:[%s394 + $0x58] sm:$0xff]
        %v1358 = vld [vmem:[%s394 + $0x60] sm:$0xff]
        %v1359 = vld [vmem:[%s394 + $0x68] sm:$0xff]
        %v1360 = vld [vmem:[%s394 + $0x70] sm:$0xff]
        %v1361 = vld [vmem:[%s394 + $0x78] sm:$0xff]
        %v1362 = vld [vmem:[%s394 + $0x80] sm:$0xff]
        %v1363 = vld [vmem:[%s394 + $0x88] sm:$0xff]
        %v1364 = vld [vmem:[%s394 + $0x90] sm:$0xff]
        %v1365 = vld [vmem:[%s394 + $0x98] sm:$0xff]
        %v1366 = vld [vmem:[%s394 + $0xa0] sm:$0xff]
        %v1367 = vld [vmem:[%s394 + $0xa8] sm:$0xff]
        %v1368 = vld [vmem:[%s394 + $0xb0] sm:$0xff]
        %v1369 = vld [vmem:[%s394 + $0xb8] sm:$0xff]
        %v1370 = vld [vmem:[%s394 + $0xc0] sm:$0xff]
        %v1371 = vld [vmem:[%s394 + $0xc8] sm:$0xff]
        %v1372 = vld [vmem:[%s394 + $0xd0] sm:$0xff]
        %v1373 = vld [vmem:[%s394 + $0xd8] sm:$0xff]
        %v1374 = vld [vmem:[%s394 + $0xe0] sm:$0xff]
        %v1375 = vld [vmem:[%s394 + $0xe8] sm:$0xff]
        %v1376 = vld [vmem:[%s394 + $0xf0] sm:$0xff]
        %v1377 = vld [vmem:[%s394 + $0xf8] sm:$0xff]
        %v1378 = vld [vmem:[%s394 + $0x100] sm:$0xff]
        %v1379 = vld [vmem:[%s394 + $0x108] sm:$0xff]
        %v1380 = vld [vmem:[%s394 + $0x110] sm:$0xff]
        %v1381 = vld [vmem:[%s394 + $0x118] sm:$0xff]
        %v1382 = vld [vmem:[%s394 + $0x120] sm:$0xff]
        %v1383 = vld [vmem:[%s394 + $0x128] sm:$0xff]
        %v1384 = vld [vmem:[%s394 + $0x130] sm:$0xff]
        %v1385 = vld [vmem:[%s394 + $0x138] sm:$0xff]
        %v1386 = vld [vmem:[%s394 + $0x140] sm:$0xff]
        %v1387 = vld [vmem:[%s394 + $0x148] sm:$0xff]
        %v1388 = vld [vmem:[%s394 + $0x150] sm:$0xff]
        %v1389 = vld [vmem:[%s394 + $0x158] sm:$0xff]
        %v1390 = vld [vmem:[%s394 + $0x160] sm:$0xff]
        %v1391 = vld [vmem:[%s394 + $0x168] sm:$0xff]
        %v1392 = vld [vmem:[%s394 + $0x170] sm:$0xff]
        %v1393 = vld [vmem:[%s394 + $0x178] sm:$0xff]
        %v1394 = vld [vmem:[%s394 + $0x180] sm:$0xff]
        %v1395 = vld [vmem:[%s394 + $0x188] sm:$0xff]
        %v1396 = vld [vmem:[%s394 + $0x190] sm:$0xff]
        %v1397 = vld [vmem:[%s394 + $0x198] sm:$0xff]
        %v1398 = vld [vmem:[%s394 + $0x1a0] sm:$0xff]
        %v1399 = vld [vmem:[%s394 + $0x1a8] sm:$0xff]
        %v1400 = vld [vmem:[%s394 + $0x1b0] sm:$0xff]
        %v1401 = vld [vmem:[%s394 + $0x1b8] sm:$0xff]
        %v1402 = vld [vmem:[%s394 + $0x1c0] sm:$0xff]
        %v1403 = vld [vmem:[%s394 + $0x1c8] sm:$0xff]
        %v1404 = vld [vmem:[%s394 + $0x1d0] sm:$0xff]
        %v1405 = vld [vmem:[%s394 + $0x1d8] sm:$0xff]
        %v1406 = vld [vmem:[%s394 + $0x1e0] sm:$0xff]
        %v1407 = vld [vmem:[%s394 + $0x1e8] sm:$0xff]
        %v1408 = vld [vmem:[%s394 + $0x1f0] sm:$0xff]
        %v1409 = vld [vmem:[%s394 + $0x1f8] sm:$0xff]
        %1410 = vmatprep.subr.mxu0 %v1347
        %1411 = vmatpush1.msra.mxu0 %v1346
        %1412 = vmatprep.subr.mxu0 %v1351
        %1413 = vmatpush1.msra.mxu0 %v1350
        %1414 = vmatprep.subr.mxu0 %v1355
        %1415 = vmatpush1.msra.mxu0 %v1354
        %1416 = vmatprep.subr.mxu0 %v1359
        %1417 = vmatpush1.msra.mxu0 %v1358
        %1418 = vmatprep.subr.mxu0 %v1363
        %1419 = vmatpush1.msra.mxu0 %v1362
        %1420 = vmatprep.subr.mxu0 %v1367
        %1421 = vmatpush1.msra.mxu0 %v1366
        %1422 = vmatprep.subr.mxu0 %v1371
        %1423 = vmatpush1.msra.mxu0 %v1370
        %1424 = vmatprep.subr.mxu0 %v1375
        %1425 = vmatpush1.msra.mxu0 %v1374
        %1426 = vmatprep.subr.mxu0 %v1379
        %1427 = vmatpush1.msra.mxu0 %v1378
        %1428 = vmatprep.subr.mxu0 %v1383
        %1429 = vmatpush1.msra.mxu0 %v1382
        %1430 = vmatprep.subr.mxu0 %v1387
        %1431 = vmatpush1.msra.mxu0 %v1386
        %1432 = vmatprep.subr.mxu0 %v1391
        %1433 = vmatpush1.msra.mxu0 %v1390
        %1434 = vmatprep.subr.mxu0 %v1395
        %1435 = vmatpush1.msra.mxu0 %v1394
        %1436 = vmatprep.subr.mxu0 %v1399
        %1437 = vmatpush1.msra.mxu0 %v1398
        %1438 = vmatprep.subr.mxu0 %v1403
        %1439 = vmatpush1.msra.mxu0 %v1402
        %1440 = vmatprep.subr.mxu0 %v1407
        %1441 = vmatpush1.msra.mxu0 %v1406
        %1442 = vmatprep.subr.mxu0 0.0
        %1443 = vmatpush1.msra.mxu0 0.0
        %1444 = vmatprep.subr.mxu0 0.0
        %1445 = vmatpush1.msra.mxu0 0.0
        %1446 = vmatprep.subr.mxu0 0.0
        %1447 = vmatpush1.msra.mxu0 0.0
        %1448 = vmatprep.subr.mxu0 0.0
        %1449 = vmatpush1.msra.mxu0 0.0
        %1450 = vmatprep.subr.mxu0 0.0
        %1451 = vmatpush1.msra.mxu0 0.0
        %1452 = vmatprep.subr.mxu0 0.0
        %1453 = vmatpush1.msra.mxu0 0.0
        %1454 = vmatprep.subr.mxu0 0.0
        %1455 = vmatpush1.msra.mxu0 0.0
        %1456 = vmatprep.subr.mxu0 0.0
        %1457 = vmatpush1.msra.mxu0 0.0
        %1458 = vmatprep.subr.mxu0 0.0
        %1459 = vmatpush1.msra.mxu0 0.0
        %1460 = vmatprep.subr.mxu0 0.0
        %1461 = vmatpush1.msra.mxu0 0.0
        %1462 = vmatprep.subr.mxu0 0.0
        %1463 = vmatpush1.msra.mxu0 0.0
        %1464 = vmatprep.subr.mxu0 0.0
        %1465 = vmatpush1.msra.mxu0 0.0
        %1466 = vmatprep.subr.mxu0 0.0
        %1467 = vmatpush1.msra.mxu0 0.0
        %1468 = vmatprep.subr.mxu0 0.0
        %1469 = vmatpush1.msra.mxu0 0.0
        %1470 = vmatprep.subr.mxu0 0.0
        %1471 = vmatpush1.msra.mxu0 0.0
        %1472 = vmatprep.subr.mxu0 0.0
        %1473 = vmatpush1.msra.mxu0 0.0
        %1474 = vmatprep.mubr.f32.mxu0 0.0
        %1475 = vmatmul.mubr.f32.gmra.mrb[0].mxu0 %v1338
        %v1476 = vpop.f32.mrb[0].mxu0
        %v1477 = vadd.f32 0.0, %v1476
        %v1478 = vpop.f32.mrb[0].mxu0
        %v1479 = vadd.f32 0.0, %v1478
        %1480 = vdwg.mxu0
        %1481 = vmatprep.subr.mxu0 %v1349
        %1482 = vmatpush1.msra.mxu0 %v1348
        %1483 = vmatprep.subr.mxu0 %v1353
        %1484 = vmatpush1.msra.mxu0 %v1352
        %1485 = vmatprep.subr.mxu0 %v1357
        %1486 = vmatpush1.msra.mxu0 %v1356
        %1487 = vmatprep.subr.mxu0 %v1361
        %1488 = vmatpush1.msra.mxu0 %v1360
        %1489 = vmatprep.subr.mxu0 %v1365
        %1490 = vmatpush1.msra.mxu0 %v1364
        %1491 = vmatprep.subr.mxu0 %v1369
        %1492 = vmatpush1.msra.mxu0 %v1368
        %1493 = vmatprep.subr.mxu0 %v1373
        %1494 = vmatpush1.msra.mxu0 %v1372
        %1495 = vmatprep.subr.mxu0 %v1377
        %1496 = vmatpush1.msra.mxu0 %v1376
        %1497 = vmatprep.subr.mxu0 %v1381
        %1498 = vmatpush1.msra.mxu0 %v1380
        %1499 = vmatprep.subr.mxu0 %v1385
        %1500 = vmatpush1.msra.mxu0 %v1384
        %1501 = vmatprep.subr.mxu0 %v1389
        %1502 = vmatpush1.msra.mxu0 %v1388
        %1503 = vmatprep.subr.mxu0 %v1393
        %1504 = vmatpush1.msra.mxu0 %v1392
        %1505 = vmatprep.subr.mxu0 %v1397
        %1506 = vmatpush1.msra.mxu0 %v1396
        %1507 = vmatprep.subr.mxu0 %v1401
        %1508 = vmatpush1.msra.mxu0 %v1400
        %1509 = vmatprep.subr.mxu0 %v1405
        %1510 = vmatpush1.msra.mxu0 %v1404
        %1511 = vmatprep.subr.mxu0 %v1409
        %1512 = vmatpush1.msra.mxu0 %v1408
        %1513 = vmatprep.subr.mxu0 0.0
        %1514 = vmatpush1.msra.mxu0 0.0
        %1515 = vmatprep.subr.mxu0 0.0
        %1516 = vmatpush1.msra.mxu0 0.0
        %1517 = vmatprep.subr.mxu0 0.0
        %1518 = vmatpush1.msra.mxu0 0.0
        %1519 = vmatprep.subr.mxu0 0.0
        %1520 = vmatpush1.msra.mxu0 0.0
        %1521 = vmatprep.subr.mxu0 0.0
        %1522 = vmatpush1.msra.mxu0 0.0
        %1523 = vmatprep.subr.mxu0 0.0
        %1524 = vmatpush1.msra.mxu0 0.0
        %1525 = vmatprep.subr.mxu0 0.0
        %1526 = vmatpush1.msra.mxu0 0.0
        %1527 = vmatprep.subr.mxu0 0.0
        %1528 = vmatpush1.msra.mxu0 0.0
        %1529 = vmatprep.subr.mxu0 0.0
        %1530 = vmatpush1.msra.mxu0 0.0
        %1531 = vmatprep.subr.mxu0 0.0
        %1532 = vmatpush1.msra.mxu0 0.0
        %1533 = vmatprep.subr.mxu0 0.0
        %1534 = vmatpush1.msra.mxu0 0.0
        %1535 = vmatprep.subr.mxu0 0.0
        %1536 = vmatpush1.msra.mxu0 0.0
        %1537 = vmatprep.subr.mxu0 0.0
        %1538 = vmatpush1.msra.mxu0 0.0
        %1539 = vmatprep.subr.mxu0 0.0
        %1540 = vmatpush1.msra.mxu0 0.0
        %1541 = vmatprep.subr.mxu0 0.0
        %1542 = vmatpush1.msra.mxu0 0.0
        %1543 = vmatprep.subr.mxu0 0.0
        %1544 = vmatpush1.msra.mxu0 0.0
        %1545 = vmatprep.mubr.f32.mxu0 0.0
        %1546 = vmatmul.mubr.f32.gmra.mrb[0].mxu0 %v1338
        %v1547 = vpop.f32.mrb[0].mxu0
        %v1548 = vadd.f32 0.0, %v1547
        %v1549 = vpop.f32.mrb[0].mxu0
        %v1550 = vadd.f32 0.0, %v1549
        %1551 = vdwg.mxu0
        %v1552 = vadd.f32 %v1342, %v1477
        %v1553 = vadd.f32 %v1343, %v1479
        %v1554 = vadd.f32 %v1344, %v1548
        %v1555 = vadd.f32 %v1345, %v1550
        %v1556 = vxor.u32 %v1552, 2147483648
        %v1557 = vxor.u32 %v1553, 2147483648
        %v1558 = vxor.u32 %v1554, 2147483648
        %v1559 = vmul.f32 %v1556, 1.442695
        %v1560 = vpow.pop %v1559
        %v1561 = vmul.f32 %v1557, 1.442695
        %v1562 = vpow.pop %v1561
        %v1563 = vmul.f32 %v1558, 1.442695
        %v1564 = vpow.pop %v1563
        %v1565 = vadd.f32 %v1560, 1.0
        %v1566 = vadd.f32 %v1562, 1.0
        %v1567 = vadd.f32 %v1564, 1.0
        %v1568 = vrcp.pop %v1565
        %v1569 = vmul.f32 1.0, %v1568
        %v1570 = vrcp.pop %v1566
        %v1571 = vmul.f32 1.0, %v1570
        %v1572 = vrcp.pop %v1567
        %v1573 = vmul.f32 1.0, %v1572
        %v1574 = vtanh.pop %v1555
        %v1575 = vmul.f32 %v1571, %v1336
        %v1576 = vmul.f32 %v1569, %v1574
        %v1577 = vadd.f32 %v1575, %v1576
        %v1578 = vtanh.pop %v1577
        %v1579 = vmul.f32 %v1573, %v1578
        %s1580 = scalar_lea.vmem [#allocation12], 16
        %1581 = vst [vmem:[%s1580] sm:$0xff] %v1579
        %s1582 = scalar_lea.vmem [#allocation2], 96
        %v1583 = vld [vmem:[%s1582] sm:$0xff]
        %v1584 = vld [vmem:[%s1582 + $0x8] sm:$0xff]
        %v1585 = vld [vmem:[%s1582 + $0x10] sm:$0xff]
        %v1586 = vld [vmem:[%s1582 + $0x18] sm:$0xff]
        %v1587 = vld [vmem:[%s394] sm:$0xff]
        %v1588 = vld [vmem:[%s394 + $0x8] sm:$0xff]
        %v1589 = vld [vmem:[%s394 + $0x10] sm:$0xff]
        %v1590 = vld [vmem:[%s394 + $0x18] sm:$0xff]
        %v1591 = vld [vmem:[%s394 + $0x20] sm:$0xff]
        %v1592 = vld [vmem:[%s394 + $0x28] sm:$0xff]
        %v1593 = vld [vmem:[%s394 + $0x30] sm:$0xff]
        %v1594 = vld [vmem:[%s394 + $0x38] sm:$0xff]
        %v1595 = vld [vmem:[%s394 + $0x40] sm:$0xff]
        %v1596 = vld [vmem:[%s394 + $0x48] sm:$0xff]
        %v1597 = vld [vmem:[%s394 + $0x50] sm:$0xff]
        %v1598 = vld [vmem:[%s394 + $0x58] sm:$0xff]
        %v1599 = vld [vmem:[%s394 + $0x60] sm:$0xff]
        %v1600 = vld [vmem:[%s394 + $0x68] sm:$0xff]
        %v1601 = vld [vmem:[%s394 + $0x70] sm:$0xff]
        %v1602 = vld [vmem:[%s394 + $0x78] sm:$0xff]
        %v1603 = vld [vmem:[%s394 + $0x80] sm:$0xff]
        %v1604 = vld [vmem:[%s394 + $0x88] sm:$0xff]
        %v1605 = vld [vmem:[%s394 + $0x90] sm:$0xff]
        %v1606 = vld [vmem:[%s394 + $0x98] sm:$0xff]
        %v1607 = vld [vmem:[%s394 + $0xa0] sm:$0xff]
        %v1608 = vld [vmem:[%s394 + $0xa8] sm:$0xff]
        %v1609 = vld [vmem:[%s394 + $0xb0] sm:$0xff]
        %v1610 = vld [vmem:[%s394 + $0xb8] sm:$0xff]
        %v1611 = vld [vmem:[%s394 + $0xc0] sm:$0xff]
        %v1612 = vld [vmem:[%s394 + $0xc8] sm:$0xff]
        %v1613 = vld [vmem:[%s394 + $0xd0] sm:$0xff]
        %v1614 = vld [vmem:[%s394 + $0xd8] sm:$0xff]
        %v1615 = vld [vmem:[%s394 + $0xe0] sm:$0xff]
        %v1616 = vld [vmem:[%s394 + $0xe8] sm:$0xff]
        %v1617 = vld [vmem:[%s394 + $0xf0] sm:$0xff]
        %v1618 = vld [vmem:[%s394 + $0xf8] sm:$0xff]
        %v1619 = vld [vmem:[%s394 + $0x100] sm:$0xff]
        %v1620 = vld [vmem:[%s394 + $0x108] sm:$0xff]
        %v1621 = vld [vmem:[%s394 + $0x110] sm:$0xff]
        %v1622 = vld [vmem:[%s394 + $0x118] sm:$0xff]
        %v1623 = vld [vmem:[%s394 + $0x120] sm:$0xff]
        %v1624 = vld [vmem:[%s394 + $0x128] sm:$0xff]
        %v1625 = vld [vmem:[%s394 + $0x130] sm:$0xff]
        %v1626 = vld [vmem:[%s394 + $0x138] sm:$0xff]
        %v1627 = vld [vmem:[%s394 + $0x140] sm:$0xff]
        %v1628 = vld [vmem:[%s394 + $0x148] sm:$0xff]
        %v1629 = vld [vmem:[%s394 + $0x150] sm:$0xff]
        %v1630 = vld [vmem:[%s394 + $0x158] sm:$0xff]
        %v1631 = vld [vmem:[%s394 + $0x160] sm:$0xff]
        %v1632 = vld [vmem:[%s394 + $0x168] sm:$0xff]
        %v1633 = vld [vmem:[%s394 + $0x170] sm:$0xff]
        %v1634 = vld [vmem:[%s394 + $0x178] sm:$0xff]
        %v1635 = vld [vmem:[%s394 + $0x180] sm:$0xff]
        %v1636 = vld [vmem:[%s394 + $0x188] sm:$0xff]
        %v1637 = vld [vmem:[%s394 + $0x190] sm:$0xff]
        %v1638 = vld [vmem:[%s394 + $0x198] sm:$0xff]
        %v1639 = vld [vmem:[%s394 + $0x1a0] sm:$0xff]
        %v1640 = vld [vmem:[%s394 + $0x1a8] sm:$0xff]
        %v1641 = vld [vmem:[%s394 + $0x1b0] sm:$0xff]
        %v1642 = vld [vmem:[%s394 + $0x1b8] sm:$0xff]
        %v1643 = vld [vmem:[%s394 + $0x1c0] sm:$0xff]
        %v1644 = vld [vmem:[%s394 + $0x1c8] sm:$0xff]
        %v1645 = vld [vmem:[%s394 + $0x1d0] sm:$0xff]
        %v1646 = vld [vmem:[%s394 + $0x1d8] sm:$0xff]
        %v1647 = vld [vmem:[%s394 + $0x1e0] sm:$0xff]
        %v1648 = vld [vmem:[%s394 + $0x1e8] sm:$0xff]
        %v1649 = vld [vmem:[%s394 + $0x1f0] sm:$0xff]
        %v1650 = vld [vmem:[%s394 + $0x1f8] sm:$0xff]
        %1651 = vmatprep.subr.mxu0 %v1588
        %1652 = vmatpush1.msra.mxu0 %v1587
        %1653 = vmatprep.subr.mxu0 %v1592
        %1654 = vmatpush1.msra.mxu0 %v1591
        %1655 = vmatprep.subr.mxu0 %v1596
        %1656 = vmatpush1.msra.mxu0 %v1595
        %1657 = vmatprep.subr.mxu0 %v1600
        %1658 = vmatpush1.msra.mxu0 %v1599
        %1659 = vmatprep.subr.mxu0 %v1604
        %1660 = vmatpush1.msra.mxu0 %v1603
        %1661 = vmatprep.subr.mxu0 %v1608
        %1662 = vmatpush1.msra.mxu0 %v1607
        %1663 = vmatprep.subr.mxu0 %v1612
        %1664 = vmatpush1.msra.mxu0 %v1611
        %1665 = vmatprep.subr.mxu0 %v1616
        %1666 = vmatpush1.msra.mxu0 %v1615
        %1667 = vmatprep.subr.mxu0 %v1620
        %1668 = vmatpush1.msra.mxu0 %v1619
        %1669 = vmatprep.subr.mxu0 %v1624
        %1670 = vmatpush1.msra.mxu0 %v1623
        %1671 = vmatprep.subr.mxu0 %v1628
        %1672 = vmatpush1.msra.mxu0 %v1627
        %1673 = vmatprep.subr.mxu0 %v1632
        %1674 = vmatpush1.msra.mxu0 %v1631
        %1675 = vmatprep.subr.mxu0 %v1636
        %1676 = vmatpush1.msra.mxu0 %v1635
        %1677 = vmatprep.subr.mxu0 %v1640
        %1678 = vmatpush1.msra.mxu0 %v1639
        %1679 = vmatprep.subr.mxu0 %v1644
        %1680 = vmatpush1.msra.mxu0 %v1643
        %1681 = vmatprep.subr.mxu0 %v1648
        %1682 = vmatpush1.msra.mxu0 %v1647
        %1683 = vmatprep.subr.mxu0 0.0
        %1684 = vmatpush1.msra.mxu0 0.0
        %1685 = vmatprep.subr.mxu0 0.0
        %1686 = vmatpush1.msra.mxu0 0.0
        %1687 = vmatprep.subr.mxu0 0.0
        %1688 = vmatpush1.msra.mxu0 0.0
        %1689 = vmatprep.subr.mxu0 0.0
        %1690 = vmatpush1.msra.mxu0 0.0
        %1691 = vmatprep.subr.mxu0 0.0
        %1692 = vmatpush1.msra.mxu0 0.0
        %1693 = vmatprep.subr.mxu0 0.0
        %1694 = vmatpush1.msra.mxu0 0.0
        %1695 = vmatprep.subr.mxu0 0.0
        %1696 = vmatpush1.msra.mxu0 0.0
        %1697 = vmatprep.subr.mxu0 0.0
        %1698 = vmatpush1.msra.mxu0 0.0
        %1699 = vmatprep.subr.mxu0 0.0
        %1700 = vmatpush1.msra.mxu0 0.0
        %1701 = vmatprep.subr.mxu0 0.0
        %1702 = vmatpush1.msra.mxu0 0.0
        %1703 = vmatprep.subr.mxu0 0.0
        %1704 = vmatpush1.msra.mxu0 0.0
        %1705 = vmatprep.subr.mxu0 0.0
        %1706 = vmatpush1.msra.mxu0 0.0
        %1707 = vmatprep.subr.mxu0 0.0
        %1708 = vmatpush1.msra.mxu0 0.0
        %1709 = vmatprep.subr.mxu0 0.0
        %1710 = vmatpush1.msra.mxu0 0.0
        %1711 = vmatprep.subr.mxu0 0.0
        %1712 = vmatpush1.msra.mxu0 0.0
        %1713 = vmatprep.subr.mxu0 0.0
        %1714 = vmatpush1.msra.mxu0 0.0
        %1715 = vmatprep.mubr.f32.mxu0 0.0
        %1716 = vmatmul.mubr.f32.gmra.mrb[0].mxu0 %v1579
        %v1717 = vpop.f32.mrb[0].mxu0
        %v1718 = vadd.f32 0.0, %v1717
        %v1719 = vpop.f32.mrb[0].mxu0
        %v1720 = vadd.f32 0.0, %v1719
        %1721 = vdwg.mxu0
        %1722 = vmatprep.subr.mxu0 %v1590
        %1723 = vmatpush1.msra.mxu0 %v1589
        %1724 = vmatprep.subr.mxu0 %v1594
        %1725 = vmatpush1.msra.mxu0 %v1593
        %1726 = vmatprep.subr.mxu0 %v1598
        %1727 = vmatpush1.msra.mxu0 %v1597
        %1728 = vmatprep.subr.mxu0 %v1602
        %1729 = vmatpush1.msra.mxu0 %v1601
        %1730 = vmatprep.subr.mxu0 %v1606
        %1731 = vmatpush1.msra.mxu0 %v1605
        %1732 = vmatprep.subr.mxu0 %v1610
        %1733 = vmatpush1.msra.mxu0 %v1609
        %1734 = vmatprep.subr.mxu0 %v1614
        %1735 = vmatpush1.msra.mxu0 %v1613
        %1736 = vmatprep.subr.mxu0 %v1618
        %1737 = vmatpush1.msra.mxu0 %v1617
        %1738 = vmatprep.subr.mxu0 %v1622
        %1739 = vmatpush1.msra.mxu0 %v1621
        %1740 = vmatprep.subr.mxu0 %v1626
        %1741 = vmatpush1.msra.mxu0 %v1625
        %1742 = vmatprep.subr.mxu0 %v1630
        %1743 = vmatpush1.msra.mxu0 %v1629
        %1744 = vmatprep.subr.mxu0 %v1634
        %1745 = vmatpush1.msra.mxu0 %v1633
        %1746 = vmatprep.subr.mxu0 %v1638
        %1747 = vmatpush1.msra.mxu0 %v1637
        %1748 = vmatprep.subr.mxu0 %v1642
        %1749 = vmatpush1.msra.mxu0 %v1641
        %1750 = vmatprep.subr.mxu0 %v1646
        %1751 = vmatpush1.msra.mxu0 %v1645
        %1752 = vmatprep.subr.mxu0 %v1650
        %1753 = vmatpush1.msra.mxu0 %v1649
        %1754 = vmatprep.subr.mxu0 0.0
        %1755 = vmatpush1.msra.mxu0 0.0
        %1756 = vmatprep.subr.mxu0 0.0
        %1757 = vmatpush1.msra.mxu0 0.0
        %1758 = vmatprep.subr.mxu0 0.0
        %1759 = vmatpush1.msra.mxu0 0.0
        %1760 = vmatprep.subr.mxu0 0.0
        %1761 = vmatpush1.msra.mxu0 0.0
        %1762 = vmatprep.subr.mxu0 0.0
        %1763 = vmatpush1.msra.mxu0 0.0
        %1764 = vmatprep.subr.mxu0 0.0
        %1765 = vmatpush1.msra.mxu0 0.0
        %1766 = vmatprep.subr.mxu0 0.0
        %1767 = vmatpush1.msra.mxu0 0.0
        %1768 = vmatprep.subr.mxu0 0.0
        %1769 = vmatpush1.msra.mxu0 0.0
        %1770 = vmatprep.subr.mxu0 0.0
        %1771 = vmatpush1.msra.mxu0 0.0
        %1772 = vmatprep.subr.mxu0 0.0
        %1773 = vmatpush1.msra.mxu0 0.0
        %1774 = vmatprep.subr.mxu0 0.0
        %1775 = vmatpush1.msra.mxu0 0.0
        %1776 = vmatprep.subr.mxu0 0.0
        %1777 = vmatpush1.msra.mxu0 0.0
        %1778 = vmatprep.subr.mxu0 0.0
        %1779 = vmatpush1.msra.mxu0 0.0
        %1780 = vmatprep.subr.mxu0 0.0
        %1781 = vmatpush1.msra.mxu0 0.0
        %1782 = vmatprep.subr.mxu0 0.0
        %1783 = vmatpush1.msra.mxu0 0.0
        %1784 = vmatprep.subr.mxu0 0.0
        %1785 = vmatpush1.msra.mxu0 0.0
        %1786 = vmatprep.mubr.f32.mxu0 0.0
        %1787 = vmatmul.mubr.f32.gmra.mrb[0].mxu0 %v1579
        %v1788 = vpop.f32.mrb[0].mxu0
        %v1789 = vadd.f32 0.0, %v1788
        %v1790 = vpop.f32.mrb[0].mxu0
        %v1791 = vadd.f32 0.0, %v1790
        %1792 = vdwg.mxu0
        %v1793 = vadd.f32 %v1583, %v1718
        %v1794 = vadd.f32 %v1584, %v1720
        %v1795 = vadd.f32 %v1585, %v1789
        %v1796 = vadd.f32 %v1586, %v1791
        %v1797 = vxor.u32 %v1793, 2147483648
        %v1798 = vxor.u32 %v1794, 2147483648
        %v1799 = vxor.u32 %v1795, 2147483648
        %v1800 = vmul.f32 %v1797, 1.442695
        %v1801 = vpow.pop %v1800
        %v1802 = vmul.f32 %v1798, 1.442695
        %v1803 = vpow.pop %v1802
        %v1804 = vmul.f32 %v1799, 1.442695
        %v1805 = vpow.pop %v1804
        %v1806 = vadd.f32 %v1801, 1.0
        %v1807 = vadd.f32 %v1803, 1.0
        %v1808 = vadd.f32 %v1805, 1.0
        %v1809 = vrcp.pop %v1806
        %v1810 = vmul.f32 1.0, %v1809
        %v1811 = vrcp.pop %v1807
        %v1812 = vmul.f32 1.0, %v1811
        %v1813 = vrcp.pop %v1808
        %v1814 = vmul.f32 1.0, %v1813
        %v1815 = vtanh.pop %v1796
        %v1816 = vmul.f32 %v1812, %v1577
        %v1817 = vmul.f32 %v1810, %v1815
        %v1818 = vadd.f32 %v1816, %v1817
        %v1819 = vtanh.pop %v1818
        %v1820 = vmul.f32 %v1814, %v1819
        %s1821 = scalar_lea.vmem [#allocation12], 24
        %1822 = vst [vmem:[%s1821] sm:$0xff] %v1820
        %s1823 = scalar_lea.vmem [#allocation2], 128
        %v1824 = vld [vmem:[%s1823] sm:$0xff]
        %v1825 = vld [vmem:[%s1823 + $0x8] sm:$0xff]
        %v1826 = vld [vmem:[%s1823 + $0x10] sm:$0xff]
        %v1827 = vld [vmem:[%s1823 + $0x18] sm:$0xff]
        %v1828 = vld [vmem:[%s394] sm:$0xff]
        %v1829 = vld [vmem:[%s394 + $0x8] sm:$0xff]
        %v1830 = vld [vmem:[%s394 + $0x10] sm:$0xff]
        %v1831 = vld [vmem:[%s394 + $0x18] sm:$0xff]
        %v1832 = vld [vmem:[%s394 + $0x20] sm:$0xff]
        %v1833 = vld [vmem:[%s394 + $0x28] sm:$0xff]
        %v1834 = vld [vmem:[%s394 + $0x30] sm:$0xff]
        %v1835 = vld [vmem:[%s394 + $0x38] sm:$0xff]
        %v1836 = vld [vmem:[%s394 + $0x40] sm:$0xff]
        %v1837 = vld [vmem:[%s394 + $0x48] sm:$0xff]
        %v1838 = vld [vmem:[%s394 + $0x50] sm:$0xff]
        %v1839 = vld [vmem:[%s394 + $0x58] sm:$0xff]
        %v1840 = vld [vmem:[%s394 + $0x60] sm:$0xff]
        %v1841 = vld [vmem:[%s394 + $0x68] sm:$0xff]
        %v1842 = vld [vmem:[%s394 + $0x70] sm:$0xff]
        %v1843 = vld [vmem:[%s394 + $0x78] sm:$0xff]
        %v1844 = vld [vmem:[%s394 + $0x80] sm:$0xff]
        %v1845 = vld [vmem:[%s394 + $0x88] sm:$0xff]
        %v1846 = vld [vmem:[%s394 + $0x90] sm:$0xff]
        %v1847 = vld [vmem:[%s394 + $0x98] sm:$0xff]
        %v1848 = vld [vmem:[%s394 + $0xa0] sm:$0xff]
        %v1849 = vld [vmem:[%s394 + $0xa8] sm:$0xff]
        %v1850 = vld [vmem:[%s394 + $0xb0] sm:$0xff]
        %v1851 = vld [vmem:[%s394 + $0xb8] sm:$0xff]
        %v1852 = vld [vmem:[%s394 + $0xc0] sm:$0xff]
        %v1853 = vld [vmem:[%s394 + $0xc8] sm:$0xff]
        %v1854 = vld [vmem:[%s394 + $0xd0] sm:$0xff]
        %v1855 = vld [vmem:[%s394 + $0xd8] sm:$0xff]
        %v1856 = vld [vmem:[%s394 + $0xe0] sm:$0xff]
        %v1857 = vld [vmem:[%s394 + $0xe8] sm:$0xff]
        %v1858 = vld [vmem:[%s394 + $0xf0] sm:$0xff]
        %v1859 = vld [vmem:[%s394 + $0xf8] sm:$0xff]
        %v1860 = vld [vmem:[%s394 + $0x100] sm:$0xff]
        %v1861 = vld [vmem:[%s394 + $0x108] sm:$0xff]
        %v1862 = vld [vmem:[%s394 + $0x110] sm:$0xff]
        %v1863 = vld [vmem:[%s394 + $0x118] sm:$0xff]
        %v1864 = vld [vmem:[%s394 + $0x120] sm:$0xff]
        %v1865 = vld [vmem:[%s394 + $0x128] sm:$0xff]
        %v1866 = vld [vmem:[%s394 + $0x130] sm:$0xff]
        %v1867 = vld [vmem:[%s394 + $0x138] sm:$0xff]
        %v1868 = vld [vmem:[%s394 + $0x140] sm:$0xff]
        %v1869 = vld [vmem:[%s394 + $0x148] sm:$0xff]
        %v1870 = vld [vmem:[%s394 + $0x150] sm:$0xff]
        %v1871 = vld [vmem:[%s394 + $0x158] sm:$0xff]
        %v1872 = vld [vmem:[%s394 + $0x160] sm:$0xff]
        %v1873 = vld [vmem:[%s394 + $0x168] sm:$0xff]
        %v1874 = vld [vmem:[%s394 + $0x170] sm:$0xff]
        %v1875 = vld [vmem:[%s394 + $0x178] sm:$0xff]
        %v1876 = vld [vmem:[%s394 + $0x180] sm:$0xff]
        %v1877 = vld [vmem:[%s394 + $0x188] sm:$0xff]
        %v1878 = vld [vmem:[%s394 + $0x190] sm:$0xff]
        %v1879 = vld [vmem:[%s394 + $0x198] sm:$0xff]
        %v1880 = vld [vmem:[%s394 + $0x1a0] sm:$0xff]
        %v1881 = vld [vmem:[%s394 + $0x1a8] sm:$0xff]
        %v1882 = vld [vmem:[%s394 + $0x1b0] sm:$0xff]
        %v1883 = vld [vmem:[%s394 + $0x1b8] sm:$0xff]
        %v1884 = vld [vmem:[%s394 + $0x1c0] sm:$0xff]
        %v1885 = vld [vmem:[%s394 + $0x1c8] sm:$0xff]
        %v1886 = vld [vmem:[%s394 + $0x1d0] sm:$0xff]
        %v1887 = vld [vmem:[%s394 + $0x1d8] sm:$0xff]
        %v1888 = vld [vmem:[%s394 + $0x1e0] sm:$0xff]
        %v1889 = vld [vmem:[%s394 + $0x1e8] sm:$0xff]
        %v1890 = vld [vmem:[%s394 + $0x1f0] sm:$0xff]
        %v1891 = vld [vmem:[%s394 + $0x1f8] sm:$0xff]
        %1892 = vmatprep.subr.mxu0 %v1829
        %1893 = vmatpush1.msra.mxu0 %v1828
        %1894 = vmatprep.subr.mxu0 %v1833
        %1895 = vmatpush1.msra.mxu0 %v1832
        %1896 = vmatprep.subr.mxu0 %v1837
        %1897 = vmatpush1.msra.mxu0 %v1836
        %1898 = vmatprep.subr.mxu0 %v1841
        %1899 = vmatpush1.msra.mxu0 %v1840
        %1900 = vmatprep.subr.mxu0 %v1845
        %1901 = vmatpush1.msra.mxu0 %v1844
        %1902 = vmatprep.subr.mxu0 %v1849
        %1903 = vmatpush1.msra.mxu0 %v1848
        %1904 = vmatprep.subr.mxu0 %v1853
        %1905 = vmatpush1.msra.mxu0 %v1852
        %1906 = vmatprep.subr.mxu0 %v1857
        %1907 = vmatpush1.msra.mxu0 %v1856
        %1908 = vmatprep.subr.mxu0 %v1861
        %1909 = vmatpush1.msra.mxu0 %v1860
        %1910 = vmatprep.subr.mxu0 %v1865
        %1911 = vmatpush1.msra.mxu0 %v1864
        %1912 = vmatprep.subr.mxu0 %v1869
        %1913 = vmatpush1.msra.mxu0 %v1868
        %1914 = vmatprep.subr.mxu0 %v1873
        %1915 = vmatpush1.msra.mxu0 %v1872
        %1916 = vmatprep.subr.mxu0 %v1877
        %1917 = vmatpush1.msra.mxu0 %v1876
        %1918 = vmatprep.subr.mxu0 %v1881
        %1919 = vmatpush1.msra.mxu0 %v1880
        %1920 = vmatprep.subr.mxu0 %v1885
        %1921 = vmatpush1.msra.mxu0 %v1884
        %1922 = vmatprep.subr.mxu0 %v1889
        %1923 = vmatpush1.msra.mxu0 %v1888
        %1924 = vmatprep.subr.mxu0 0.0
        %1925 = vmatpush1.msra.mxu0 0.0
        %1926 = vmatprep.subr.mxu0 0.0
        %1927 = vmatpush1.msra.mxu0 0.0
        %1928 = vmatprep.subr.mxu0 0.0
        %1929 = vmatpush1.msra.mxu0 0.0
        %1930 = vmatprep.subr.mxu0 0.0
        %1931 = vmatpush1.msra.mxu0 0.0
        %1932 = vmatprep.subr.mxu0 0.0
        %1933 = vmatpush1.msra.mxu0 0.0
        %1934 = vmatprep.subr.mxu0 0.0
        %1935 = vmatpush1.msra.mxu0 0.0
        %1936 = vmatprep.subr.mxu0 0.0
        %1937 = vmatpush1.msra.mxu0 0.0
        %1938 = vmatprep.subr.mxu0 0.0
        %1939 = vmatpush1.msra.mxu0 0.0
        %1940 = vmatprep.subr.mxu0 0.0
        %1941 = vmatpush1.msra.mxu0 0.0
        %1942 = vmatprep.subr.mxu0 0.0
        %1943 = vmatpush1.msra.mxu0 0.0
        %1944 = vmatprep.subr.mxu0 0.0
        %1945 = vmatpush1.msra.mxu0 0.0
        %1946 = vmatprep.subr.mxu0 0.0
        %1947 = vmatpush1.msra.mxu0 0.0
        %1948 = vmatprep.subr.mxu0 0.0
        %1949 = vmatpush1.msra.mxu0 0.0
        %1950 = vmatprep.subr.mxu0 0.0
        %1951 = vmatpush1.msra.mxu0 0.0
        %1952 = vmatprep.subr.mxu0 0.0
        %1953 = vmatpush1.msra.mxu0 0.0
        %1954 = vmatprep.subr.mxu0 0.0
        %1955 = vmatpush1.msra.mxu0 0.0
        %1956 = vmatprep.mubr.f32.mxu0 0.0
        %1957 = vmatmul.mubr.f32.gmra.mrb[0].mxu0 %v1820
        %v1958 = vpop.f32.mrb[0].mxu0
        %v1959 = vadd.f32 0.0, %v1958
        %v1960 = vpop.f32.mrb[0].mxu0
        %v1961 = vadd.f32 0.0, %v1960
        %1962 = vdwg.mxu0
        %1963 = vmatprep.subr.mxu0 %v1831
        %1964 = vmatpush1.msra.mxu0 %v1830
        %1965 = vmatprep.subr.mxu0 %v1835
        %1966 = vmatpush1.msra.mxu0 %v1834
        %1967 = vmatprep.subr.mxu0 %v1839
        %1968 = vmatpush1.msra.mxu0 %v1838
        %1969 = vmatprep.subr.mxu0 %v1843
        %1970 = vmatpush1.msra.mxu0 %v1842
        %1971 = vmatprep.subr.mxu0 %v1847
        %1972 = vmatpush1.msra.mxu0 %v1846
        %1973 = vmatprep.subr.mxu0 %v1851
        %1974 = vmatpush1.msra.mxu0 %v1850
        %1975 = vmatprep.subr.mxu0 %v1855
        %1976 = vmatpush1.msra.mxu0 %v1854
        %1977 = vmatprep.subr.mxu0 %v1859
        %1978 = vmatpush1.msra.mxu0 %v1858
        %1979 = vmatprep.subr.mxu0 %v1863
        %1980 = vmatpush1.msra.mxu0 %v1862
        %1981 = vmatprep.subr.mxu0 %v1867
        %1982 = vmatpush1.msra.mxu0 %v1866
        %1983 = vmatprep.subr.mxu0 %v1871
        %1984 = vmatpush1.msra.mxu0 %v1870
        %1985 = vmatprep.subr.mxu0 %v1875
        %1986 = vmatpush1.msra.mxu0 %v1874
        %1987 = vmatprep.subr.mxu0 %v1879
        %1988 = vmatpush1.msra.mxu0 %v1878
        %1989 = vmatprep.subr.mxu0 %v1883
        %1990 = vmatpush1.msra.mxu0 %v1882
        %1991 = vmatprep.subr.mxu0 %v1887
        %1992 = vmatpush1.msra.mxu0 %v1886
        %1993 = vmatprep.subr.mxu0 %v1891
        %1994 = vmatpush1.msra.mxu0 %v1890
        %1995 = vmatprep.subr.mxu0 0.0
        %1996 = vmatpush1.msra.mxu0 0.0
        %1997 = vmatprep.subr.mxu0 0.0
        %1998 = vmatpush1.msra.mxu0 0.0
        %1999 = vmatprep.subr.mxu0 0.0
        %2000 = vmatpush1.msra.mxu0 0.0
        %2001 = vmatprep.subr.mxu0 0.0
        %2002 = vmatpush1.msra.mxu0 0.0
        %2003 = vmatprep.subr.mxu0 0.0
        %2004 = vmatpush1.msra.mxu0 0.0
        %2005 = vmatprep.subr.mxu0 0.0
        %2006 = vmatpush1.msra.mxu0 0.0
        %2007 = vmatprep.subr.mxu0 0.0
        %2008 = vmatpush1.msra.mxu0 0.0
        %2009 = vmatprep.subr.mxu0 0.0
        %2010 = vmatpush1.msra.mxu0 0.0
        %2011 = vmatprep.subr.mxu0 0.0
        %2012 = vmatpush1.msra.mxu0 0.0
        %2013 = vmatprep.subr.mxu0 0.0
        %2014 = vmatpush1.msra.mxu0 0.0
        %2015 = vmatprep.subr.mxu0 0.0
        %2016 = vmatpush1.msra.mxu0 0.0
        %2017 = vmatprep.subr.mxu0 0.0
        %2018 = vmatpush1.msra.mxu0 0.0
        %2019 = vmatprep.subr.mxu0 0.0
        %2020 = vmatpush1.msra.mxu0 0.0
        %2021 = vmatprep.subr.mxu0 0.0
        %2022 = vmatpush1.msra.mxu0 0.0
        %2023 = vmatprep.subr.mxu0 0.0
        %2024 = vmatpush1.msra.mxu0 0.0
        %2025 = vmatprep.subr.mxu0 0.0
        %2026 = vmatpush1.msra.mxu0 0.0
        %2027 = vmatprep.mubr.f32.mxu0 0.0
        %2028 = vmatmul.mubr.f32.gmra.mrb[0].mxu0 %v1820
        %v2029 = vpop.f32.mrb[0].mxu0
        %v2030 = vadd.f32 0.0, %v2029
        %v2031 = vpop.f32.mrb[0].mxu0
        %v2032 = vadd.f32 0.0, %v2031
        %2033 = vdwg.mxu0
        %v2034 = vadd.f32 %v1824, %v1959
        %v2035 = vadd.f32 %v1825, %v1961
        %v2036 = vadd.f32 %v1826, %v2030
        %v2037 = vadd.f32 %v1827, %v2032
        %v2038 = vxor.u32 %v2034, 2147483648
        %v2039 = vxor.u32 %v2035, 2147483648
        %v2040 = vxor.u32 %v2036, 2147483648
        %v2041 = vmul.f32 %v2038, 1.442695
        %v2042 = vpow.pop %v2041
        %v2043 = vmul.f32 %v2039, 1.442695
        %v2044 = vpow.pop %v2043
        %v2045 = vmul.f32 %v2040, 1.442695
        %v2046 = vpow.pop %v2045
        %v2047 = vadd.f32 %v2042, 1.0
        %v2048 = vadd.f32 %v2044, 1.0
        %v2049 = vadd.f32 %v2046, 1.0
        %v2050 = vrcp.pop %v2047
        %v2051 = vmul.f32 1.0, %v2050
        %v2052 = vrcp.pop %v2048
        %v2053 = vmul.f32 1.0, %v2052
        %v2054 = vrcp.pop %v2049
        %v2055 = vmul.f32 1.0, %v2054
        %v2056 = vtanh.pop %v2037
        %v2057 = vmul.f32 %v2053, %v1818
        %v2058 = vmul.f32 %v2051, %v2056
        %v2059 = vadd.f32 %v2057, %v2058
        %v2060 = vtanh.pop %v2059
        %v2061 = vmul.f32 %v2055, %v2060
        %s2062 = scalar_lea.vmem [#allocation12], 32
        %2063 = vst [vmem:[%s2062] sm:$0xff] %v2061
        %s2064 = scalar_lea.vmem [#allocation2], 160
        %v2065 = vld [vmem:[%s2064] sm:$0xff]
        %v2066 = vld [vmem:[%s2064 + $0x8] sm:$0xff]
        %v2067 = vld [vmem:[%s2064 + $0x10] sm:$0xff]
        %v2068 = vld [vmem:[%s2064 + $0x18] sm:$0xff]
        %v2069 = vld [vmem:[%s394] sm:$0xff]
        %v2070 = vld [vmem:[%s394 + $0x8] sm:$0xff]
        %v2071 = vld [vmem:[%s394 + $0x10] sm:$0xff]
        %v2072 = vld [vmem:[%s394 + $0x18] sm:$0xff]
        %v2073 = vld [vmem:[%s394 + $0x20] sm:$0xff]
        %v2074 = vld [vmem:[%s394 + $0x28] sm:$0xff]
        %v2075 = vld [vmem:[%s394 + $0x30] sm:$0xff]
        %v2076 = vld [vmem:[%s394 + $0x38] sm:$0xff]
        %v2077 = vld [vmem:[%s394 + $0x40] sm:$0xff]
        %v2078 = vld [vmem:[%s394 + $0x48] sm:$0xff]
        %v2079 = vld [vmem:[%s394 + $0x50] sm:$0xff]
        %v2080 = vld [vmem:[%s394 + $0x58] sm:$0xff]
        %v2081 = vld [vmem:[%s394 + $0x60] sm:$0xff]
        %v2082 = vld [vmem:[%s394 + $0x68] sm:$0xff]
        %v2083 = vld [vmem:[%s394 + $0x70] sm:$0xff]
        %v2084 = vld [vmem:[%s394 + $0x78] sm:$0xff]
        %v2085 = vld [vmem:[%s394 + $0x80] sm:$0xff]
        %v2086 = vld [vmem:[%s394 + $0x88] sm:$0xff]
        %v2087 = vld [vmem:[%s394 + $0x90] sm:$0xff]
        %v2088 = vld [vmem:[%s394 + $0x98] sm:$0xff]
        %v2089 = vld [vmem:[%s394 + $0xa0] sm:$0xff]
        %v2090 = vld [vmem:[%s394 + $0xa8] sm:$0xff]
        %v2091 = vld [vmem:[%s394 + $0xb0] sm:$0xff]
        %v2092 = vld [vmem:[%s394 + $0xb8] sm:$0xff]
        %v2093 = vld [vmem:[%s394 + $0xc0] sm:$0xff]
        %v2094 = vld [vmem:[%s394 + $0xc8] sm:$0xff]
        %v2095 = vld [vmem:[%s394 + $0xd0] sm:$0xff]
        %v2096 = vld [vmem:[%s394 + $0xd8] sm:$0xff]
        %v2097 = vld [vmem:[%s394 + $0xe0] sm:$0xff]
        %v2098 = vld [vmem:[%s394 + $0xe8] sm:$0xff]
        %v2099 = vld [vmem:[%s394 + $0xf0] sm:$0xff]
        %v2100 = vld [vmem:[%s394 + $0xf8] sm:$0xff]
        %v2101 = vld [vmem:[%s394 + $0x100] sm:$0xff]
        %v2102 = vld [vmem:[%s394 + $0x108] sm:$0xff]
        %v2103 = vld [vmem:[%s394 + $0x110] sm:$0xff]
        %v2104 = vld [vmem:[%s394 + $0x118] sm:$0xff]
        %v2105 = vld [vmem:[%s394 + $0x120] sm:$0xff]
        %v2106 = vld [vmem:[%s394 + $0x128] sm:$0xff]
        %v2107 = vld [vmem:[%s394 + $0x130] sm:$0xff]
        %v2108 = vld [vmem:[%s394 + $0x138] sm:$0xff]
        %v2109 = vld [vmem:[%s394 + $0x140] sm:$0xff]
        %v2110 = vld [vmem:[%s394 + $0x148] sm:$0xff]
        %v2111 = vld [vmem:[%s394 + $0x150] sm:$0xff]
        %v2112 = vld [vmem:[%s394 + $0x158] sm:$0xff]
        %v2113 = vld [vmem:[%s394 + $0x160] sm:$0xff]
        %v2114 = vld [vmem:[%s394 + $0x168] sm:$0xff]
        %v2115 = vld [vmem:[%s394 + $0x170] sm:$0xff]
        %v2116 = vld [vmem:[%s394 + $0x178] sm:$0xff]
        %v2117 = vld [vmem:[%s394 + $0x180] sm:$0xff]
        %v2118 = vld [vmem:[%s394 + $0x188] sm:$0xff]
        %v2119 = vld [vmem:[%s394 + $0x190] sm:$0xff]
        %v2120 = vld [vmem:[%s394 + $0x198] sm:$0xff]
        %v2121 = vld [vmem:[%s394 + $0x1a0] sm:$0xff]
        %v2122 = vld [vmem:[%s394 + $0x1a8] sm:$0xff]
        %v2123 = vld [vmem:[%s394 + $0x1b0] sm:$0xff]
        %v2124 = vld [vmem:[%s394 + $0x1b8] sm:$0xff]
        %v2125 = vld [vmem:[%s394 + $0x1c0] sm:$0xff]
        %v2126 = vld [vmem:[%s394 + $0x1c8] sm:$0xff]
        %v2127 = vld [vmem:[%s394 + $0x1d0] sm:$0xff]
        %v2128 = vld [vmem:[%s394 + $0x1d8] sm:$0xff]
        %v2129 = vld [vmem:[%s394 + $0x1e0] sm:$0xff]
        %v2130 = vld [vmem:[%s394 + $0x1e8] sm:$0xff]
        %v2131 = vld [vmem:[%s394 + $0x1f0] sm:$0xff]
        %v2132 = vld [vmem:[%s394 + $0x1f8] sm:$0xff]
        %2133 = vmatprep.subr.mxu0 %v2070
        %2134 = vmatpush1.msra.mxu0 %v2069
        %2135 = vmatprep.subr.mxu0 %v2074
        %2136 = vmatpush1.msra.mxu0 %v2073
        %2137 = vmatprep.subr.mxu0 %v2078
        %2138 = vmatpush1.msra.mxu0 %v2077
        %2139 = vmatprep.subr.mxu0 %v2082
        %2140 = vmatpush1.msra.mxu0 %v2081
        %2141 = vmatprep.subr.mxu0 %v2086
        %2142 = vmatpush1.msra.mxu0 %v2085
        %2143 = vmatprep.subr.mxu0 %v2090
        %2144 = vmatpush1.msra.mxu0 %v2089
        %2145 = vmatprep.subr.mxu0 %v2094
        %2146 = vmatpush1.msra.mxu0 %v2093
        %2147 = vmatprep.subr.mxu0 %v2098
        %2148 = vmatpush1.msra.mxu0 %v2097
        %2149 = vmatprep.subr.mxu0 %v2102
        %2150 = vmatpush1.msra.mxu0 %v2101
        %2151 = vmatprep.subr.mxu0 %v2106
        %2152 = vmatpush1.msra.mxu0 %v2105
        %2153 = vmatprep.subr.mxu0 %v2110
        %2154 = vmatpush1.msra.mxu0 %v2109
        %2155 = vmatprep.subr.mxu0 %v2114
        %2156 = vmatpush1.msra.mxu0 %v2113
        %2157 = vmatprep.subr.mxu0 %v2118
        %2158 = vmatpush1.msra.mxu0 %v2117
        %2159 = vmatprep.subr.mxu0 %v2122
        %2160 = vmatpush1.msra.mxu0 %v2121
        %2161 = vmatprep.subr.mxu0 %v2126
        %2162 = vmatpush1.msra.mxu0 %v2125
        %2163 = vmatprep.subr.mxu0 %v2130
        %2164 = vmatpush1.msra.mxu0 %v2129
        %2165 = vmatprep.subr.mxu0 0.0
        %2166 = vmatpush1.msra.mxu0 0.0
        %2167 = vmatprep.subr.mxu0 0.0
        %2168 = vmatpush1.msra.mxu0 0.0
        %2169 = vmatprep.subr.mxu0 0.0
        %2170 = vmatpush1.msra.mxu0 0.0
        %2171 = vmatprep.subr.mxu0 0.0
        %2172 = vmatpush1.msra.mxu0 0.0
        %2173 = vmatprep.subr.mxu0 0.0
        %2174 = vmatpush1.msra.mxu0 0.0
        %2175 = vmatprep.subr.mxu0 0.0
        %2176 = vmatpush1.msra.mxu0 0.0
        %2177 = vmatprep.subr.mxu0 0.0
        %2178 = vmatpush1.msra.mxu0 0.0
        %2179 = vmatprep.subr.mxu0 0.0
        %2180 = vmatpush1.msra.mxu0 0.0
        %2181 = vmatprep.subr.mxu0 0.0
        %2182 = vmatpush1.msra.mxu0 0.0
        %2183 = vmatprep.subr.mxu0 0.0
        %2184 = vmatpush1.msra.mxu0 0.0
        %2185 = vmatprep.subr.mxu0 0.0
        %2186 = vmatpush1.msra.mxu0 0.0
        %2187 = vmatprep.subr.mxu0 0.0
        %2188 = vmatpush1.msra.mxu0 0.0
        %2189 = vmatprep.subr.mxu0 0.0
        %2190 = vmatpush1.msra.mxu0 0.0
        %2191 = vmatprep.subr.mxu0 0.0
        %2192 = vmatpush1.msra.mxu0 0.0
        %2193 = vmatprep.subr.mxu0 0.0
        %2194 = vmatpush1.msra.mxu0 0.0
        %2195 = vmatprep.subr.mxu0 0.0
        %2196 = vmatpush1.msra.mxu0 0.0
        %2197 = vmatprep.mubr.f32.mxu0 0.0
        %2198 = vmatmul.mubr.f32.gmra.mrb[0].mxu0 %v2061
        %v2199 = vpop.f32.mrb[0].mxu0
        %v2200 = vadd.f32 0.0, %v2199
        %v2201 = vpop.f32.mrb[0].mxu0
        %v2202 = vadd.f32 0.0, %v2201
        %2203 = vdwg.mxu0
        %2204 = vmatprep.subr.mxu0 %v2072
        %2205 = vmatpush1.msra.mxu0 %v2071
        %2206 = vmatprep.subr.mxu0 %v2076
        %2207 = vmatpush1.msra.mxu0 %v2075
        %2208 = vmatprep.subr.mxu0 %v2080
        %2209 = vmatpush1.msra.mxu0 %v2079
        %2210 = vmatprep.subr.mxu0 %v2084
        %2211 = vmatpush1.msra.mxu0 %v2083
        %2212 = vmatprep.subr.mxu0 %v2088
        %2213 = vmatpush1.msra.mxu0 %v2087
        %2214 = vmatprep.subr.mxu0 %v2092
        %2215 = vmatpush1.msra.mxu0 %v2091
        %2216 = vmatprep.subr.mxu0 %v2096
        %2217 = vmatpush1.msra.mxu0 %v2095
        %2218 = vmatprep.subr.mxu0 %v2100
        %2219 = vmatpush1.msra.mxu0 %v2099
        %2220 = vmatprep.subr.mxu0 %v2104
        %2221 = vmatpush1.msra.mxu0 %v2103
        %2222 = vmatprep.subr.mxu0 %v2108
        %2223 = vmatpush1.msra.mxu0 %v2107
        %2224 = vmatprep.subr.mxu0 %v2112
        %2225 = vmatpush1.msra.mxu0 %v2111
        %2226 = vmatprep.subr.mxu0 %v2116
        %2227 = vmatpush1.msra.mxu0 %v2115
        %2228 = vmatprep.subr.mxu0 %v2120
        %2229 = vmatpush1.msra.mxu0 %v2119
        %2230 = vmatprep.subr.mxu0 %v2124
        %2231 = vmatpush1.msra.mxu0 %v2123
        %2232 = vmatprep.subr.mxu0 %v2128
        %2233 = vmatpush1.msra.mxu0 %v2127
        %2234 = vmatprep.subr.mxu0 %v2132
        %2235 = vmatpush1.msra.mxu0 %v2131
        %2236 = vmatprep.subr.mxu0 0.0
        %2237 = vmatpush1.msra.mxu0 0.0
        %2238 = vmatprep.subr.mxu0 0.0
        %2239 = vmatpush1.msra.mxu0 0.0
        %2240 = vmatprep.subr.mxu0 0.0
        %2241 = vmatpush1.msra.mxu0 0.0
        %2242 = vmatprep.subr.mxu0 0.0
        %2243 = vmatpush1.msra.mxu0 0.0
        %2244 = vmatprep.subr.mxu0 0.0
        %2245 = vmatpush1.msra.mxu0 0.0
        %2246 = vmatprep.subr.mxu0 0.0
        %2247 = vmatpush1.msra.mxu0 0.0
        %2248 = vmatprep.subr.mxu0 0.0
        %2249 = vmatpush1.msra.mxu0 0.0
        %2250 = vmatprep.subr.mxu0 0.0
        %2251 = vmatpush1.msra.mxu0 0.0
        %2252 = vmatprep.subr.mxu0 0.0
        %2253 = vmatpush1.msra.mxu0 0.0
        %2254 = vmatprep.subr.mxu0 0.0
        %2255 = vmatpush1.msra.mxu0 0.0
        %2256 = vmatprep.subr.mxu0 0.0
        %2257 = vmatpush1.msra.mxu0 0.0
        %2258 = vmatprep.subr.mxu0 0.0
        %2259 = vmatpush1.msra.mxu0 0.0
        %2260 = vmatprep.subr.mxu0 0.0
        %2261 = vmatpush1.msra.mxu0 0.0
        %2262 = vmatprep.subr.mxu0 0.0
        %2263 = vmatpush1.msra.mxu0 0.0
        %2264 = vmatprep.subr.mxu0 0.0
        %2265 = vmatpush1.msra.mxu0 0.0
        %2266 = vmatprep.subr.mxu0 0.0
        %2267 = vmatpush1.msra.mxu0 0.0
        %2268 = vmatprep.mubr.f32.mxu0 0.0
        %2269 = vmatmul.mubr.f32.gmra.mrb[0].mxu0 %v2061
        %v2270 = vpop.f32.mrb[0].mxu0
        %v2271 = vadd.f32 0.0, %v2270
        %v2272 = vpop.f32.mrb[0].mxu0
        %v2273 = vadd.f32 0.0, %v2272
        %2274 = vdwg.mxu0
        %v2275 = vadd.f32 %v2065, %v2200
        %v2276 = vadd.f32 %v2066, %v2202
        %v2277 = vadd.f32 %v2067, %v2271
        %v2278 = vadd.f32 %v2068, %v2273
        %v2279 = vxor.u32 %v2275, 2147483648
        %v2280 = vxor.u32 %v2276, 2147483648
        %v2281 = vxor.u32 %v2277, 2147483648
        %v2282 = vmul.f32 %v2279, 1.442695
        %v2283 = vpow.pop %v2282
        %v2284 = vmul.f32 %v2280, 1.442695
        %v2285 = vpow.pop %v2284
        %v2286 = vmul.f32 %v2281, 1.442695
        %v2287 = vpow.pop %v2286
        %v2288 = vadd.f32 %v2283, 1.0
        %v2289 = vadd.f32 %v2285, 1.0
        %v2290 = vadd.f32 %v2287, 1.0
        %v2291 = vrcp.pop %v2288
        %v2292 = vmul.f32 1.0, %v2291
        %v2293 = vrcp.pop %v2289
        %v2294 = vmul.f32 1.0, %v2293
        %v2295 = vrcp.pop %v2290
        %v2296 = vmul.f32 1.0, %v2295
        %v2297 = vtanh.pop %v2278
        %v2298 = vmul.f32 %v2294, %v2059
        %v2299 = vmul.f32 %v2292, %v2297
        %v2300 = vadd.f32 %v2298, %v2299
        %v2301 = vtanh.pop %v2300
        %v2302 = vmul.f32 %v2296, %v2301
        %s2303 = scalar_lea.vmem [#allocation12], 40
        %2304 = vst [vmem:[%s2303] sm:$0xff] %v2302
        %s2305 = scalar_lea.vmem [#allocation2], 192
        %v2306 = vld [vmem:[%s2305] sm:$0xff]
        %v2307 = vld [vmem:[%s2305 + $0x8] sm:$0xff]
        %v2308 = vld [vmem:[%s2305 + $0x10] sm:$0xff]
        %v2309 = vld [vmem:[%s2305 + $0x18] sm:$0xff]
        %v2310 = vld [vmem:[%s394] sm:$0xff]
        %v2311 = vld [vmem:[%s394 + $0x8] sm:$0xff]
        %v2312 = vld [vmem:[%s394 + $0x10] sm:$0xff]
        %v2313 = vld [vmem:[%s394 + $0x18] sm:$0xff]
        %v2314 = vld [vmem:[%s394 + $0x20] sm:$0xff]
        %v2315 = vld [vmem:[%s394 + $0x28] sm:$0xff]
        %v2316 = vld [vmem:[%s394 + $0x30] sm:$0xff]
        %v2317 = vld [vmem:[%s394 + $0x38] sm:$0xff]
        %v2318 = vld [vmem:[%s394 + $0x40] sm:$0xff]
        %v2319 = vld [vmem:[%s394 + $0x48] sm:$0xff]
        %v2320 = vld [vmem:[%s394 + $0x50] sm:$0xff]
        %v2321 = vld [vmem:[%s394 + $0x58] sm:$0xff]
        %v2322 = vld [vmem:[%s394 + $0x60] sm:$0xff]
        %v2323 = vld [vmem:[%s394 + $0x68] sm:$0xff]
        %v2324 = vld [vmem:[%s394 + $0x70] sm:$0xff]
        %v2325 = vld [vmem:[%s394 + $0x78] sm:$0xff]
        %v2326 = vld [vmem:[%s394 + $0x80] sm:$0xff]
        %v2327 = vld [vmem:[%s394 + $0x88] sm:$0xff]
        %v2328 = vld [vmem:[%s394 + $0x90] sm:$0xff]
        %v2329 = vld [vmem:[%s394 + $0x98] sm:$0xff]
        %v2330 = vld [vmem:[%s394 + $0xa0] sm:$0xff]
        %v2331 = vld [vmem:[%s394 + $0xa8] sm:$0xff]
        %v2332 = vld [vmem:[%s394 + $0xb0] sm:$0xff]
        %v2333 = vld [vmem:[%s394 + $0xb8] sm:$0xff]
        %v2334 = vld [vmem:[%s394 + $0xc0] sm:$0xff]
        %v2335 = vld [vmem:[%s394 + $0xc8] sm:$0xff]
        %v2336 = vld [vmem:[%s394 + $0xd0] sm:$0xff]
        %v2337 = vld [vmem:[%s394 + $0xd8] sm:$0xff]
        %v2338 = vld [vmem:[%s394 + $0xe0] sm:$0xff]
        %v2339 = vld [vmem:[%s394 + $0xe8] sm:$0xff]
        %v2340 = vld [vmem:[%s394 + $0xf0] sm:$0xff]
        %v2341 = vld [vmem:[%s394 + $0xf8] sm:$0xff]
        %v2342 = vld [vmem:[%s394 + $0x100] sm:$0xff]
        %v2343 = vld [vmem:[%s394 + $0x108] sm:$0xff]
        %v2344 = vld [vmem:[%s394 + $0x110] sm:$0xff]
        %v2345 = vld [vmem:[%s394 + $0x118] sm:$0xff]
        %v2346 = vld [vmem:[%s394 + $0x120] sm:$0xff]
        %v2347 = vld [vmem:[%s394 + $0x128] sm:$0xff]
        %v2348 = vld [vmem:[%s394 + $0x130] sm:$0xff]
        %v2349 = vld [vmem:[%s394 + $0x138] sm:$0xff]
        %v2350 = vld [vmem:[%s394 + $0x140] sm:$0xff]
        %v2351 = vld [vmem:[%s394 + $0x148] sm:$0xff]
        %v2352 = vld [vmem:[%s394 + $0x150] sm:$0xff]
        %v2353 = vld [vmem:[%s394 + $0x158] sm:$0xff]
        %v2354 = vld [vmem:[%s394 + $0x160] sm:$0xff]
        %v2355 = vld [vmem:[%s394 + $0x168] sm:$0xff]
        %v2356 = vld [vmem:[%s394 + $0x170] sm:$0xff]
        %v2357 = vld [vmem:[%s394 + $0x178] sm:$0xff]
        %v2358 = vld [vmem:[%s394 + $0x180] sm:$0xff]
        %v2359 = vld [vmem:[%s394 + $0x188] sm:$0xff]
        %v2360 = vld [vmem:[%s394 + $0x190] sm:$0xff]
        %v2361 = vld [vmem:[%s394 + $0x198] sm:$0xff]
        %v2362 = vld [vmem:[%s394 + $0x1a0] sm:$0xff]
        %v2363 = vld [vmem:[%s394 + $0x1a8] sm:$0xff]
        %v2364 = vld [vmem:[%s394 + $0x1b0] sm:$0xff]
        %v2365 = vld [vmem:[%s394 + $0x1b8] sm:$0xff]
        %v2366 = vld [vmem:[%s394 + $0x1c0] sm:$0xff]
        %v2367 = vld [vmem:[%s394 + $0x1c8] sm:$0xff]
        %v2368 = vld [vmem:[%s394 + $0x1d0] sm:$0xff]
        %v2369 = vld [vmem:[%s394 + $0x1d8] sm:$0xff]
        %v2370 = vld [vmem:[%s394 + $0x1e0] sm:$0xff]
        %v2371 = vld [vmem:[%s394 + $0x1e8] sm:$0xff]
        %v2372 = vld [vmem:[%s394 + $0x1f0] sm:$0xff]
        %v2373 = vld [vmem:[%s394 + $0x1f8] sm:$0xff]
        %2374 = vmatprep.subr.mxu0 %v2311
        %2375 = vmatpush1.msra.mxu0 %v2310
        %2376 = vmatprep.subr.mxu0 %v2315
        %2377 = vmatpush1.msra.mxu0 %v2314
        %2378 = vmatprep.subr.mxu0 %v2319
        %2379 = vmatpush1.msra.mxu0 %v2318
        %2380 = vmatprep.subr.mxu0 %v2323
        %2381 = vmatpush1.msra.mxu0 %v2322
        %2382 = vmatprep.subr.mxu0 %v2327
        %2383 = vmatpush1.msra.mxu0 %v2326
        %2384 = vmatprep.subr.mxu0 %v2331
        %2385 = vmatpush1.msra.mxu0 %v2330
        %2386 = vmatprep.subr.mxu0 %v2335
        %2387 = vmatpush1.msra.mxu0 %v2334
        %2388 = vmatprep.subr.mxu0 %v2339
        %2389 = vmatpush1.msra.mxu0 %v2338
        %2390 = vmatprep.subr.mxu0 %v2343
        %2391 = vmatpush1.msra.mxu0 %v2342
        %2392 = vmatprep.subr.mxu0 %v2347
        %2393 = vmatpush1.msra.mxu0 %v2346
        %2394 = vmatprep.subr.mxu0 %v2351
        %2395 = vmatpush1.msra.mxu0 %v2350
        %2396 = vmatprep.subr.mxu0 %v2355
        %2397 = vmatpush1.msra.mxu0 %v2354
        %2398 = vmatprep.subr.mxu0 %v2359
        %2399 = vmatpush1.msra.mxu0 %v2358
        %2400 = vmatprep.subr.mxu0 %v2363
        %2401 = vmatpush1.msra.mxu0 %v2362
        %2402 = vmatprep.subr.mxu0 %v2367
        %2403 = vmatpush1.msra.mxu0 %v2366
        %2404 = vmatprep.subr.mxu0 %v2371
        %2405 = vmatpush1.msra.mxu0 %v2370
        %2406 = vmatprep.subr.mxu0 0.0
        %2407 = vmatpush1.msra.mxu0 0.0
        %2408 = vmatprep.subr.mxu0 0.0
        %2409 = vmatpush1.msra.mxu0 0.0
        %2410 = vmatprep.subr.mxu0 0.0
        %2411 = vmatpush1.msra.mxu0 0.0
        %2412 = vmatprep.subr.mxu0 0.0
        %2413 = vmatpush1.msra.mxu0 0.0
        %2414 = vmatprep.subr.mxu0 0.0
        %2415 = vmatpush1.msra.mxu0 0.0
        %2416 = vmatprep.subr.mxu0 0.0
        %2417 = vmatpush1.msra.mxu0 0.0
        %2418 = vmatprep.subr.mxu0 0.0
        %2419 = vmatpush1.msra.mxu0 0.0
        %2420 = vmatprep.subr.mxu0 0.0
        %2421 = vmatpush1.msra.mxu0 0.0
        %2422 = vmatprep.subr.mxu0 0.0
        %2423 = vmatpush1.msra.mxu0 0.0
        %2424 = vmatprep.subr.mxu0 0.0
        %2425 = vmatpush1.msra.mxu0 0.0
        %2426 = vmatprep.subr.mxu0 0.0
        %2427 = vmatpush1.msra.mxu0 0.0
        %2428 = vmatprep.subr.mxu0 0.0
        %2429 = vmatpush1.msra.mxu0 0.0
        %2430 = vmatprep.subr.mxu0 0.0
        %2431 = vmatpush1.msra.mxu0 0.0
        %2432 = vmatprep.subr.mxu0 0.0
        %2433 = vmatpush1.msra.mxu0 0.0
        %2434 = vmatprep.subr.mxu0 0.0
        %2435 = vmatpush1.msra.mxu0 0.0
        %2436 = vmatprep.subr.mxu0 0.0
        %2437 = vmatpush1.msra.mxu0 0.0
        %2438 = vmatprep.mubr.f32.mxu0 0.0
        %2439 = vmatmul.mubr.f32.gmra.mrb[0].mxu0 %v2302
        %v2440 = vpop.f32.mrb[0].mxu0
        %v2441 = vadd.f32 0.0, %v2440
        %v2442 = vpop.f32.mrb[0].mxu0
        %v2443 = vadd.f32 0.0, %v2442
        %2444 = vdwg.mxu0
        %2445 = vmatprep.subr.mxu0 %v2313
        %2446 = vmatpush1.msra.mxu0 %v2312
        %2447 = vmatprep.subr.mxu0 %v2317
        %2448 = vmatpush1.msra.mxu0 %v2316
        %2449 = vmatprep.subr.mxu0 %v2321
        %2450 = vmatpush1.msra.mxu0 %v2320
        %2451 = vmatprep.subr.mxu0 %v2325
        %2452 = vmatpush1.msra.mxu0 %v2324
        %2453 = vmatprep.subr.mxu0 %v2329
        %2454 = vmatpush1.msra.mxu0 %v2328
        %2455 = vmatprep.subr.mxu0 %v2333
        %2456 = vmatpush1.msra.mxu0 %v2332
        %2457 = vmatprep.subr.mxu0 %v2337
        %2458 = vmatpush1.msra.mxu0 %v2336
        %2459 = vmatprep.subr.mxu0 %v2341
        %2460 = vmatpush1.msra.mxu0 %v2340
        %2461 = vmatprep.subr.mxu0 %v2345
        %2462 = vmatpush1.msra.mxu0 %v2344
        %2463 = vmatprep.subr.mxu0 %v2349
        %2464 = vmatpush1.msra.mxu0 %v2348
        %2465 = vmatprep.subr.mxu0 %v2353
        %2466 = vmatpush1.msra.mxu0 %v2352
        %2467 = vmatprep.subr.mxu0 %v2357
        %2468 = vmatpush1.msra.mxu0 %v2356
        %2469 = vmatprep.subr.mxu0 %v2361
        %2470 = vmatpush1.msra.mxu0 %v2360
        %2471 = vmatprep.subr.mxu0 %v2365
        %2472 = vmatpush1.msra.mxu0 %v2364
        %2473 = vmatprep.subr.mxu0 %v2369
        %2474 = vmatpush1.msra.mxu0 %v2368
        %2475 = vmatprep.subr.mxu0 %v2373
        %2476 = vmatpush1.msra.mxu0 %v2372
        %2477 = vmatprep.subr.mxu0 0.0
        %2478 = vmatpush1.msra.mxu0 0.0
        %2479 = vmatprep.subr.mxu0 0.0
        %2480 = vmatpush1.msra.mxu0 0.0
        %2481 = vmatprep.subr.mxu0 0.0
        %2482 = vmatpush1.msra.mxu0 0.0
        %2483 = vmatprep.subr.mxu0 0.0
        %2484 = vmatpush1.msra.mxu0 0.0
        %2485 = vmatprep.subr.mxu0 0.0
        %2486 = vmatpush1.msra.mxu0 0.0
        %2487 = vmatprep.subr.mxu0 0.0
        %2488 = vmatpush1.msra.mxu0 0.0
        %2489 = vmatprep.subr.mxu0 0.0
        %2490 = vmatpush1.msra.mxu0 0.0
        %2491 = vmatprep.subr.mxu0 0.0
        %2492 = vmatpush1.msra.mxu0 0.0
        %2493 = vmatprep.subr.mxu0 0.0
        %2494 = vmatpush1.msra.mxu0 0.0
        %2495 = vmatprep.subr.mxu0 0.0
        %2496 = vmatpush1.msra.mxu0 0.0
        %2497 = vmatprep.subr.mxu0 0.0
        %2498 = vmatpush1.msra.mxu0 0.0
        %2499 = vmatprep.subr.mxu0 0.0
        %2500 = vmatpush1.msra.mxu0 0.0
        %2501 = vmatprep.subr.mxu0 0.0
        %2502 = vmatpush1.msra.mxu0 0.0
        %2503 = vmatprep.subr.mxu0 0.0
        %2504 = vmatpush1.msra.mxu0 0.0
        %2505 = vmatprep.subr.mxu0 0.0
        %2506 = vmatpush1.msra.mxu0 0.0
        %2507 = vmatprep.subr.mxu0 0.0
        %2508 = vmatpush1.msra.mxu0 0.0
        %2509 = vmatprep.mubr.f32.mxu0 0.0
        %2510 = vmatmul.mubr.f32.gmra.mrb[0].mxu0 %v2302
        %v2511 = vpop.f32.mrb[0].mxu0
        %v2512 = vadd.f32 0.0, %v2511
        %v2513 = vpop.f32.mrb[0].mxu0
        %v2514 = vadd.f32 0.0, %v2513
        %2515 = vdwg.mxu0
        %v2516 = vadd.f32 %v2306, %v2441
        %v2517 = vadd.f32 %v2307, %v2443
        %v2518 = vadd.f32 %v2308, %v2512
        %v2519 = vadd.f32 %v2309, %v2514
        %v2520 = vxor.u32 %v2516, 2147483648
        %v2521 = vxor.u32 %v2517, 2147483648
        %v2522 = vxor.u32 %v2518, 2147483648
        %v2523 = vmul.f32 %v2520, 1.442695
        %v2524 = vpow.pop %v2523
        %v2525 = vmul.f32 %v2521, 1.442695
        %v2526 = vpow.pop %v2525
        %v2527 = vmul.f32 %v2522, 1.442695
        %v2528 = vpow.pop %v2527
        %v2529 = vadd.f32 %v2524, 1.0
        %v2530 = vadd.f32 %v2526, 1.0
        %v2531 = vadd.f32 %v2528, 1.0
        %v2532 = vrcp.pop %v2529
        %v2533 = vmul.f32 1.0, %v2532
        %v2534 = vrcp.pop %v2530
        %v2535 = vmul.f32 1.0, %v2534
        %v2536 = vrcp.pop %v2531
        %v2537 = vmul.f32 1.0, %v2536
        %v2538 = vtanh.pop %v2519
        %v2539 = vmul.f32 %v2535, %v2300
        %v2540 = vmul.f32 %v2533, %v2538
        %v2541 = vadd.f32 %v2539, %v2540
        %v2542 = vtanh.pop %v2541
        %v2543 = vmul.f32 %v2537, %v2542
        %s2544 = scalar_lea.vmem [#allocation12], 48
        %2545 = vst [vmem:[%s2544] sm:$0xff] %v2543
        %s2546 = scalar_lea.vmem [#allocation2], 224
        %v2547 = vld [vmem:[%s2546] sm:$0xff]
        %v2548 = vld [vmem:[%s2546 + $0x8] sm:$0xff]
        %v2549 = vld [vmem:[%s2546 + $0x10] sm:$0xff]
        %v2550 = vld [vmem:[%s2546 + $0x18] sm:$0xff]
        %v2551 = vld [vmem:[%s394] sm:$0xff]
        %v2552 = vld [vmem:[%s394 + $0x8] sm:$0xff]
        %v2553 = vld [vmem:[%s394 + $0x10] sm:$0xff]
        %v2554 = vld [vmem:[%s394 + $0x18] sm:$0xff]
        %v2555 = vld [vmem:[%s394 + $0x20] sm:$0xff]
        %v2556 = vld [vmem:[%s394 + $0x28] sm:$0xff]
        %v2557 = vld [vmem:[%s394 + $0x30] sm:$0xff]
        %v2558 = vld [vmem:[%s394 + $0x38] sm:$0xff]
        %v2559 = vld [vmem:[%s394 + $0x40] sm:$0xff]
        %v2560 = vld [vmem:[%s394 + $0x48] sm:$0xff]
        %v2561 = vld [vmem:[%s394 + $0x50] sm:$0xff]
        %v2562 = vld [vmem:[%s394 + $0x58] sm:$0xff]
        %v2563 = vld [vmem:[%s394 + $0x60] sm:$0xff]
        %v2564 = vld [vmem:[%s394 + $0x68] sm:$0xff]
        %v2565 = vld [vmem:[%s394 + $0x70] sm:$0xff]
        %v2566 = vld [vmem:[%s394 + $0x78] sm:$0xff]
        %v2567 = vld [vmem:[%s394 + $0x80] sm:$0xff]
        %v2568 = vld [vmem:[%s394 + $0x88] sm:$0xff]
        %v2569 = vld [vmem:[%s394 + $0x90] sm:$0xff]
        %v2570 = vld [vmem:[%s394 + $0x98] sm:$0xff]
        %v2571 = vld [vmem:[%s394 + $0xa0] sm:$0xff]
        %v2572 = vld [vmem:[%s394 + $0xa8] sm:$0xff]
        %v2573 = vld [vmem:[%s394 + $0xb0] sm:$0xff]
        %v2574 = vld [vmem:[%s394 + $0xb8] sm:$0xff]
        %v2575 = vld [vmem:[%s394 + $0xc0] sm:$0xff]
        %v2576 = vld [vmem:[%s394 + $0xc8] sm:$0xff]
        %v2577 = vld [vmem:[%s394 + $0xd0] sm:$0xff]
        %v2578 = vld [vmem:[%s394 + $0xd8] sm:$0xff]
        %v2579 = vld [vmem:[%s394 + $0xe0] sm:$0xff]
        %v2580 = vld [vmem:[%s394 + $0xe8] sm:$0xff]
        %v2581 = vld [vmem:[%s394 + $0xf0] sm:$0xff]
        %v2582 = vld [vmem:[%s394 + $0xf8] sm:$0xff]
        %v2583 = vld [vmem:[%s394 + $0x100] sm:$0xff]
        %v2584 = vld [vmem:[%s394 + $0x108] sm:$0xff]
        %v2585 = vld [vmem:[%s394 + $0x110] sm:$0xff]
        %v2586 = vld [vmem:[%s394 + $0x118] sm:$0xff]
        %v2587 = vld [vmem:[%s394 + $0x120] sm:$0xff]
        %v2588 = vld [vmem:[%s394 + $0x128] sm:$0xff]
        %v2589 = vld [vmem:[%s394 + $0x130] sm:$0xff]
        %v2590 = vld [vmem:[%s394 + $0x138] sm:$0xff]
        %v2591 = vld [vmem:[%s394 + $0x140] sm:$0xff]
        %v2592 = vld [vmem:[%s394 + $0x148] sm:$0xff]
        %v2593 = vld [vmem:[%s394 + $0x150] sm:$0xff]
        %v2594 = vld [vmem:[%s394 + $0x158] sm:$0xff]
        %v2595 = vld [vmem:[%s394 + $0x160] sm:$0xff]
        %v2596 = vld [vmem:[%s394 + $0x168] sm:$0xff]
        %v2597 = vld [vmem:[%s394 + $0x170] sm:$0xff]
        %v2598 = vld [vmem:[%s394 + $0x178] sm:$0xff]
        %v2599 = vld [vmem:[%s394 + $0x180] sm:$0xff]
        %v2600 = vld [vmem:[%s394 + $0x188] sm:$0xff]
        %v2601 = vld [vmem:[%s394 + $0x190] sm:$0xff]
        %v2602 = vld [vmem:[%s394 + $0x198] sm:$0xff]
        %v2603 = vld [vmem:[%s394 + $0x1a0] sm:$0xff]
        %v2604 = vld [vmem:[%s394 + $0x1a8] sm:$0xff]
        %v2605 = vld [vmem:[%s394 + $0x1b0] sm:$0xff]
        %v2606 = vld [vmem:[%s394 + $0x1b8] sm:$0xff]
        %v2607 = vld [vmem:[%s394 + $0x1c0] sm:$0xff]
        %v2608 = vld [vmem:[%s394 + $0x1c8] sm:$0xff]
        %v2609 = vld [vmem:[%s394 + $0x1d0] sm:$0xff]
        %v2610 = vld [vmem:[%s394 + $0x1d8] sm:$0xff]
        %v2611 = vld [vmem:[%s394 + $0x1e0] sm:$0xff]
        %v2612 = vld [vmem:[%s394 + $0x1e8] sm:$0xff]
        %v2613 = vld [vmem:[%s394 + $0x1f0] sm:$0xff]
        %v2614 = vld [vmem:[%s394 + $0x1f8] sm:$0xff]
        %2615 = vmatprep.subr.mxu0 %v2552
        %2616 = vmatpush1.msra.mxu0 %v2551
        %2617 = vmatprep.subr.mxu0 %v2556
        %2618 = vmatpush1.msra.mxu0 %v2555
        %2619 = vmatprep.subr.mxu0 %v2560
        %2620 = vmatpush1.msra.mxu0 %v2559
        %2621 = vmatprep.subr.mxu0 %v2564
        %2622 = vmatpush1.msra.mxu0 %v2563
        %2623 = vmatprep.subr.mxu0 %v2568
        %2624 = vmatpush1.msra.mxu0 %v2567
        %2625 = vmatprep.subr.mxu0 %v2572
        %2626 = vmatpush1.msra.mxu0 %v2571
        %2627 = vmatprep.subr.mxu0 %v2576
        %2628 = vmatpush1.msra.mxu0 %v2575
        %2629 = vmatprep.subr.mxu0 %v2580
        %2630 = vmatpush1.msra.mxu0 %v2579
        %2631 = vmatprep.subr.mxu0 %v2584
        %2632 = vmatpush1.msra.mxu0 %v2583
        %2633 = vmatprep.subr.mxu0 %v2588
        %2634 = vmatpush1.msra.mxu0 %v2587
        %2635 = vmatprep.subr.mxu0 %v2592
        %2636 = vmatpush1.msra.mxu0 %v2591
        %2637 = vmatprep.subr.mxu0 %v2596
        %2638 = vmatpush1.msra.mxu0 %v2595
        %2639 = vmatprep.subr.mxu0 %v2600
        %2640 = vmatpush1.msra.mxu0 %v2599
        %2641 = vmatprep.subr.mxu0 %v2604
        %2642 = vmatpush1.msra.mxu0 %v2603
        %2643 = vmatprep.subr.mxu0 %v2608
        %2644 = vmatpush1.msra.mxu0 %v2607
        %2645 = vmatprep.subr.mxu0 %v2612
        %2646 = vmatpush1.msra.mxu0 %v2611
        %2647 = vmatprep.subr.mxu0 0.0
        %2648 = vmatpush1.msra.mxu0 0.0
        %2649 = vmatprep.subr.mxu0 0.0
        %2650 = vmatpush1.msra.mxu0 0.0
        %2651 = vmatprep.subr.mxu0 0.0
        %2652 = vmatpush1.msra.mxu0 0.0
        %2653 = vmatprep.subr.mxu0 0.0
        %2654 = vmatpush1.msra.mxu0 0.0
        %2655 = vmatprep.subr.mxu0 0.0
        %2656 = vmatpush1.msra.mxu0 0.0
        %2657 = vmatprep.subr.mxu0 0.0
        %2658 = vmatpush1.msra.mxu0 0.0
        %2659 = vmatprep.subr.mxu0 0.0
        %2660 = vmatpush1.msra.mxu0 0.0
        %2661 = vmatprep.subr.mxu0 0.0
        %2662 = vmatpush1.msra.mxu0 0.0
        %2663 = vmatprep.subr.mxu0 0.0
        %2664 = vmatpush1.msra.mxu0 0.0
        %2665 = vmatprep.subr.mxu0 0.0
        %2666 = vmatpush1.msra.mxu0 0.0
        %2667 = vmatprep.subr.mxu0 0.0
        %2668 = vmatpush1.msra.mxu0 0.0
        %2669 = vmatprep.subr.mxu0 0.0
        %2670 = vmatpush1.msra.mxu0 0.0
        %2671 = vmatprep.subr.mxu0 0.0
        %2672 = vmatpush1.msra.mxu0 0.0
        %2673 = vmatprep.subr.mxu0 0.0
        %2674 = vmatpush1.msra.mxu0 0.0
        %2675 = vmatprep.subr.mxu0 0.0
        %2676 = vmatpush1.msra.mxu0 0.0
        %2677 = vmatprep.subr.mxu0 0.0
        %2678 = vmatpush1.msra.mxu0 0.0
        %2679 = vmatprep.mubr.f32.mxu0 0.0
        %2680 = vmatmul.mubr.f32.gmra.mrb[0].mxu0 %v2543
        %v2681 = vpop.f32.mrb[0].mxu0
        %v2682 = vadd.f32 0.0, %v2681
        %v2683 = vpop.f32.mrb[0].mxu0
        %v2684 = vadd.f32 0.0, %v2683
        %2685 = vdwg.mxu0
        %2686 = vmatprep.subr.mxu0 %v2554
        %2687 = vmatpush1.msra.mxu0 %v2553
        %2688 = vmatprep.subr.mxu0 %v2558
        %2689 = vmatpush1.msra.mxu0 %v2557
        %2690 = vmatprep.subr.mxu0 %v2562
        %2691 = vmatpush1.msra.mxu0 %v2561
        %2692 = vmatprep.subr.mxu0 %v2566
        %2693 = vmatpush1.msra.mxu0 %v2565
        %2694 = vmatprep.subr.mxu0 %v2570
        %2695 = vmatpush1.msra.mxu0 %v2569
        %2696 = vmatprep.subr.mxu0 %v2574
        %2697 = vmatpush1.msra.mxu0 %v2573
        %2698 = vmatprep.subr.mxu0 %v2578
        %2699 = vmatpush1.msra.mxu0 %v2577
        %2700 = vmatprep.subr.mxu0 %v2582
        %2701 = vmatpush1.msra.mxu0 %v2581
        %2702 = vmatprep.subr.mxu0 %v2586
        %2703 = vmatpush1.msra.mxu0 %v2585
        %2704 = vmatprep.subr.mxu0 %v2590
        %2705 = vmatpush1.msra.mxu0 %v2589
        %2706 = vmatprep.subr.mxu0 %v2594
        %2707 = vmatpush1.msra.mxu0 %v2593
        %2708 = vmatprep.subr.mxu0 %v2598
        %2709 = vmatpush1.msra.mxu0 %v2597
        %2710 = vmatprep.subr.mxu0 %v2602
        %2711 = vmatpush1.msra.mxu0 %v2601
        %2712 = vmatprep.subr.mxu0 %v2606
        %2713 = vmatpush1.msra.mxu0 %v2605
        %2714 = vmatprep.subr.mxu0 %v2610
        %2715 = vmatpush1.msra.mxu0 %v2609
        %2716 = vmatprep.subr.mxu0 %v2614
        %2717 = vmatpush1.msra.mxu0 %v2613
        %2718 = vmatprep.subr.mxu0 0.0
        %2719 = vmatpush1.msra.mxu0 0.0
        %2720 = vmatprep.subr.mxu0 0.0
        %2721 = vmatpush1.msra.mxu0 0.0
        %2722 = vmatprep.subr.mxu0 0.0
        %2723 = vmatpush1.msra.mxu0 0.0
        %2724 = vmatprep.subr.mxu0 0.0
        %2725 = vmatpush1.msra.mxu0 0.0
        %2726 = vmatprep.subr.mxu0 0.0
        %2727 = vmatpush1.msra.mxu0 0.0
        %2728 = vmatprep.subr.mxu0 0.0
        %2729 = vmatpush1.msra.mxu0 0.0
        %2730 = vmatprep.subr.mxu0 0.0
        %2731 = vmatpush1.msra.mxu0 0.0
        %2732 = vmatprep.subr.mxu0 0.0
        %2733 = vmatpush1.msra.mxu0 0.0
        %2734 = vmatprep.subr.mxu0 0.0
        %2735 = vmatpush1.msra.mxu0 0.0
        %2736 = vmatprep.subr.mxu0 0.0
        %2737 = vmatpush1.msra.mxu0 0.0
        %2738 = vmatprep.subr.mxu0 0.0
        %2739 = vmatpush1.msra.mxu0 0.0
        %2740 = vmatprep.subr.mxu0 0.0
        %2741 = vmatpush1.msra.mxu0 0.0
        %2742 = vmatprep.subr.mxu0 0.0
        %2743 = vmatpush1.msra.mxu0 0.0
        %2744 = vmatprep.subr.mxu0 0.0
        %2745 = vmatpush1.msra.mxu0 0.0
        %2746 = vmatprep.subr.mxu0 0.0
        %2747 = vmatpush1.msra.mxu0 0.0
        %2748 = vmatprep.subr.mxu0 0.0
        %2749 = vmatpush1.msra.mxu0 0.0
        %2750 = vmatprep.mubr.f32.mxu0 0.0
        %2751 = vmatmul.mubr.f32.gmra.mrb[0].mxu0 %v2543
        %v2752 = vpop.f32.mrb[0].mxu0
        %v2753 = vadd.f32 0.0, %v2752
        %v2754 = vpop.f32.mrb[0].mxu0
        %v2755 = vadd.f32 0.0, %v2754
        %2756 = vdwg.mxu0
        %v2757 = vadd.f32 %v2547, %v2682
        %v2758 = vadd.f32 %v2548, %v2684
        %v2759 = vadd.f32 %v2549, %v2753
        %v2760 = vadd.f32 %v2550, %v2755
        %v2761 = vxor.u32 %v2757, 2147483648
        %v2762 = vxor.u32 %v2758, 2147483648
        %v2763 = vxor.u32 %v2759, 2147483648
        %v2764 = vmul.f32 %v2761, 1.442695
        %v2765 = vpow.pop %v2764
        %v2766 = vmul.f32 %v2762, 1.442695
        %v2767 = vpow.pop %v2766
        %v2768 = vmul.f32 %v2763, 1.442695
        %v2769 = vpow.pop %v2768
        %v2770 = vadd.f32 %v2765, 1.0
        %v2771 = vadd.f32 %v2767, 1.0
        %v2772 = vadd.f32 %v2769, 1.0
        %v2773 = vrcp.pop %v2770
        %v2774 = vmul.f32 1.0, %v2773
        %v2775 = vrcp.pop %v2771
        %v2776 = vmul.f32 1.0, %v2775
        %v2777 = vrcp.pop %v2772
        %v2778 = vmul.f32 1.0, %v2777
        %v2779 = vtanh.pop %v2760
        %v2780 = vmul.f32 %v2776, %v2541
        %v2781 = vmul.f32 %v2774, %v2779
        %v2782 = vadd.f32 %v2780, %v2781
        %v2783 = vtanh.pop %v2782
        %v2784 = vmul.f32 %v2778, %v2783
        %s2785 = scalar_lea.vmem [#allocation12], 56
        %2786 = vst [vmem:[%s2785] sm:$0xff] %v2784
        %2787 = vst [vmem:[%s462] sm:$0xff] %v2784
        %2788 = vst [vmem:[%s469] sm:$0xff] %v2782
        %s2789 = sand.u32 %s33, 1
        %s2790 = scalar_lea.sflag [#allocation14], %s2789
        %s2791 = sand.u32 %s221, 1
        %s2792 = smul.addr %s2791, 8
        %s2793 = scalar_lea.vmem [#allocation13], %s2792
        %s2794 = sand.u32 %s33, 1
        %s2795 = scalar_lea.sflag [#allocation14], %s2794
        %s2796 = sand.u32 %s249, 1
        %s2797 = smul.addr %s2796, 8
        %s2798 = scalar_lea.vmem [#allocation15], %s2797
        // Predicated region
        $region69: #{tpu_custom_call.1} parent=39 // pred_check
          %p2799 = pneg %p203
        $region70: #{tpu_custom_call.1} parent=39 // pred_check_branch
          %2801 = sbr.rel (%p2799) target = $region72
        $region71: #{tpu_custom_call.1} parent=39 // pred_region
          %s2803 = ssub.s32 1024, 1024
          %2804 = vsyncadd [#allocation6], %s2803
          %s2805 = smul.addr %s37, 128
          %s2806 = scalar_lea.hbm %s6, %s2805
          %s2807 = sshll.u32 [#allocation12], 4
          %s2808 = int_to_ptr.vmem [resolvable:$true] %s2807
          %2813 = dma.vmem_to_hbm [thread:$0]  %s2808, 1024, %s2806, [#allocation6], 128, 128, 8
        $region72: #{tpu_custom_call.1} parent=39 // pred_fallthru
          _
        // Predicated region
        $region73: #{tpu_custom_call.1} parent=39 // pred_check
          %p2814 = pneg %p231
        $region74: #{tpu_custom_call.1} parent=39 // pred_check_branch
          %2816 = sbr.rel (%p2814) target = $region76
        $region75: #{tpu_custom_call.1} parent=39 // pred_region
          %s2818 = ssub.s32 128, 128
          %2819 = vsyncadd %s2790, %s2818
          %s2820 = sadd.s32 %s37, %s38
          %s2821 = smul.addr %s2820, 128
          %s2822 = scalar_lea.hbm %s7, %s2821
          %s2824 = sshll.u32 %s2793, 4
          %s2825 = int_to_ptr.vmem [resolvable:$true] %s2824
          %2827 = dma.vmem_to_hbm [thread:$0]  %s2825, 128, %s2822, %s2790
        $region76: #{tpu_custom_call.1} parent=39 // pred_fallthru
          _
        // Predicated region
        $region77: #{tpu_custom_call.1} parent=39 // pred_check
          %p2828 = pneg %p259
        $region78: #{tpu_custom_call.1} parent=39 // pred_check_branch
          %2830 = sbr.rel (%p2828) target = $region80
        $region79: #{tpu_custom_call.1} parent=39 // pred_region
          %s2832 = ssub.s32 128, 128
          %2833 = vsyncadd %s2795, %s2832
          %s2834 = sadd.s32 %s37, %s38
          %s2835 = smul.addr %s2834, 128
          %s2836 = scalar_lea.hbm %s8, %s2835
          %s2838 = sshll.u32 %s2798, 4
          %s2839 = int_to_ptr.vmem [resolvable:$true] %s2838
          %2841 = dma.vmem_to_hbm [thread:$0]  %s2839, 128, %s2836, %s2795
        $region80: #{tpu_custom_call.1} parent=39 // pred_fallthru
          _
        // Predicated region
        $region81: #{tpu_custom_call.1} parent=39 // pred_check
          %p2842 = pneg %p203
        $region82: #{tpu_custom_call.1} parent=39 // pred_check_branch
          %2844 = sbr.rel (%p2842) target = $region84
        $region83: #{tpu_custom_call.1} parent=39 // pred_region
          %2845 = dma.done [#allocation6], 1024
        $region84: #{tpu_custom_call.1} parent=39 // pred_fallthru
          _
      $region40: #{tpu_custom_call.1} parent=5 // pred_fallthru
        _
      %p2846 = scmp.le.s32.totalorder 2, %s28
      // Predicated region
      $region85: #{tpu_custom_call.1} parent=5 // pred_check
        %p2847 = pneg %p2846
      $region86: #{tpu_custom_call.1} parent=5 // pred_check_branch
        %2849 = sbr.rel (%p2847) target = $region88
      $region87: #{tpu_custom_call.1} parent=5 // pred_region
        %s2850 = ssub.s32 %s28, 2
        // Predicated region
        $region89: #{tpu_custom_call.1} parent=87 // pred_check
          %p2851 = pneg %p237
        $region90: #{tpu_custom_call.1} parent=87 // pred_check_branch
          %2853 = sbr.rel (%p2851) target = $region92
        $region91: #{tpu_custom_call.1} parent=87 // pred_region
          %s2854 = sand.u32 %s34, 1
          %s2855 = scalar_lea.sflag [#allocation14], %s2854
          %s2856 = sand.u32 %s222, 1
          %s2857 = smul.addr %s2856, 8
          %s2858 = scalar_lea.vmem [#allocation13], %s2857
          %2859 = dma.done %s2855, 128
        $region92: #{tpu_custom_call.1} parent=87 // pred_fallthru
          _
        // Predicated region
        $region93: #{tpu_custom_call.1} parent=87 // pred_check
          %p2860 = pneg %p265
        $region94: #{tpu_custom_call.1} parent=87 // pred_check_branch
          %2862 = sbr.rel (%p2860) target = $region96
        $region95: #{tpu_custom_call.1} parent=87 // pred_region
          %s2863 = sand.u32 %s34, 1
          %s2864 = scalar_lea.sflag [#allocation14], %s2863
          %s2865 = sand.u32 %s250, 1
          %s2866 = smul.addr %s2865, 8
          %s2867 = scalar_lea.vmem [#allocation15], %s2866
          %2868 = dma.done %s2864, 128
        $region96: #{tpu_custom_call.1} parent=87 // pred_fallthru
          _
      $region88: #{tpu_custom_call.1} parent=5 // pred_fallthru
        _
    $region6: #{tpu_custom_call.1} parent=1 // loop_footer
      %s32 = sadd.s32 1, %s28
    $region7: #{tpu_custom_call.1} parent=1 // loop_footer_branch
      %27 = sbr.rel target = $region3
    $region8: #{tpu_custom_call.1} parent=1 // loop_exit
      _
    %2869 = vsyncpa [#allocation5], 1
    %s2870 = scalar_lea.sflag [#allocation5], 1
    %2871 = vsyncpa %s2870, 1
    %2872 = vsyncpa [#allocation8], 1
    %s2873 = scalar_lea.sflag [#allocation8], 1
    %2874 = vsyncpa %s2873, 1
    %2875 = vsyncpa [#allocation11], 1
    %s2876 = scalar_lea.sflag [#allocation11], 1
    %2877 = vsyncpa %s2876, 1
    %2878 = vsyncpa [#allocation6], 1
    %s2879 = scalar_lea.sflag [#allocation6], 1
    %2880 = vsyncpa %s2879, 1
    %2881 = vsyncpa [#allocation14], 1
    %s2882 = scalar_lea.sflag [#allocation14], 1
    %2883 = vsyncpa %s2882, 1
  %2884 = vsyncmov [#allocation3]
  %s2885 = vpop.sfrf %2884
  %p2886 = scmp.eq.s32.totalorder %s2885, 0
  %p2887 = pneg %p2886
  %2889 = shalt.err (%p2887)

</llo_original>
